<compile_context>
chip_gen: v5e
topology: v5e:2x2
jax: 0.10.0
libtpu: 0.0.40
codegen_flags: <defaults>
</compile_context>

<pallas_src>
import jax
import jax.numpy as jnp
from jax.experimental import pallas as pl
from jax.experimental.pallas import tpu as pltpu


# ----------------------------- Pallas kernels ------------------------------


def _conv_pool_bn_relu_kernel(p_ref, w_ref, s_ref, t_ref, o_ref):
    """4 phase-matmuls -> elementwise max (=2x2 pool) -> BN affine -> ReLU."""
    w = w_ref[...]
    acc = jnp.dot(p_ref[0, 0], w, preferred_element_type=jnp.float32)
    for a in range(1, 4):
        acc = jnp.maximum(
            acc, jnp.dot(p_ref[0, a], w, preferred_element_type=jnp.float32))
    y = jnp.maximum(acc * s_ref[...] + t_ref[...], 0.0)
    o_ref[0] = y.astype(o_ref.dtype)


def _conv_bn_relu_kernel(p_ref, w_ref, t_ref, o_ref):
    """Conv matmul with BN scale pre-folded into the weights; +shift, ReLU."""
    y = jnp.dot(p_ref[0], w_ref[...], preferred_element_type=jnp.float32)
    o_ref[0] = jnp.maximum(y + t_ref[...], 0.0).astype(o_ref.dtype)


def _stage4_head_kernel(p_ref, w4_ref, s4_ref, t4_ref, w5_ref, t5_ref,
                        w6_ref, b6_ref, o_ref):
    """conv4 -> pool -> bn4 -> relu -> fc5 -> bn5 -> relu -> fc6, one kernel."""
    w4 = w4_ref[...]
    acc = jnp.dot(p_ref[0, 0], w4, preferred_element_type=jnp.float32)
    for a in range(1, 4):
        acc = jnp.maximum(
            acc, jnp.dot(p_ref[0, a], w4, preferred_element_type=jnp.float32))
    feat = jnp.maximum(acc * s4_ref[...] + t4_ref[...], 0.0)          # (1, C4)
    h = jnp.dot(feat.astype(w5_ref.dtype), w5_ref[...],
                preferred_element_type=jnp.float32)
    h = jnp.maximum(h + t5_ref[...], 0.0)                             # (1, H5)
    o_ref[0] = (jnp.dot(h.astype(w6_ref.dtype), w6_ref[...],
                        preferred_element_type=jnp.float32) + b6_ref[...])


# ------------------------------- wrappers ----------------------------------

_PAR = pltpu.CompilerParams(dimension_semantics=("parallel",))


def conv_pool_bn_relu(patches, w2d, scale, shift, out_dtype=jnp.bfloat16):
    """patches: (B, 4, Mp, K) phase-ordered im2col; w2d: (K, C).
    Returns pooled+BN+ReLU activations (B, Mp, C)."""
    B, _, Mp, K = patches.shape
    C = w2d.shape[1]
    return pl.pallas_call(
        _conv_pool_bn_relu_kernel,
        out_shape=jax.ShapeDtypeStruct((B, Mp, C), out_dtype),
        grid=(B,),
        in_specs=[
            pl.BlockSpec((1, 4, Mp, K), lambda b: (b, 0, 0, 0)),
            pl.BlockSpec((K, C), lambda b: (0, 0)),
            pl.BlockSpec((1, C), lambda b: (0, 0)),
            pl.BlockSpec((1, C), lambda b: (0, 0)),
        ],
        out_specs=pl.BlockSpec((1, Mp, C), lambda b: (b, 0, 0)),
        compiler_params=_PAR,
    )(patches, w2d, scale[None, :], shift[None, :])


def conv_bn_relu(patches, w2d_scaled, shift, out_dtype=jnp.bfloat16):
    """patches: (B, Mp, K); w2d_scaled: (K, C) with BN scale folded in."""
    B, Mp, K = patches.shape
    C = w2d_scaled.shape[1]
    return pl.pallas_call(
        _conv_bn_relu_kernel,
        out_shape=jax.ShapeDtypeStruct((B, Mp, C), out_dtype),
        grid=(B,),
        in_specs=[
            pl.BlockSpec((1, Mp, K), lambda b: (b, 0, 0)),
            pl.BlockSpec((K, C), lambda b: (0, 0)),
            pl.BlockSpec((1, C), lambda b: (0, 0)),
        ],
        out_specs=pl.BlockSpec((1, Mp, C), lambda b: (b, 0, 0)),
        compiler_params=_PAR,
    )(patches, w2d_scaled, shift[None, :])


def stage4_head(patches, w4, s4, t4, w5s, t5, w6, b6):
    """conv4+pool+bn4+relu feeding the fused fc5+bn5+relu+fc6 head."""
    B, _, _, K = patches.shape
    C4_ = w4.shape[1]
    H5_ = w5s.shape[1]
    NC = w6.shape[1]
    out = pl.pallas_call(
        _stage4_head_kernel,
        out_shape=jax.ShapeDtypeStruct((B, 1, NC), jnp.float32),
        grid=(B,),
        in_specs=[
            pl.BlockSpec((1, 4, 1, K), lambda b: (b, 0, 0, 0)),
            pl.BlockSpec((K, C4_), lambda b: (0, 0)),
            pl.BlockSpec((1, C4_), lambda b: (0, 0)),
            pl.BlockSpec((1, C4_), lambda b: (0, 0)),
            pl.BlockSpec((C4_, H5_), lambda b: (0, 0)),
            pl.BlockSpec((1, H5_), lambda b: (0, 0)),
            pl.BlockSpec((H5_, NC), lambda b: (0, 0)),
            pl.BlockSpec((1, NC), lambda b: (0, 0)),
        ],
        out_specs=pl.BlockSpec((1, 1, NC), lambda b: (b, 0, 0)),
        compiler_params=_PAR,
    )(patches, w4, s4[None, :], t4[None, :], w5s, t5[None, :], w6, b6[None, :])
    return out[:, 0, :]


# --------------------------- patch / BN helpers -----------------------------
# TODO(synk): patch construction stays in XLA glue; a fully in-kernel im2col
# (shifted VMEM slices + reshape) would make the whole network a single
# pallas_call but relies on Mosaic relayout-reshapes that are not guaranteed
# to lower for these odd tile shapes.


def _im2col(x, kh, kw):
    """x: (B,H,W,C) channels-last -> (B, Ho, Wo, kh*kw*C), valid, stride 1.
    Column order is (ki, kj, c), matching _w2d."""
    B, H, W, C = x.shape
    Ho, Wo = H - kh + 1, W - kw + 1
    cols = [x[:, i:i + Ho, j:j + Wo, :] for i in range(kh) for j in range(kw)]
    pat = jnp.stack(cols, axis=3)                      # (B, Ho, Wo, kh*kw, C)
    return pat.reshape(B, Ho, Wo, kh * kw * C), Ho, Wo


def _phase_patches(x, kh, kw):
    """Pooling-phase-ordered patches: (B, 4, Hp*Wp, kh*kw*C).
    Phase (a,b) holds the patches of conv-output positions (2i+a, 2j+b), so the
    2x2 maxpool becomes an elementwise max over axis 1 inside the kernel."""
    pat, Ho, Wo = _im2col(x, kh, kw)
    B = x.shape[0]
    K = pat.shape[-1]
    Hp, Wp = Ho // 2, Wo // 2
    phases = [pat[:, a::2, b::2, :].reshape(B, Hp * Wp, K)
              for a in range(2) for b in range(2)]
    return jnp.stack(phases, axis=1), Hp, Wp


def _flat_patches(x, kh, kw):
    pat, Ho, Wo = _im2col(x, kh, kw)
    B = x.shape[0]
    return pat.reshape(B, Ho * Wo, pat.shape[-1]), Ho, Wo


def _w2d(w):
    """(Cout, Cin, kh, kw) torch conv weight -> (kh*kw*Cin, Cout)."""
    cout, cin, kh, kw = w.shape
    return w.transpose(2, 3, 1, 0).reshape(kh * kw * cin, cout)


def _bn_affine(bn, bias, eps=1e-5):
    """Inference BN folded with the conv bias: y = s*x_nobias + t."""
    s = bn["gamma"] / jnp.sqrt(bn["var"] + eps)
    t = bn["beta"] + (bias - bn["mean"]) * s
    return s, t


# --------------------------- parameters / model -----------------------------

C_IN = 3
C1, C2, C3, C4 = 16, 16, 16, 32   # scaled-down versions of 96/128/192/256
H5 = 48                           # scaled-down fc5 (original: 300 Hebbian units)
NUM_CLASSES = 10


def init_params(key):
    keys = jax.random.split(key, 12)

    def conv_w(k, cout, cin, kh, kw):
        fan_in = cin * kh * kw
        return (jax.random.normal(k, (cout, cin, kh, kw), jnp.float32)
                / jnp.sqrt(float(fan_in)))

    def bn_p(k, c):
        k1, k2, k3, k4 = jax.random.split(k, 4)
        return dict(
            gamma=(1.0 + 0.1 * jax.random.normal(k1, (c,))).astype(jnp.float32),
            beta=(0.1 * jax.random.normal(k2, (c,))).astype(jnp.float32),
            mean=(0.1 * jax.random.normal(k3, (c,))).astype(jnp.float32),
            var=(0.5 + jnp.abs(jax.random.normal(k4, (c,)))).astype(jnp.float32),
        )

    p = {}
    p["w1"], p["b1"] = conv_w(keys[0], C1, C_IN, 5, 5), jnp.zeros((C1,), jnp.float32)
    p["bn1"] = bn_p(keys[1], C1)
    p["w2"], p["b2"] = conv_w(keys[2], C2, C1, 3, 3), jnp.zeros((C2,), jnp.float32)
    p["bn2"] = bn_p(keys[3], C2)
    p["w3"], p["b3"] = conv_w(keys[4], C3, C2, 3, 3), jnp.zeros((C3,), jnp.float32)
    p["bn3"] = bn_p(keys[5], C3)
    p["w4"], p["b4"] = conv_w(keys[6], C4, C3, 3, 3), jnp.zeros((C4,), jnp.float32)
    p["bn4"] = bn_p(keys[7], C4)
    # Hebbian top: fc5 as conv with kernel = full BN4 fmap (1x1 here), b5 = 0.
    p["w5"], p["b5"] = conv_w(keys[8], H5, C4, 1, 1), jnp.zeros((H5,), jnp.float32)
    p["bn5"] = bn_p(keys[9], H5)
    # fc6 Hebbian classifier.
    p["w6"] = (jax.random.normal(keys[10], (H5, NUM_CLASSES), jnp.float32)
               / jnp.sqrt(float(H5)))
    p["b6"] = jnp.zeros((NUM_CLASSES,), jnp.float32)
    return p


def net_forward(params, x):
    p = params
    B = x.shape[0]
    bf16 = jnp.bfloat16
    # Module boundary is NCHW (PyTorch); switch to channels-last (and bf16) once.
    h = x.transpose(0, 2, 3, 1).astype(bf16)                         # (B,32,32,3)

    # --- net_g1_4 (gdes layers 1-4), output taken at BN4 ---
    # Stage 1: conv1 5x5 -> pool -> bn1 -> relu (one kernel)
    s1, t1 = _bn_affine(p["bn1"], p["b1"])
    P1, Hp, Wp = _phase_patches(h, 5, 5)                             # (B,4,196,75)
    y1 = conv_pool_bn_relu(P1, _w2d(p["w1"]).astype(bf16), s1, t1)
    h = y1.reshape(B, Hp, Wp, C1)                                    # (B,14,14,16)

    # Stage 2: conv2 3x3 -> pool -> bn2 -> relu (one kernel)
    s2, t2 = _bn_affine(p["bn2"], p["b2"])
    P2, Hp, Wp = _phase_patches(h, 3, 3)                             # (B,4,36,144)
    y2 = conv_pool_bn_relu(P2, _w2d(p["w2"]).astype(bf16), s2, t2)
    h = y2.reshape(B, Hp, Wp, C2)                                    # (B,6,6,16)

    # Stage 3: conv3 3x3 -> bn3 -> relu (no pool; BN scale folded into weights)
    s3, t3 = _bn_affine(p["bn3"], p["b3"])
    P3, Ho, Wo = _flat_patches(h, 3, 3)                              # (B,16,144)
    w3s = (_w2d(p["w3"]) * s3[None, :]).astype(bf16)
    y3 = conv_bn_relu(P3, w3s, t3)
    h = y3.reshape(B, Ho, Wo, C3)                                    # (B,4,4,16)

    # Stage 4 + Hebbian head, fully fused:
    #   conv4 -> pool -> bn4 -> relu -> fc5 -> bn5 -> relu -> fc6
    # TODO(synk): HebbianMap2d inference is approximated by its weight
    # dot-product (plain conv); similarity-map variants are not modeled.
    s4, t4 = _bn_affine(p["bn4"], p["b4"])
    s5, t5 = _bn_affine(p["bn5"], p["b5"])
    P4, _, _ = _phase_patches(h, 3, 3)                               # (B,4,1,144)
    w5s = (p["w5"].reshape(H5, C4).T * s5[None, :]).astype(bf16)     # (C4,H5)
    return stage4_head(P4, _w2d(p["w4"]).astype(bf16), s4, t4,
                       w5s, t5, p["w6"].astype(bf16), p["b6"])


if __name__ == "__main__":
    key = jax.random.PRNGKey(0)
    pkey, xkey = jax.random.split(key)
    params = init_params(pkey)
    # CIFAR-style input shape (the project's P.INPUT_SHAPE is (3, 32, 32)).
    x = jax.random.normal(xkey, (2, C_IN, 32, 32), jnp.float32)

    out = jax.jit(net_forward)(params, x)
    out = jax.block_until_ready(out)
    assert out.shape == (2, NUM_CLASSES) and out.dtype == jnp.float32
    print("KERNEL_OK")
</pallas_src>

<mosaic_0001>
module attributes {stable_mosaic.version = 11 : i64} {
  func.func @_conv_pool_bn_relu_kernel(%arg0: i32, %arg1: memref<1x4x196x75xbf16, #tpu.memory_space<vmem>>, %arg2: memref<75x16xbf16, #tpu.memory_space<vmem>>, %arg3: memref<1x16xf32, #tpu.memory_space<vmem>>, %arg4: memref<1x16xf32, #tpu.memory_space<vmem>>, %arg5: memref<1x196x16xbf16, #tpu.memory_space<vmem>>) attributes {dimension_semantics = [#tpu.dimension_semantics<parallel>], iteration_bounds = array<i64: 2>, scalar_prefetch = 0 : i64, scratch_operands = 0 : i64, tpu.core_type = #tpu.core_type<tc>, window_params = [{transform_indices = @transform_0, window_bounds = array<i64: 1, 4, 196, 75>}, {pipeline_mode = #tpu.pipeline_mode<synchronous>, transform_indices = @transform_1, window_bounds = array<i64: 75, 16>}, {pipeline_mode = #tpu.pipeline_mode<synchronous>, transform_indices = @transform_2, window_bounds = array<i64: 1, 16>}, {pipeline_mode = #tpu.pipeline_mode<synchronous>, transform_indices = @transform_3, window_bounds = array<i64: 1, 16>}, {transform_indices = @transform_4, window_bounds = array<i64: 1, 196, 16>}]} {
    %c0 = arith.constant 0 : index
    %c0_0 = arith.constant 0 : index
    %0 = vector.load %arg2[%c0, %c0_0] : memref<75x16xbf16, #tpu.memory_space<vmem>>, vector<75x16xbf16>
    %c0_1 = arith.constant 0 : index
    %c0_2 = arith.constant 0 : index
    %c0_3 = arith.constant 0 : index
    %c0_4 = arith.constant 0 : index
    %1 = vector.load %arg1[%c0_1, %c0_2, %c0_3, %c0_4] : memref<1x4x196x75xbf16, #tpu.memory_space<vmem>>, vector<1x1x196x75xbf16>
    %2 = vector.shape_cast %1 : vector<1x1x196x75xbf16> to vector<196x75xbf16>
    %cst = arith.constant dense<0.000000e+00> : vector<196x16xf32>
    %3 = tpu.matmul %2, %0, %cst {dimension_numbers = #tpu.dot_dimension_numbers<[1], [0], [0], [1], [0, 0, 1, 1], [], []>} : vector<196x75xbf16>, vector<75x16xbf16>, vector<196x16xf32> -> vector<196x16xf32>
    %c0_5 = arith.constant 0 : index
    %c1 = arith.constant 1 : index
    %c0_6 = arith.constant 0 : index
    %c0_7 = arith.constant 0 : index
    %4 = vector.load %arg1[%c0_5, %c1, %c0_6, %c0_7] : memref<1x4x196x75xbf16, #tpu.memory_space<vmem>>, vector<1x1x196x75xbf16>
    %5 = vector.shape_cast %4 : vector<1x1x196x75xbf16> to vector<196x75xbf16>
    %cst_8 = arith.constant dense<0.000000e+00> : vector<196x16xf32>
    %6 = tpu.matmul %5, %0, %cst_8 {dimension_numbers = #tpu.dot_dimension_numbers<[1], [0], [0], [1], [0, 0, 1, 1], [], []>} : vector<196x75xbf16>, vector<75x16xbf16>, vector<196x16xf32> -> vector<196x16xf32>
    %7 = arith.maximumf %3, %6 : vector<196x16xf32>
    %c0_9 = arith.constant 0 : index
    %c2 = arith.constant 2 : index
    %c0_10 = arith.constant 0 : index
    %c0_11 = arith.constant 0 : index
    %8 = vector.load %arg1[%c0_9, %c2, %c0_10, %c0_11] : memref<1x4x196x75xbf16, #tpu.memory_space<vmem>>, vector<1x1x196x75xbf16>
    %9 = vector.shape_cast %8 : vector<1x1x196x75xbf16> to vector<196x75xbf16>
    %cst_12 = arith.constant dense<0.000000e+00> : vector<196x16xf32>
    %10 = tpu.matmul %9, %0, %cst_12 {dimension_numbers = #tpu.dot_dimension_numbers<[1], [0], [0], [1], [0, 0, 1, 1], [], []>} : vector<196x75xbf16>, vector<75x16xbf16>, vector<196x16xf32> -> vector<196x16xf32>
    %11 = arith.maximumf %7, %10 : vector<196x16xf32>
    %c0_13 = arith.constant 0 : index
    %c3 = arith.constant 3 : index
    %c0_14 = arith.constant 0 : index
    %c0_15 = arith.constant 0 : index
    %12 = vector.load %arg1[%c0_13, %c3, %c0_14, %c0_15] : memref<1x4x196x75xbf16, #tpu.memory_space<vmem>>, vector<1x1x196x75xbf16>
    %13 = vector.shape_cast %12 : vector<1x1x196x75xbf16> to vector<196x75xbf16>
    %cst_16 = arith.constant dense<0.000000e+00> : vector<196x16xf32>
    %14 = tpu.matmul %13, %0, %cst_16 {dimension_numbers = #tpu.dot_dimension_numbers<[1], [0], [0], [1], [0, 0, 1, 1], [], []>} : vector<196x75xbf16>, vector<75x16xbf16>, vector<196x16xf32> -> vector<196x16xf32>
    %15 = arith.maximumf %11, %14 : vector<196x16xf32>
    %c0_17 = arith.constant 0 : index
    %c0_18 = arith.constant 0 : index
    %16 = vector.load %arg3[%c0_17, %c0_18] : memref<1x16xf32, #tpu.memory_space<vmem>>, vector<1x16xf32>
    %17 = vector.broadcast %16 : vector<1x16xf32> to vector<196x16xf32>
    %18 = arith.mulf %15, %17 : vector<196x16xf32>
    %c0_19 = arith.constant 0 : index
    %c0_20 = arith.constant 0 : index
    %19 = vector.load %arg4[%c0_19, %c0_20] : memref<1x16xf32, #tpu.memory_space<vmem>>, vector<1x16xf32>
    %20 = vector.broadcast %19 : vector<1x16xf32> to vector<196x16xf32>
    %21 = arith.addf %18, %20 : vector<196x16xf32>
    %cst_21 = arith.constant 0.000000e+00 : f32
    %22 = vector.broadcast %cst_21 : f32 to vector<196x16xf32>
    %23 = arith.maximumf %21, %22 : vector<196x16xf32>
    %24 = arith.truncf %23 : vector<196x16xf32> to vector<196x16xbf16>
    %c0_22 = arith.constant 0 : index
    %c0_23 = arith.constant 0 : index
    %c0_24 = arith.constant 0 : index
    %25 = vector.load %arg5[%c0_22, %c0_23, %c0_24] : memref<1x196x16xbf16, #tpu.memory_space<vmem>>, vector<1x196x16xbf16>
    %26 = vector.shape_cast %25 : vector<1x196x16xbf16> to vector<196x16xbf16>
    %27 = vector.shape_cast %24 : vector<196x16xbf16> to vector<1x196x16xbf16>
    tpu.vector_store %arg5[%c0_22, %c0_23, %c0_24], %27 {strides = array<i32>} : memref<1x196x16xbf16, #tpu.memory_space<vmem>>, vector<1x196x16xbf16>,
    return
  }
  func.func @transform_0(%arg0: i32) -> (i32, i32, i32, i32) {
    %c0_i32 = arith.constant 0 : i32
    %c0_i32_0 = arith.constant 0 : i32
    %c0_i32_1 = arith.constant 0 : i32
    %c0_i32_2 = arith.constant 0 : i32
    return %arg0, %c0_i32, %c0_i32_0, %c0_i32_1 : i32, i32, i32, i32
  }
  func.func @transform_1(%arg0: i32) -> (i32, i32) {
    %c0_i32 = arith.constant 0 : i32
    %c0_i32_0 = arith.constant 0 : i32
    %c0_i32_1 = arith.constant 0 : i32
    return %c0_i32, %c0_i32_0 : i32, i32
  }
  func.func @transform_2(%arg0: i32) -> (i32, i32) {
    %c0_i32 = arith.constant 0 : i32
    %c0_i32_0 = arith.constant 0 : i32
    %c0_i32_1 = arith.constant 0 : i32
    return %c0_i32, %c0_i32_0 : i32, i32
  }
  func.func @transform_3(%arg0: i32) -> (i32, i32) {
    %c0_i32 = arith.constant 0 : i32
    %c0_i32_0 = arith.constant 0 : i32
    %c0_i32_1 = arith.constant 0 : i32
    return %c0_i32, %c0_i32_0 : i32, i32
  }
  func.func @transform_4(%arg0: i32) -> (i32, i32, i32) {
    %c0_i32 = arith.constant 0 : i32
    %c0_i32_0 = arith.constant 0 : i32
    %c0_i32_1 = arith.constant 0 : i32
    return %arg0, %c0_i32, %c0_i32_0 : i32, i32, i32
  }
}

module attributes {stable_mosaic.version = 11 : i64} {
  func.func @_conv_pool_bn_relu_kernel(%arg0: i32, %arg1: memref<1x4x36x144xbf16, #tpu.memory_space<vmem>>, %arg2: memref<144x16xbf16, #tpu.memory_space<vmem>>, %arg3: memref<1x16xf32, #tpu.memory_space<vmem>>, %arg4: memref<1x16xf32, #tpu.memory_space<vmem>>, %arg5: memref<1x36x16xbf16, #tpu.memory_space<vmem>>) attributes {dimension_semantics = [#tpu.dimension_semantics<parallel>], iteration_bounds = array<i64: 2>, scalar_prefetch = 0 : i64, scratch_operands = 0 : i64, tpu.core_type = #tpu.core_type<tc>, window_params = [{transform_indices = @transform_0, window_bounds = array<i64: 1, 4, 36, 144>}, {pipeline_mode = #tpu.pipeline_mode<synchronous>, transform_indices = @transform_1, window_bounds = array<i64: 144, 16>}, {pipeline_mode = #tpu.pipeline_mode<synchronous>, transform_indices = @transform_2, window_bounds = array<i64: 1, 16>}, {pipeline_mode = #tpu.pipeline_mode<synchronous>, transform_indices = @transform_3, window_bounds = array<i64: 1, 16>}, {transform_indices = @transform_4, window_bounds = array<i64: 1, 36, 16>}]} {
    %c0 = arith.constant 0 : index
    %c0_0 = arith.constant 0 : index
    %0 = vector.load %arg2[%c0, %c0_0] : memref<144x16xbf16, #tpu.memory_space<vmem>>, vector<144x16xbf16>
    %c0_1 = arith.constant 0 : index
    %c0_2 = arith.constant 0 : index
    %c0_3 = arith.constant 0 : index
    %c0_4 = arith.constant 0 : index
    %1 = vector.load %arg1[%c0_1, %c0_2, %c0_3, %c0_4] : memref<1x4x36x144xbf16, #tpu.memory_space<vmem>>, vector<1x1x36x144xbf16>
    %2 = vector.shape_cast %1 : vector<1x1x36x144xbf16> to vector<36x144xbf16>
    %cst = arith.constant dense<0.000000e+00> : vector<36x16xf32>
    %3 = tpu.matmul %2, %0, %cst {dimension_numbers = #tpu.dot_dimension_numbers<[1], [0], [0], [1], [0, 0, 1, 1], [], []>} : vector<36x144xbf16>, vector<144x16xbf16>, vector<36x16xf32> -> vector<36x16xf32>
    %c0_5 = arith.constant 0 : index
    %c1 = arith.constant 1 : index
    %c0_6 = arith.constant 0 : index
    %c0_7 = arith.constant 0 : index
    %4 = vector.load %arg1[%c0_5, %c1, %c0_6, %c0_7] : memref<1x4x36x144xbf16, #tpu.memory_space<vmem>>, vector<1x1x36x144xbf16>
    %5 = vector.shape_cast %4 : vector<1x1x36x144xbf16> to vector<36x144xbf16>
    %cst_8 = arith.constant dense<0.000000e+00> : vector<36x16xf32>
    %6 = tpu.matmul %5, %0, %cst_8 {dimension_numbers = #tpu.dot_dimension_numbers<[1], [0], [0], [1], [0, 0, 1, 1], [], []>} : vector<36x144xbf16>, vector<144x16xbf16>, vector<36x16xf32> -> vector<36x16xf32>
    %7 = arith.maximumf %3, %6 : vector<36x16xf32>
    %c0_9 = arith.constant 0 : index
    %c2 = arith.constant 2 : index
    %c0_10 = arith.constant 0 : index
    %c0_11 = arith.constant 0 : index
    %8 = vector.load %arg1[%c0_9, %c2, %c0_10, %c0_11] : memref<1x4x36x144xbf16, #tpu.memory_space<vmem>>, vector<1x1x36x144xbf16>
    %9 = vector.shape_cast %8 : vector<1x1x36x144xbf16> to vector<36x144xbf16>
    %cst_12 = arith.constant dense<0.000000e+00> : vector<36x16xf32>
    %10 = tpu.matmul %9, %0, %cst_12 {dimension_numbers = #tpu.dot_dimension_numbers<[1], [0], [0], [1], [0, 0, 1, 1], [], []>} : vector<36x144xbf16>, vector<144x16xbf16>, vector<36x16xf32> -> vector<36x16xf32>
    %11 = arith.maximumf %7, %10 : vector<36x16xf32>
    %c0_13 = arith.constant 0 : index
    %c3 = arith.constant 3 : index
    %c0_14 = arith.constant 0 : index
    %c0_15 = arith.constant 0 : index
    %12 = vector.load %arg1[%c0_13, %c3, %c0_14, %c0_15] : memref<1x4x36x144xbf16, #tpu.memory_space<vmem>>, vector<1x1x36x144xbf16>
    %13 = vector.shape_cast %12 : vector<1x1x36x144xbf16> to vector<36x144xbf16>
    %cst_16 = arith.constant dense<0.000000e+00> : vector<36x16xf32>
    %14 = tpu.matmul %13, %0, %cst_16 {dimension_numbers = #tpu.dot_dimension_numbers<[1], [0], [0], [1], [0, 0, 1, 1], [], []>} : vector<36x144xbf16>, vector<144x16xbf16>, vector<36x16xf32> -> vector<36x16xf32>
    %15 = arith.maximumf %11, %14 : vector<36x16xf32>
    %c0_17 = arith.constant 0 : index
    %c0_18 = arith.constant 0 : index
    %16 = vector.load %arg3[%c0_17, %c0_18] : memref<1x16xf32, #tpu.memory_space<vmem>>, vector<1x16xf32>
    %17 = vector.broadcast %16 : vector<1x16xf32> to vector<36x16xf32>
    %18 = arith.mulf %15, %17 : vector<36x16xf32>
    %c0_19 = arith.constant 0 : index
    %c0_20 = arith.constant 0 : index
    %19 = vector.load %arg4[%c0_19, %c0_20] : memref<1x16xf32, #tpu.memory_space<vmem>>, vector<1x16xf32>
    %20 = vector.broadcast %19 : vector<1x16xf32> to vector<36x16xf32>
    %21 = arith.addf %18, %20 : vector<36x16xf32>
    %cst_21 = arith.constant 0.000000e+00 : f32
    %22 = vector.broadcast %cst_21 : f32 to vector<36x16xf32>
    %23 = arith.maximumf %21, %22 : vector<36x16xf32>
    %24 = arith.truncf %23 : vector<36x16xf32> to vector<36x16xbf16>
    %c0_22 = arith.constant 0 : index
    %c0_23 = arith.constant 0 : index
    %c0_24 = arith.constant 0 : index
    %25 = vector.load %arg5[%c0_22, %c0_23, %c0_24] : memref<1x36x16xbf16, #tpu.memory_space<vmem>>, vector<1x36x16xbf16>
    %26 = vector.shape_cast %25 : vector<1x36x16xbf16> to vector<36x16xbf16>
    %27 = vector.shape_cast %24 : vector<36x16xbf16> to vector<1x36x16xbf16>
    tpu.vector_store %arg5[%c0_22, %c0_23, %c0_24], %27 {strides = array<i32>} : memref<1x36x16xbf16, #tpu.memory_space<vmem>>, vector<1x36x16xbf16>,
    return
  }
  func.func @transform_0(%arg0: i32) -> (i32, i32, i32, i32) {
    %c0_i32 = arith.constant 0 : i32
    %c0_i32_0 = arith.constant 0 : i32
    %c0_i32_1 = arith.constant 0 : i32
    %c0_i32_2 = arith.constant 0 : i32
    return %arg0, %c0_i32, %c0_i32_0, %c0_i32_1 : i32, i32, i32, i32
  }
  func.func @transform_1(%arg0: i32) -> (i32, i32) {
    %c0_i32 = arith.constant 0 : i32
    %c0_i32_0 = arith.constant 0 : i32
    %c0_i32_1 = arith.constant 0 : i32
    return %c0_i32, %c0_i32_0 : i32, i32
  }
  func.func @transform_2(%arg0: i32) -> (i32, i32) {
    %c0_i32 = arith.constant 0 : i32
    %c0_i32_0 = arith.constant 0 : i32
    %c0_i32_1 = arith.constant 0 : i32
    return %c0_i32, %c0_i32_0 : i32, i32
  }
  func.func @transform_3(%arg0: i32) -> (i32, i32) {
    %c0_i32 = arith.constant 0 : i32
    %c0_i32_0 = arith.constant 0 : i32
    %c0_i32_1 = arith.constant 0 : i32
    return %c0_i32, %c0_i32_0 : i32, i32
  }
  func.func @transform_4(%arg0: i32) -> (i32, i32, i32) {
    %c0_i32 = arith.constant 0 : i32
    %c0_i32_0 = arith.constant 0 : i32
    %c0_i32_1 = arith.constant 0 : i32
    return %arg0, %c0_i32, %c0_i32_0 : i32, i32, i32
  }
}

module attributes {stable_mosaic.version = 11 : i64} {
  func.func @_conv_bn_relu_kernel(%arg0: i32, %arg1: memref<1x16x144xbf16, #tpu.memory_space<vmem>>, %arg2: memref<144x16xbf16, #tpu.memory_space<vmem>>, %arg3: memref<1x16xf32, #tpu.memory_space<vmem>>, %arg4: memref<1x16x16xbf16, #tpu.memory_space<vmem>>) attributes {dimension_semantics = [#tpu.dimension_semantics<parallel>], iteration_bounds = array<i64: 2>, scalar_prefetch = 0 : i64, scratch_operands = 0 : i64, tpu.core_type = #tpu.core_type<tc>, window_params = [{transform_indices = @transform_0, window_bounds = array<i64: 1, 16, 144>}, {pipeline_mode = #tpu.pipeline_mode<synchronous>, transform_indices = @transform_1, window_bounds = array<i64: 144, 16>}, {pipeline_mode = #tpu.pipeline_mode<synchronous>, transform_indices = @transform_2, window_bounds = array<i64: 1, 16>}, {transform_indices = @transform_3, window_bounds = array<i64: 1, 16, 16>}]} {
    %c0 = arith.constant 0 : index
    %c0_0 = arith.constant 0 : index
    %c0_1 = arith.constant 0 : index
    %0 = vector.load %arg1[%c0, %c0_0, %c0_1] : memref<1x16x144xbf16, #tpu.memory_space<vmem>>, vector<1x16x144xbf16>
    %1 = vector.shape_cast %0 : vector<1x16x144xbf16> to vector<16x144xbf16>
    %c0_2 = arith.constant 0 : index
    %c0_3 = arith.constant 0 : index
    %2 = vector.load %arg2[%c0_2, %c0_3] : memref<144x16xbf16, #tpu.memory_space<vmem>>, vector<144x16xbf16>
    %cst = arith.constant dense<0.000000e+00> : vector<16x16xf32>
    %3 = tpu.matmul %1, %2, %cst {dimension_numbers = #tpu.dot_dimension_numbers<[1], [0], [0], [1], [0, 0, 1, 1], [], []>} : vector<16x144xbf16>, vector<144x16xbf16>, vector<16x16xf32> -> vector<16x16xf32>
    %c0_4 = arith.constant 0 : index
    %c0_5 = arith.constant 0 : index
    %4 = vector.load %arg3[%c0_4, %c0_5] : memref<1x16xf32, #tpu.memory_space<vmem>>, vector<1x16xf32>
    %5 = vector.broadcast %4 : vector<1x16xf32> to vector<16x16xf32>
    %6 = arith.addf %3, %5 : vector<16x16xf32>
    %cst_6 = arith.constant 0.000000e+00 : f32
    %7 = vector.broadcast %cst_6 : f32 to vector<16x16xf32>
    %8 = arith.maximumf %6, %7 : vector<16x16xf32>
    %9 = arith.truncf %8 : vector<16x16xf32> to vector<16x16xbf16>
    %c0_7 = arith.constant 0 : index
    %c0_8 = arith.constant 0 : index
    %c0_9 = arith.constant 0 : index
    %10 = vector.load %arg4[%c0_7, %c0_8, %c0_9] : memref<1x16x16xbf16, #tpu.memory_space<vmem>>, vector<1x16x16xbf16>
    %11 = vector.shape_cast %10 : vector<1x16x16xbf16> to vector<16x16xbf16>
    %12 = vector.shape_cast %9 : vector<16x16xbf16> to vector<1x16x16xbf16>
    tpu.vector_store %arg4[%c0_7, %c0_8, %c0_9], %12 {strides = array<i32>} : memref<1x16x16xbf16, #tpu.memory_space<vmem>>, vector<1x16x16xbf16>,
    return
  }
  func.func @transform_0(%arg0: i32) -> (i32, i32, i32) {
    %c0_i32 = arith.constant 0 : i32
    %c0_i32_0 = arith.constant 0 : i32
    %c0_i32_1 = arith.constant 0 : i32
    return %arg0, %c0_i32, %c0_i32_0 : i32, i32, i32
  }
  func.func @transform_1(%arg0: i32) -> (i32, i32) {
    %c0_i32 = arith.constant 0 : i32
    %c0_i32_0 = arith.constant 0 : i32
    %c0_i32_1 = arith.constant 0 : i32
    return %c0_i32, %c0_i32_0 : i32, i32
  }
  func.func @transform_2(%arg0: i32) -> (i32, i32) {
    %c0_i32 = arith.constant 0 : i32
    %c0_i32_0 = arith.constant 0 : i32
    %c0_i32_1 = arith.constant 0 : i32
    return %c0_i32, %c0_i32_0 : i32, i32
  }
  func.func @transform_3(%arg0: i32) -> (i32, i32, i32) {
    %c0_i32 = arith.constant 0 : i32
    %c0_i32_0 = arith.constant 0 : i32
    %c0_i32_1 = arith.constant 0 : i32
    return %arg0, %c0_i32, %c0_i32_0 : i32, i32, i32
  }
}

module attributes {stable_mosaic.version = 11 : i64} {
  func.func @_stage4_head_kernel(%arg0: i32, %arg1: memref<1x4x1x144xbf16, #tpu.memory_space<vmem>>, %arg2: memref<144x32xbf16, #tpu.memory_space<vmem>>, %arg3: memref<1x32xf32, #tpu.memory_space<vmem>>, %arg4: memref<1x32xf32, #tpu.memory_space<vmem>>, %arg5: memref<32x48xbf16, #tpu.memory_space<vmem>>, %arg6: memref<1x48xf32, #tpu.memory_space<vmem>>, %arg7: memref<48x10xbf16, #tpu.memory_space<vmem>>, %arg8: memref<1x10xf32, #tpu.memory_space<vmem>>, %arg9: memref<1x1x10xf32, #tpu.memory_space<vmem>>) attributes {dimension_semantics = [#tpu.dimension_semantics<parallel>], iteration_bounds = array<i64: 2>, scalar_prefetch = 0 : i64, scratch_operands = 0 : i64, tpu.core_type = #tpu.core_type<tc>, window_params = [{transform_indices = @transform_0, window_bounds = array<i64: 1, 4, 1, 144>}, {pipeline_mode = #tpu.pipeline_mode<synchronous>, transform_indices = @transform_1, window_bounds = array<i64: 144, 32>}, {pipeline_mode = #tpu.pipeline_mode<synchronous>, transform_indices = @transform_2, window_bounds = array<i64: 1, 32>}, {pipeline_mode = #tpu.pipeline_mode<synchronous>, transform_indices = @transform_3, window_bounds = array<i64: 1, 32>}, {pipeline_mode = #tpu.pipeline_mode<synchronous>, transform_indices = @transform_4, window_bounds = array<i64: 32, 48>}, {pipeline_mode = #tpu.pipeline_mode<synchronous>, transform_indices = @transform_5, window_bounds = array<i64: 1, 48>}, {pipeline_mode = #tpu.pipeline_mode<synchronous>, transform_indices = @transform_6, window_bounds = array<i64: 48, 10>}, {pipeline_mode = #tpu.pipeline_mode<synchronous>, transform_indices = @transform_7, window_bounds = array<i64: 1, 10>}, {transform_indices = @transform_8, window_bounds = array<i64: 1, 1, 10>}]} {
    %c0 = arith.constant 0 : index
    %c0_0 = arith.constant 0 : index
    %0 = vector.load %arg2[%c0, %c0_0] : memref<144x32xbf16, #tpu.memory_space<vmem>>, vector<144x32xbf16>
    %c0_1 = arith.constant 0 : index
    %c0_2 = arith.constant 0 : index
    %c0_3 = arith.constant 0 : index
    %c0_4 = arith.constant 0 : index
    %1 = vector.load %arg1[%c0_1, %c0_2, %c0_3, %c0_4] : memref<1x4x1x144xbf16, #tpu.memory_space<vmem>>, vector<1x1x1x144xbf16>
    %2 = vector.shape_cast %1 : vector<1x1x1x144xbf16> to vector<1x144xbf16>
    %cst = arith.constant dense<0.000000e+00> : vector<1x32xf32>
    %3 = tpu.matmul %2, %0, %cst {dimension_numbers = #tpu.dot_dimension_numbers<[1], [0], [0], [1], [0, 0, 1, 1], [], []>} : vector<1x144xbf16>, vector<144x32xbf16>, vector<1x32xf32> -> vector<1x32xf32>
    %c0_5 = arith.constant 0 : index
    %c1 = arith.constant 1 : index
    %c0_6 = arith.constant 0 : index
    %c0_7 = arith.constant 0 : index
    %4 = vector.load %arg1[%c0_5, %c1, %c0_6, %c0_7] : memref<1x4x1x144xbf16, #tpu.memory_space<vmem>>, vector<1x1x1x144xbf16>
    %5 = vector.shape_cast %4 : vector<1x1x1x144xbf16> to vector<1x144xbf16>
    %cst_8 = arith.constant dense<0.000000e+00> : vector<1x32xf32>
    %6 = tpu.matmul %5, %0, %cst_8 {dimension_numbers = #tpu.dot_dimension_numbers<[1], [0], [0], [1], [0, 0, 1, 1], [], []>} : vector<1x144xbf16>, vector<144x32xbf16>, vector<1x32xf32> -> vector<1x32xf32>
    %7 = arith.maximumf %3, %6 : vector<1x32xf32>
    %c0_9 = arith.constant 0 : index
    %c2 = arith.constant 2 : index
    %c0_10 = arith.constant 0 : index
    %c0_11 = arith.constant 0 : index
    %8 = vector.load %arg1[%c0_9, %c2, %c0_10, %c0_11] : memref<1x4x1x144xbf16, #tpu.memory_space<vmem>>, vector<1x1x1x144xbf16>
    %9 = vector.shape_cast %8 : vector<1x1x1x144xbf16> to vector<1x144xbf16>
    %cst_12 = arith.constant dense<0.000000e+00> : vector<1x32xf32>
    %10 = tpu.matmul %9, %0, %cst_12 {dimension_numbers = #tpu.dot_dimension_numbers<[1], [0], [0], [1], [0, 0, 1, 1], [], []>} : vector<1x144xbf16>, vector<144x32xbf16>, vector<1x32xf32> -> vector<1x32xf32>
    %11 = arith.maximumf %7, %10 : vector<1x32xf32>
    %c0_13 = arith.constant 0 : index
    %c3 = arith.constant 3 : index
    %c0_14 = arith.constant 0 : index
    %c0_15 = arith.constant 0 : index
    %12 = vector.load %arg1[%c0_13, %c3, %c0_14, %c0_15] : memref<1x4x1x144xbf16, #tpu.memory_space<vmem>>, vector<1x1x1x144xbf16>
    %13 = vector.shape_cast %12 : vector<1x1x1x144xbf16> to vector<1x144xbf16>
    %cst_16 = arith.constant dense<0.000000e+00> : vector<1x32xf32>
    %14 = tpu.matmul %13, %0, %cst_16 {dimension_numbers = #tpu.dot_dimension_numbers<[1], [0], [0], [1], [0, 0, 1, 1], [], []>} : vector<1x144xbf16>, vector<144x32xbf16>, vector<1x32xf32> -> vector<1x32xf32>
    %15 = arith.maximumf %11, %14 : vector<1x32xf32>
    %c0_17 = arith.constant 0 : index
    %c0_18 = arith.constant 0 : index
    %16 = vector.load %arg3[%c0_17, %c0_18] : memref<1x32xf32, #tpu.memory_space<vmem>>, vector<1x32xf32>
    %17 = arith.mulf %15, %16 : vector<1x32xf32>
    %c0_19 = arith.constant 0 : index
    %c0_20 = arith.constant 0 : index
    %18 = vector.load %arg4[%c0_19, %c0_20] : memref<1x32xf32, #tpu.memory_space<vmem>>, vector<1x32xf32>
    %19 = arith.addf %17, %18 : vector<1x32xf32>
    %cst_21 = arith.constant 0.000000e+00 : f32
    %20 = vector.broadcast %cst_21 : f32 to vector<1x32xf32>
    %21 = arith.maximumf %19, %20 : vector<1x32xf32>
    %22 = arith.truncf %21 : vector<1x32xf32> to vector<1x32xbf16>
    %c0_22 = arith.constant 0 : index
    %c0_23 = arith.constant 0 : index
    %23 = vector.load %arg5[%c0_22, %c0_23] : memref<32x48xbf16, #tpu.memory_space<vmem>>, vector<32x48xbf16>
    %cst_24 = arith.constant dense<0.000000e+00> : vector<1x48xf32>
    %24 = tpu.matmul %22, %23, %cst_24 {dimension_numbers = #tpu.dot_dimension_numbers<[1], [0], [0], [1], [0, 0, 1, 1], [], []>} : vector<1x32xbf16>, vector<32x48xbf16>, vector<1x48xf32> -> vector<1x48xf32>
    %c0_25 = arith.constant 0 : index
    %c0_26 = arith.constant 0 : index
    %25 = vector.load %arg6[%c0_25, %c0_26] : memref<1x48xf32, #tpu.memory_space<vmem>>, vector<1x48xf32>
    %26 = arith.addf %24, %25 : vector<1x48xf32>
    %cst_27 = arith.constant 0.000000e+00 : f32
    %27 = vector.broadcast %cst_27 : f32 to vector<1x48xf32>
    %28 = arith.maximumf %26, %27 : vector<1x48xf32>
    %29 = arith.truncf %28 : vector<1x48xf32> to vector<1x48xbf16>
    %c0_28 = arith.constant 0 : index
    %c0_29 = arith.constant 0 : index
    %30 = vector.load %arg7[%c0_28, %c0_29] : memref<48x10xbf16, #tpu.memory_space<vmem>>, vector<48x10xbf16>
    %cst_30 = arith.constant dense<0.000000e+00> : vector<1x10xf32>
    %31 = tpu.matmul %29, %30, %cst_30 {dimension_numbers = #tpu.dot_dimension_numbers<[1], [0], [0], [1], [0, 0, 1, 1], [], []>} : vector<1x48xbf16>, vector<48x10xbf16>, vector<1x10xf32> -> vector<1x10xf32>
    %c0_31 = arith.constant 0 : index
    %c0_32 = arith.constant 0 : index
    %32 = vector.load %arg8[%c0_31, %c0_32] : memref<1x10xf32, #tpu.memory_space<vmem>>, vector<1x10xf32>
    %33 = arith.addf %31, %32 : vector<1x10xf32>
    %c0_33 = arith.constant 0 : index
    %c0_34 = arith.constant 0 : index
    %c0_35 = arith.constant 0 : index
    %34 = vector.load %arg9[%c0_33, %c0_34, %c0_35] : memref<1x1x10xf32, #tpu.memory_space<vmem>>, vector<1x1x10xf32>
    %35 = vector.shape_cast %34 : vector<1x1x10xf32> to vector<1x10xf32>
    %36 = vector.shape_cast %33 : vector<1x10xf32> to vector<1x1x10xf32>
    tpu.vector_store %arg9[%c0_33, %c0_34, %c0_35], %36 {strides = array<i32>} : memref<1x1x10xf32, #tpu.memory_space<vmem>>, vector<1x1x10xf32>,
    return
  }
  func.func @transform_0(%arg0: i32) -> (i32, i32, i32, i32) {
    %c0_i32 = arith.constant 0 : i32
    %c0_i32_0 = arith.constant 0 : i32
    %c0_i32_1 = arith.constant 0 : i32
    %c0_i32_2 = arith.constant 0 : i32
    return %arg0, %c0_i32, %c0_i32_0, %c0_i32_1 : i32, i32, i32, i32
  }
  func.func @transform_1(%arg0: i32) -> (i32, i32) {
    %c0_i32 = arith.constant 0 : i32
    %c0_i32_0 = arith.constant 0 : i32
    %c0_i32_1 = arith.constant 0 : i32
    return %c0_i32, %c0_i32_0 : i32, i32
  }
  func.func @transform_2(%arg0: i32) -> (i32, i32) {
    %c0_i32 = arith.constant 0 : i32
    %c0_i32_0 = arith.constant 0 : i32
    %c0_i32_1 = arith.constant 0 : i32
    return %c0_i32, %c0_i32_0 : i32, i32
  }
  func.func @transform_3(%arg0: i32) -> (i32, i32) {
    %c0_i32 = arith.constant 0 : i32
    %c0_i32_0 = arith.constant 0 : i32
    %c0_i32_1 = arith.constant 0 : i32
    return %c0_i32, %c0_i32_0 : i32, i32
  }
  func.func @transform_4(%arg0: i32) -> (i32, i32) {
    %c0_i32 = arith.constant 0 : i32
    %c0_i32_0 = arith.constant 0 : i32
    %c0_i32_1 = arith.constant 0 : i32
    return %c0_i32, %c0_i32_0 : i32, i32
  }
  func.func @transform_5(%arg0: i32) -> (i32, i32) {
    %c0_i32 = arith.constant 0 : i32
    %c0_i32_0 = arith.constant 0 : i32
    %c0_i32_1 = arith.constant 0 : i32
    return %c0_i32, %c0_i32_0 : i32, i32
  }
  func.func @transform_6(%arg0: i32) -> (i32, i32) {
    %c0_i32 = arith.constant 0 : i32
    %c0_i32_0 = arith.constant 0 : i32
    %c0_i32_1 = arith.constant 0 : i32
    return %c0_i32, %c0_i32_0 : i32, i32
  }
  func.func @transform_7(%arg0: i32) -> (i32, i32) {
    %c0_i32 = arith.constant 0 : i32
    %c0_i32_0 = arith.constant 0 : i32
    %c0_i32_1 = arith.constant 0 : i32
    return %c0_i32, %c0_i32_0 : i32, i32
  }
  func.func @transform_8(%arg0: i32) -> (i32, i32, i32) {
    %c0_i32 = arith.constant 0 : i32
    %c0_i32_0 = arith.constant 0 : i32
    %c0_i32_1 = arith.constant 0 : i32
    return %arg0, %c0_i32, %c0_i32_0 : i32, i32, i32
  }
}

</mosaic_0001>

<llo_original>
// kernel: net_forward.4
$region0: #{net_forward.4}
  #allocation0 [shape = 'u32[]', space=smem, size = 0x4, offset = 0x4, fixed_abs, tag = 'smem constant byte address 0x4 - core index']
  #allocation1 [shape = 'u32[72,128]{1,0:T(1,128)}', space=vmem, size = 0x9000, scoped, tag = 'internal scratch']
  %s0 = inlined_call_operand.vmem [shape: bf16[2,4,196,75], index: 0, kind: input, shape index: {}]
  %s1 = inlined_call_operand.vmem [shape: bf16[75,16], index: 1, kind: input, shape index: {}]
  %s2 = inlined_call_operand.vmem [shape: f32[1,16], index: 2, kind: input, shape index: {}]
  %s3 = inlined_call_operand.vmem [shape: f32[1,16], index: 3, kind: input, shape index: {}]
  %s4 = inlined_call_operand.vmem [shape: bf16[2,196,16], index: 4, kind: output, shape index: {}]
  %s5 = sld [smem:[#allocation0]]
  $region49: #{net_forward.4} parent=0
    _
  %s7 = ssub.s32 1, %s5
  %s8 = scalar_select 0, %s7, %s5
  loop: start=0, step=1, limit=4
  $region2: #{net_forward.4} parent=0 // loop_pre_header
    _
  $region3: #{net_forward.4} parent=0 // loop_header
    %s10 = sphi 0, %s14
    %p11 = scmp.ge.s32.totalorder %s10, 4
    %s20 = sphi 0, %s22
    %s23 = sphi 0, %s20
    %s24 = sphi 0, %s23
    %s40 = sphi 0, %s24
    %s44 = sphi 0, %s44
    %s46 = sphi 0, %s44
    %s47 = sphi 0, %s46
    %s61 = sphi 0, %s47
    %s65 = sphi 0, %s65
    %s67 = sphi 0, %s65
    %s68 = sphi 0, %s67
    %s82 = sphi 0, %s68
    %s86 = sphi 0, %s86
    %s88 = sphi 0, %s86
    %s89 = sphi 0, %s88
    %s103 = sphi 0, %s89
    %s109 = sphi 0, %s111
    %s112 = sphi 0, %s109
    %s113 = sphi 0, %s112
    %s129 = sphi 0, %s113
  $region4: #{net_forward.4} parent=0 // loop_header_branch
    %13 = sbr.rel (%p11) target = $region8
  $region5: #{net_forward.4} parent=0 // loop_body
    %s15 = ssub.s32 %s10, 1
    %s16 = ssub.s32 %s10, 2
    %s17 = sadd.s32 %s10, 1
    %s18 = ssub.s32 %s10, %s17
    %p19 = scmp.eq.s32.totalorder %s18, 0
    %s21 = sadd.s32 %s20, 1
    %s22 = scalar_select %p19, %s20, %s21
    %p25 = pneg %p19
    %p26 = scmp.eq.s32.totalorder %s10, 1
    %p27 = por %p25, %p26
    %p28 = scmp.ne.s32.totalorder %s20, %s23
    %p29 = scmp.eq.s32.totalorder %s10, 0
    %p30 = por %p28, %p29
    %p31 = scmp.ne.s32.totalorder %s20, %s23
    %p32 = scmp.eq.s32.totalorder %s15, 1
    %p33 = por %p31, %p32
    %p34 = scmp.ne.s32.totalorder %s23, %s24
    %p35 = scmp.eq.s32.totalorder %s15, 0
    %p36 = por %p34, %p35
    %p37 = scmp.ne.s32.totalorder %s23, %s24
    %p38 = scmp.eq.s32.totalorder %s16, 1
    %p39 = por %p37, %p38
    %p41 = scmp.ne.s32.totalorder %s24, %s40
    %p42 = scmp.eq.s32.totalorder %s16, 0
    %p43 = por %p41, %p42
    %s45 = sadd.s32 %s44, 1
    %p48 = scmp.eq.s32.totalorder %s10, 1
    %p49 = scmp.ne.s32.totalorder %s44, %s46
    %p50 = scmp.eq.s32.totalorder %s10, 0
    %p51 = por %p49, %p50
    %p52 = scmp.ne.s32.totalorder %s44, %s46
    %p53 = scmp.eq.s32.totalorder %s15, 1
    %p54 = por %p52, %p53
    %p55 = scmp.ne.s32.totalorder %s46, %s47
    %p56 = scmp.eq.s32.totalorder %s15, 0
    %p57 = por %p55, %p56
    %p58 = scmp.ne.s32.totalorder %s46, %s47
    %p59 = scmp.eq.s32.totalorder %s16, 1
    %p60 = por %p58, %p59
    %p62 = scmp.ne.s32.totalorder %s47, %s61
    %p63 = scmp.eq.s32.totalorder %s16, 0
    %p64 = por %p62, %p63
    %s66 = sadd.s32 %s65, 1
    %p69 = scmp.eq.s32.totalorder %s10, 1
    %p70 = scmp.ne.s32.totalorder %s65, %s67
    %p71 = scmp.eq.s32.totalorder %s10, 0
    %p72 = por %p70, %p71
    %p73 = scmp.ne.s32.totalorder %s65, %s67
    %p74 = scmp.eq.s32.totalorder %s15, 1
    %p75 = por %p73, %p74
    %p76 = scmp.ne.s32.totalorder %s67, %s68
    %p77 = scmp.eq.s32.totalorder %s15, 0
    %p78 = por %p76, %p77
    %p79 = scmp.ne.s32.totalorder %s67, %s68
    %p80 = scmp.eq.s32.totalorder %s16, 1
    %p81 = por %p79, %p80
    %p83 = scmp.ne.s32.totalorder %s68, %s82
    %p84 = scmp.eq.s32.totalorder %s16, 0
    %p85 = por %p83, %p84
    %s87 = sadd.s32 %s86, 1
    %p90 = scmp.eq.s32.totalorder %s10, 1
    %p91 = scmp.ne.s32.totalorder %s86, %s88
    %p92 = scmp.eq.s32.totalorder %s10, 0
    %p93 = por %p91, %p92
    %p94 = scmp.ne.s32.totalorder %s86, %s88
    %p95 = scmp.eq.s32.totalorder %s15, 1
    %p96 = por %p94, %p95
    %p97 = scmp.ne.s32.totalorder %s88, %s89
    %p98 = scmp.eq.s32.totalorder %s15, 0
    %p99 = por %p97, %p98
    %p100 = scmp.ne.s32.totalorder %s88, %s89
    %p101 = scmp.eq.s32.totalorder %s16, 1
    %p102 = por %p100, %p101
    %p104 = scmp.ne.s32.totalorder %s89, %s103
    %p105 = scmp.eq.s32.totalorder %s16, 0
    %p106 = por %p104, %p105
    %s107 = ssub.s32 %s10, %s17
    %p108 = scmp.eq.s32.totalorder %s107, 0
    %s110 = sadd.s32 %s109, 1
    %s111 = scalar_select %p108, %s109, %s110
    %p114 = pneg %p108
    %p115 = scmp.eq.s32.totalorder %s10, 1
    %p116 = por %p114, %p115
    %p117 = scmp.ne.s32.totalorder %s109, %s112
    %p118 = scmp.eq.s32.totalorder %s10, 0
    %p119 = por %p117, %p118
    %p120 = scmp.ne.s32.totalorder %s109, %s112
    %p121 = scmp.eq.s32.totalorder %s15, 1
    %p122 = por %p120, %p121
    %p123 = scmp.ne.s32.totalorder %s112, %s113
    %p124 = scmp.eq.s32.totalorder %s15, 0
    %p125 = por %p123, %p124
    %p126 = scmp.ne.s32.totalorder %s112, %s113
    %p127 = scmp.eq.s32.totalorder %s16, 1
    %p128 = por %p126, %p127
    %p130 = scmp.ne.s32.totalorder %s113, %s129
    %p131 = scmp.eq.s32.totalorder %s16, 0
    %p132 = por %p130, %p131
    %p133 = scmp.le.s32.totalorder 1, %s10
    %p134 = scmp.lt.s32.totalorder %s10, 3
    %p135 = pnand %p133, %p134
    %p136 = pneg %p135
    // Predicated region
    $region9: #{net_forward.4} parent=5 // pred_check
      _
    $region10: #{net_forward.4} parent=5 // pred_check_branch
      %138 = sbr.rel (%p135) target = $region12
    $region11: #{net_forward.4} parent=5 // pred_region
      %s139 = ssub.s32 %s10, 1
      // Predicated region
      $region13: #{net_forward.4} parent=11 // pred_check
        %p140 = pneg %p57
      $region14: #{net_forward.4} parent=11 // pred_check_branch
        %142 = sbr.rel (%p140) target = $region16
      $region15: #{net_forward.4} parent=11 // pred_region
        _
      $region16: #{net_forward.4} parent=11 // pred_fallthru
        _
      // Predicated region
      $region17: #{net_forward.4} parent=11 // pred_check
        %p143 = pneg %p78
      $region18: #{net_forward.4} parent=11 // pred_check_branch
        %145 = sbr.rel (%p143) target = $region20
      $region19: #{net_forward.4} parent=11 // pred_region
        _
      $region20: #{net_forward.4} parent=11 // pred_fallthru
        _
      // Predicated region
      $region21: #{net_forward.4} parent=11 // pred_check
        %p146 = pneg %p99
      $region22: #{net_forward.4} parent=11 // pred_check_branch
        %148 = sbr.rel (%p146) target = $region24
      $region23: #{net_forward.4} parent=11 // pred_region
        _
      $region24: #{net_forward.4} parent=11 // pred_fallthru
        _
    $region12: #{net_forward.4} parent=5 // pred_fallthru
      _
    %p149 = scmp.lt.s32.totalorder %s10, 2
    // Predicated region
    $region25: #{net_forward.4} parent=5 // pred_check
      %p150 = pneg %p149
    $region26: #{net_forward.4} parent=5 // pred_check_branch
      %152 = sbr.rel (%p150) target = $region28
    $region27: #{net_forward.4} parent=5 // pred_region
      // Predicated region
      $region29: #{net_forward.4} parent=27 // pred_check
        %p153 = pneg %p30
      $region30: #{net_forward.4} parent=27 // pred_check_branch
        %155 = sbr.rel (%p153) target = $region32
      $region31: #{net_forward.4} parent=27 // pred_region
        %p156 = scmp.lt.s32.totalorder %s10, 1
        %s157 = scalar_select %p156, %s10, 1
        %s158 = smul.addr %s157, 100
        %s159 = smul.addr %s158, 4
        %s160 = scalar_lea.vmem %s0, %s159
      $region32: #{net_forward.4} parent=27 // pred_fallthru
        _
    $region28: #{net_forward.4} parent=5 // pred_fallthru
      _
    %p161 = scmp.le.s32.totalorder 1, %s10
    %p162 = scmp.lt.s32.totalorder %s10, 3
    %p163 = pnand %p161, %p162
    %p164 = pneg %p163
    // Predicated region
    $region33: #{net_forward.4} parent=5 // pred_check
      _
    $region34: #{net_forward.4} parent=5 // pred_check_branch
      %166 = sbr.rel (%p163) target = $region36
    $region35: #{net_forward.4} parent=5 // pred_region
      %s167 = ssub.s32 %s10, 1
      %p168 = scmp.lt.s32.totalorder %s15, 1
      %s169 = scalar_select %p168, %s15, 1
      %s170 = smul.addr %s169, 100
      %s171 = smul.addr %s170, 4
      %s172 = scalar_lea.vmem %s0, %s171
      %p173 = pneg %p36
      %p174 = pneg %p33
      %p175 = pneg %p57
      %p176 = pneg %p54
      %p177 = pneg %p78
      %p178 = pneg %p75
      %p179 = pneg %p99
      %p180 = pneg %p96
      %p181 = pneg %p125
      %p182 = pneg %p122
      %p183 = scmp.lt.s32.totalorder %s15, 1
      %s184 = scalar_select %p183, %s15, 1
      %s185 = smul.addr %s184, 25
      %s186 = smul.addr %s185, 4
      %s187 = scalar_lea.vmem %s4, %s186
      %p188 = scmp.lt.s32.totalorder %s15, 1
      %s189 = scalar_select %p188, %s15, 1
      %s190 = smul.addr %s189, 100
      %s191 = smul.addr %s190, 4
      %s192 = scalar_lea.vmem %s0, %s191
      %p193 = scmp.lt.s32.totalorder %s15, 1
      %s194 = scalar_select %p193, %s15, 1
      %s195 = smul.addr %s194, 25
      %s196 = smul.addr %s195, 4
      %s197 = scalar_lea.vmem %s4, %s196
      %v199 = vld [vmem:[%s1] sm:$0xf]
      %v200 = vld [vmem:[%s1 + $0x4] sm:$0xf]
      %v201 = vld [vmem:[%s1 + $0x8] sm:$0xf]
      %v202 = vld [vmem:[%s1 + $0xc] sm:$0xf]
      %v203 = vld [vmem:[%s1 + $0x10] sm:$0xf]
      %v204 = vld [vmem:[%s1 + $0x14] sm:$0xf]
      %v205 = vld [vmem:[%s1 + $0x18] sm:$0xf]
      %v206 = vld [vmem:[%s1 + $0x1c] sm:$0xf]
      %v207 = vld [vmem:[%s1 + $0x20] sm:$0xf]
      %v208 = vld [vmem:[%s1 + $0x24] sm:$0x3]
      %v209 = vld [vmem:[%s192] sm:$0xf]
      %v210 = vld [vmem:[%s192 + $0x4] sm:$0xf]
      %v211 = vld [vmem:[%s192 + $0x8] sm:$0xf]
      %v212 = vld [vmem:[%s192 + $0xc] sm:$0xf]
      %v213 = vld [vmem:[%s192 + $0x10] sm:$0xf]
      %v214 = vld [vmem:[%s192 + $0x14] sm:$0xf]
      %v215 = vld [vmem:[%s192 + $0x18] sm:$0xf]
      %v216 = vld [vmem:[%s192 + $0x1c] sm:$0xf]
      %v217 = vld [vmem:[%s192 + $0x20] sm:$0xf]
      %v218 = vld [vmem:[%s192 + $0x24] sm:$0xf]
      %v219 = vld [vmem:[%s192 + $0x28] sm:$0xf]
      %v220 = vld [vmem:[%s192 + $0x2c] sm:$0xf]
      %v221 = vld [vmem:[%s192 + $0x30] sm:$0xf]
      %v222 = vld [vmem:[%s192 + $0x34] sm:$0xf]
      %v223 = vld [vmem:[%s192 + $0x38] sm:$0xf]
      %v224 = vld [vmem:[%s192 + $0x3c] sm:$0xf]
      %v225 = vld [vmem:[%s192 + $0x40] sm:$0xf]
      %v226 = vld [vmem:[%s192 + $0x44] sm:$0xf]
      %v227 = vld [vmem:[%s192 + $0x48] sm:$0xf]
      %v228 = vld [vmem:[%s192 + $0x4c] sm:$0xf]
      %v229 = vld [vmem:[%s192 + $0x50] sm:$0xf]
      %v230 = vld [vmem:[%s192 + $0x54] sm:$0xf]
      %v231 = vld [vmem:[%s192 + $0x58] sm:$0xf]
      %v232 = vld [vmem:[%s192 + $0x5c] sm:$0xf]
      %v233 = vld [vmem:[%s192 + $0x60] sm:$0x3]
      %v259 = vunpack.c.l.b16 %v209
      %v260 = vunpack.c.l.b16 %v210
      %v261 = vunpack.c.l.b16 %v211
      %v262 = vunpack.c.l.b16 %v212
      %v263 = vunpack.c.l.b16 %v213
      %v264 = vunpack.c.l.b16 %v214
      %v265 = vunpack.c.l.b16 %v215
      %v266 = vunpack.c.l.b16 %v216
      %v267 = vunpack.c.l.b16 %v217
      %v268 = vunpack.c.l.b16 %v218
      %v269 = vunpack.c.l.b16 %v219
      %v270 = vunpack.c.l.b16 %v220
      %v271 = vunpack.c.l.b16 %v221
      %v272 = vunpack.c.l.b16 %v222
      %v273 = vunpack.c.l.b16 %v223
      %v274 = vunpack.c.l.b16 %v224
      %v275 = vunpack.c.l.b16 %v225
      %v276 = vunpack.c.l.b16 %v226
      %v277 = vunpack.c.l.b16 %v227
      %v278 = vunpack.c.l.b16 %v228
      %v279 = vunpack.c.l.b16 %v229
      %v280 = vunpack.c.l.b16 %v230
      %v281 = vunpack.c.l.b16 %v231
      %v282 = vunpack.c.l.b16 %v232
      %v283 = vunpack.c.l.b16 %v233
      %v284 = vpack.c.b16 %v260, %v259
      %v285 = vpack.c.b16 %v262, %v261
      %v286 = vpack.c.b16 %v264, %v263
      %v287 = vpack.c.b16 %v266, %v265
      %v288 = vpack.c.b16 %v268, %v267
      %v289 = vpack.c.b16 %v270, %v269
      %v290 = vpack.c.b16 %v272, %v271
      %v291 = vpack.c.b16 %v274, %v273
      %v292 = vpack.c.b16 %v276, %v275
      %v293 = vpack.c.b16 %v278, %v277
      %v294 = vpack.c.b16 %v280, %v279
      %v295 = vpack.c.b16 %v282, %v281
      %v296 = vpack.c.b16 %v283, %v283
      %v307 = vunpack.c.l.b16 %v199
      %v308 = vunpack.c.l.b16 %v200
      %v309 = vunpack.c.l.b16 %v201
      %v310 = vunpack.c.l.b16 %v202
      %v311 = vunpack.c.l.b16 %v203
      %v312 = vunpack.c.l.b16 %v204
      %v313 = vunpack.c.l.b16 %v205
      %v314 = vunpack.c.l.b16 %v206
      %v315 = vunpack.c.l.b16 %v207
      %v316 = vunpack.c.l.b16 %v208
      %v317 = vpack.c.b16 %v308, %v307
      %v318 = vpack.c.b16 %v310, %v309
      %v319 = vpack.c.b16 %v312, %v311
      %v320 = vpack.c.b16 %v314, %v313
      %v321 = vpack.c.b16 %v316, %v315
      %vm326 = vcmask 613376
      %v328 = vsel %vm326, %v284, 0
      %v331 = vsel %vm326, %v285, 0
      %v334 = vsel %vm326, %v286, 0
      %v337 = vsel %vm326, %v287, 0
      %v340 = vsel %vm326, %v288, 0
      %v343 = vsel %vm326, %v289, 0
      %v346 = vsel %vm326, %v290, 0
      %v349 = vsel %vm326, %v291, 0
      %v352 = vsel %vm326, %v292, 0
      %v355 = vsel %vm326, %v293, 0
      %v358 = vsel %vm326, %v294, 0
      %v361 = vsel %vm326, %v295, 0
      %v364 = vsel %vm326, %v296, 0
      %vm366 = vcmask 1044480
      %vm367 = vcmask 1045504
      %v368 = vsel %vm366, 4294967295, 65535
      %v369 = vsel %vm367, %v368, 0
      %v371 = vand.u32 %v321, %v369
      %373 = vmatpush.bf16.msra.mxu0 0
      %374 = vmatpush.bf16.msra.mxu0 0
      %375 = vmatpush.bf16.msra.mxu0 0
      %376 = vmatpush.bf16.msra.mxu0 %v371
      %377 = vmatpush.bf16.msra.mxu0 %v320
      %378 = vmatpush.bf16.msra.mxu0 %v319
      %379 = vmatpush.bf16.msra.mxu0 %v318
      %380 = vmatpush.bf16.msra.mxu0 %v317
      %381 = vmatmul.bf16.gmra.mxu0 %v328
      %v382 = vpop.f32.mrf.mxu0
      %v383 = vadd.f32 0.0, %v382
      %v384 = vpop.f32.mrf.mxu0
      %v385 = vadd.f32 0.0, %v384
      %386 = vmatmul.bf16.gmra.mxu0 %v331
      %v387 = vpop.f32.mrf.mxu0
      %v388 = vadd.f32 0.0, %v387
      %v389 = vpop.f32.mrf.mxu0
      %v390 = vadd.f32 0.0, %v389
      %391 = vmatmul.bf16.gmra.mxu0 %v334
      %v392 = vpop.f32.mrf.mxu0
      %v393 = vadd.f32 0.0, %v392
      %v394 = vpop.f32.mrf.mxu0
      %v395 = vadd.f32 0.0, %v394
      %396 = vmatmul.bf16.gmra.mxu0 %v337
      %v397 = vpop.f32.mrf.mxu0
      %v398 = vadd.f32 0.0, %v397
      %v399 = vpop.f32.mrf.mxu0
      %v400 = vadd.f32 0.0, %v399
      %401 = vmatmul.bf16.gmra.mxu0 %v340
      %v402 = vpop.f32.mrf.mxu0
      %v403 = vadd.f32 0.0, %v402
      %v404 = vpop.f32.mrf.mxu0
      %v405 = vadd.f32 0.0, %v404
      %406 = vmatmul.bf16.gmra.mxu0 %v343
      %v407 = vpop.f32.mrf.mxu0
      %v408 = vadd.f32 0.0, %v407
      %v409 = vpop.f32.mrf.mxu0
      %v410 = vadd.f32 0.0, %v409
      %411 = vmatmul.bf16.gmra.mxu0 %v346
      %v412 = vpop.f32.mrf.mxu0
      %v413 = vadd.f32 0.0, %v412
      %v414 = vpop.f32.mrf.mxu0
      %v415 = vadd.f32 0.0, %v414
      %416 = vmatmul.bf16.gmra.mxu0 %v349
      %v417 = vpop.f32.mrf.mxu0
      %v418 = vadd.f32 0.0, %v417
      %v419 = vpop.f32.mrf.mxu0
      %v420 = vadd.f32 0.0, %v419
      %421 = vmatmul.bf16.gmra.mxu0 %v352
      %v422 = vpop.f32.mrf.mxu0
      %v423 = vadd.f32 0.0, %v422
      %v424 = vpop.f32.mrf.mxu0
      %v425 = vadd.f32 0.0, %v424
      %426 = vmatmul.bf16.gmra.mxu0 %v355
      %v427 = vpop.f32.mrf.mxu0
      %v428 = vadd.f32 0.0, %v427
      %v429 = vpop.f32.mrf.mxu0
      %v430 = vadd.f32 0.0, %v429
      %431 = vmatmul.bf16.gmra.mxu0 %v358
      %v432 = vpop.f32.mrf.mxu0
      %v433 = vadd.f32 0.0, %v432
      %v434 = vpop.f32.mrf.mxu0
      %v435 = vadd.f32 0.0, %v434
      %436 = vmatmul.bf16.gmra.mxu0 %v361
      %v437 = vpop.f32.mrf.mxu0
      %v438 = vadd.f32 0.0, %v437
      %v439 = vpop.f32.mrf.mxu0
      %v440 = vadd.f32 0.0, %v439
      %441 = vmatmul.bf16.gmra.mxu0 %v364
      %v442 = vpop.f32.mrf.mxu0
      %v443 = vadd.f32 0.0, %v442
      %v444 = vpop.f32.mrf.mxu0
      %445 = vdwg.mxu0
      %s446 = scalar_lea.vmem %s192, 100
      %v447 = vld [vmem:[%s446] sm:$0xf]
      %v448 = vld [vmem:[%s446 + $0x4] sm:$0xf]
      %v449 = vld [vmem:[%s446 + $0x8] sm:$0xf]
      %v450 = vld [vmem:[%s446 + $0xc] sm:$0xf]
      %v451 = vld [vmem:[%s446 + $0x10] sm:$0xf]
      %v452 = vld [vmem:[%s446 + $0x14] sm:$0xf]
      %v453 = vld [vmem:[%s446 + $0x18] sm:$0xf]
      %v454 = vld [vmem:[%s446 + $0x1c] sm:$0xf]
      %v455 = vld [vmem:[%s446 + $0x20] sm:$0xf]
      %v456 = vld [vmem:[%s446 + $0x24] sm:$0xf]
      %v457 = vld [vmem:[%s446 + $0x28] sm:$0xf]
      %v458 = vld [vmem:[%s446 + $0x2c] sm:$0xf]
      %v459 = vld [vmem:[%s446 + $0x30] sm:$0xf]
      %v460 = vld [vmem:[%s446 + $0x34] sm:$0xf]
      %v461 = vld [vmem:[%s446 + $0x38] sm:$0xf]
      %v462 = vld [vmem:[%s446 + $0x3c] sm:$0xf]
      %v463 = vld [vmem:[%s446 + $0x40] sm:$0xf]
      %v464 = vld [vmem:[%s446 + $0x44] sm:$0xf]
      %v465 = vld [vmem:[%s446 + $0x48] sm:$0xf]
      %v466 = vld [vmem:[%s446 + $0x4c] sm:$0xf]
      %v467 = vld [vmem:[%s446 + $0x50] sm:$0xf]
      %v468 = vld [vmem:[%s446 + $0x54] sm:$0xf]
      %v469 = vld [vmem:[%s446 + $0x58] sm:$0xf]
      %v470 = vld [vmem:[%s446 + $0x5c] sm:$0xf]
      %v471 = vld [vmem:[%s446 + $0x60] sm:$0x3]
      %v497 = vunpack.c.l.b16 %v447
      %v498 = vunpack.c.l.b16 %v448
      %v499 = vunpack.c.l.b16 %v449
      %v500 = vunpack.c.l.b16 %v450
      %v501 = vunpack.c.l.b16 %v451
      %v502 = vunpack.c.l.b16 %v452
      %v503 = vunpack.c.l.b16 %v453
      %v504 = vunpack.c.l.b16 %v454
      %v505 = vunpack.c.l.b16 %v455
      %v506 = vunpack.c.l.b16 %v456
      %v507 = vunpack.c.l.b16 %v457
      %v508 = vunpack.c.l.b16 %v458
      %v509 = vunpack.c.l.b16 %v459
      %v510 = vunpack.c.l.b16 %v460
      %v511 = vunpack.c.l.b16 %v461
      %v512 = vunpack.c.l.b16 %v462
      %v513 = vunpack.c.l.b16 %v463
      %v514 = vunpack.c.l.b16 %v464
      %v515 = vunpack.c.l.b16 %v465
      %v516 = vunpack.c.l.b16 %v466
      %v517 = vunpack.c.l.b16 %v467
      %v518 = vunpack.c.l.b16 %v468
      %v519 = vunpack.c.l.b16 %v469
      %v520 = vunpack.c.l.b16 %v470
      %v521 = vunpack.c.l.b16 %v471
      %v522 = vpack.c.b16 %v498, %v497
      %v523 = vpack.c.b16 %v500, %v499
      %v524 = vpack.c.b16 %v502, %v501
      %v525 = vpack.c.b16 %v504, %v503
      %v526 = vpack.c.b16 %v506, %v505
      %v527 = vpack.c.b16 %v508, %v507
      %v528 = vpack.c.b16 %v510, %v509
      %v529 = vpack.c.b16 %v512, %v511
      %v530 = vpack.c.b16 %v514, %v513
      %v531 = vpack.c.b16 %v516, %v515
      %v532 = vpack.c.b16 %v518, %v517
      %v533 = vpack.c.b16 %v520, %v519
      %v534 = vpack.c.b16 %v521, %v521
      %v536 = vsel %vm326, %v522, 0
      %v539 = vsel %vm326, %v523, 0
      %v542 = vsel %vm326, %v524, 0
      %v545 = vsel %vm326, %v525, 0
      %v548 = vsel %vm326, %v526, 0
      %v551 = vsel %vm326, %v527, 0
      %v554 = vsel %vm326, %v528, 0
      %v557 = vsel %vm326, %v529, 0
      %v560 = vsel %vm326, %v530, 0
      %v563 = vsel %vm326, %v531, 0
      %v566 = vsel %vm326, %v532, 0
      %v569 = vsel %vm326, %v533, 0
      %v572 = vsel %vm326, %v534, 0
      %574 = vmatpush.bf16.msra.mxu0 0
      %575 = vmatpush.bf16.msra.mxu0 0
      %576 = vmatpush.bf16.msra.mxu0 0
      %577 = vmatpush.bf16.msra.mxu0 %v371
      %578 = vmatpush.bf16.msra.mxu0 %v320
      %579 = vmatpush.bf16.msra.mxu0 %v319
      %580 = vmatpush.bf16.msra.mxu0 %v318
      %581 = vmatpush.bf16.msra.mxu0 %v317
      %582 = vmatmul.bf16.gmra.mxu0 %v536
      %v583 = vpop.f32.mrf.mxu0
      %v584 = vadd.f32 0.0, %v583
      %v585 = vpop.f32.mrf.mxu0
      %v586 = vadd.f32 0.0, %v585
      %587 = vmatmul.bf16.gmra.mxu0 %v539
      %v588 = vpop.f32.mrf.mxu0
      %v589 = vadd.f32 0.0, %v588
      %v590 = vpop.f32.mrf.mxu0
      %v591 = vadd.f32 0.0, %v590
      %592 = vmatmul.bf16.gmra.mxu0 %v542
      %v593 = vpop.f32.mrf.mxu0
      %v594 = vadd.f32 0.0, %v593
      %v595 = vpop.f32.mrf.mxu0
      %v596 = vadd.f32 0.0, %v595
      %597 = vmatmul.bf16.gmra.mxu0 %v545
      %v598 = vpop.f32.mrf.mxu0
      %v599 = vadd.f32 0.0, %v598
      %v600 = vpop.f32.mrf.mxu0
      %v601 = vadd.f32 0.0, %v600
      %602 = vmatmul.bf16.gmra.mxu0 %v548
      %v603 = vpop.f32.mrf.mxu0
      %v604 = vadd.f32 0.0, %v603
      %v605 = vpop.f32.mrf.mxu0
      %v606 = vadd.f32 0.0, %v605
      %607 = vmatmul.bf16.gmra.mxu0 %v551
      %v608 = vpop.f32.mrf.mxu0
      %v609 = vadd.f32 0.0, %v608
      %v610 = vpop.f32.mrf.mxu0
      %v611 = vadd.f32 0.0, %v610
      %612 = vmatmul.bf16.gmra.mxu0 %v554
      %v613 = vpop.f32.mrf.mxu0
      %v614 = vadd.f32 0.0, %v613
      %v615 = vpop.f32.mrf.mxu0
      %v616 = vadd.f32 0.0, %v615
      %617 = vmatmul.bf16.gmra.mxu0 %v557
      %v618 = vpop.f32.mrf.mxu0
      %v619 = vadd.f32 0.0, %v618
      %v620 = vpop.f32.mrf.mxu0
      %v621 = vadd.f32 0.0, %v620
      %622 = vmatmul.bf16.gmra.mxu0 %v560
      %v623 = vpop.f32.mrf.mxu0
      %v624 = vadd.f32 0.0, %v623
      %v625 = vpop.f32.mrf.mxu0
      %v626 = vadd.f32 0.0, %v625
      %627 = vmatmul.bf16.gmra.mxu0 %v563
      %v628 = vpop.f32.mrf.mxu0
      %v629 = vadd.f32 0.0, %v628
      %v630 = vpop.f32.mrf.mxu0
      %v631 = vadd.f32 0.0, %v630
      %632 = vmatmul.bf16.gmra.mxu0 %v566
      %v633 = vpop.f32.mrf.mxu0
      %v634 = vadd.f32 0.0, %v633
      %v635 = vpop.f32.mrf.mxu0
      %v636 = vadd.f32 0.0, %v635
      %637 = vmatmul.bf16.gmra.mxu0 %v569
      %v638 = vpop.f32.mrf.mxu0
      %v639 = vadd.f32 0.0, %v638
      %v640 = vpop.f32.mrf.mxu0
      %v641 = vadd.f32 0.0, %v640
      %642 = vmatmul.bf16.gmra.mxu0 %v572
      %v643 = vpop.f32.mrf.mxu0
      %v644 = vadd.f32 0.0, %v643
      %v645 = vpop.f32.mrf.mxu0
      %646 = vdwg.mxu0
      %v647 = vmax.f32 %v383, %v584
      %v648 = vmax.f32 %v385, %v586
      %v649 = vmax.f32 %v388, %v589
      %v650 = vmax.f32 %v390, %v591
      %v651 = vmax.f32 %v393, %v594
      %v652 = vmax.f32 %v395, %v596
      %v653 = vmax.f32 %v398, %v599
      %v654 = vmax.f32 %v400, %v601
      %v655 = vmax.f32 %v403, %v604
      %v656 = vmax.f32 %v405, %v606
      %v657 = vmax.f32 %v408, %v609
      %v658 = vmax.f32 %v410, %v611
      %v659 = vmax.f32 %v413, %v614
      %v660 = vmax.f32 %v415, %v616
      %v661 = vmax.f32 %v418, %v619
      %v662 = vmax.f32 %v420, %v621
      %v663 = vmax.f32 %v423, %v624
      %v664 = vmax.f32 %v425, %v626
      %v665 = vmax.f32 %v428, %v629
      %v666 = vmax.f32 %v430, %v631
      %v667 = vmax.f32 %v433, %v634
      %v668 = vmax.f32 %v435, %v636
      %v669 = vmax.f32 %v438, %v639
      %v670 = vmax.f32 %v440, %v641
      %v671 = vmax.f32 %v443, %v644
      %s672 = scalar_lea.vmem %s192, 200
      %v673 = vld [vmem:[%s672] sm:$0xf]
      %v674 = vld [vmem:[%s672 + $0x4] sm:$0xf]
      %v675 = vld [vmem:[%s672 + $0x8] sm:$0xf]
      %v676 = vld [vmem:[%s672 + $0xc] sm:$0xf]
      %v677 = vld [vmem:[%s672 + $0x10] sm:$0xf]
      %v678 = vld [vmem:[%s672 + $0x14] sm:$0xf]
      %v679 = vld [vmem:[%s672 + $0x18] sm:$0xf]
      %v680 = vld [vmem:[%s672 + $0x1c] sm:$0xf]
      %v681 = vld [vmem:[%s672 + $0x20] sm:$0xf]
      %v682 = vld [vmem:[%s672 + $0x24] sm:$0xf]
      %v683 = vld [vmem:[%s672 + $0x28] sm:$0xf]
      %v684 = vld [vmem:[%s672 + $0x2c] sm:$0xf]
      %v685 = vld [vmem:[%s672 + $0x30] sm:$0xf]
      %v686 = vld [vmem:[%s672 + $0x34] sm:$0xf]
      %v687 = vld [vmem:[%s672 + $0x38] sm:$0xf]
      %v688 = vld [vmem:[%s672 + $0x3c] sm:$0xf]
      %v689 = vld [vmem:[%s672 + $0x40] sm:$0xf]
      %v690 = vld [vmem:[%s672 + $0x44] sm:$0xf]
      %v691 = vld [vmem:[%s672 + $0x48] sm:$0xf]
      %v692 = vld [vmem:[%s672 + $0x4c] sm:$0xf]
      %v693 = vld [vmem:[%s672 + $0x50] sm:$0xf]
      %v694 = vld [vmem:[%s672 + $0x54] sm:$0xf]
      %v695 = vld [vmem:[%s672 + $0x58] sm:$0xf]
      %v696 = vld [vmem:[%s672 + $0x5c] sm:$0xf]
      %v697 = vld [vmem:[%s672 + $0x60] sm:$0x3]
      %v723 = vunpack.c.l.b16 %v673
      %v724 = vunpack.c.l.b16 %v674
      %v725 = vunpack.c.l.b16 %v675
      %v726 = vunpack.c.l.b16 %v676
      %v727 = vunpack.c.l.b16 %v677
      %v728 = vunpack.c.l.b16 %v678
      %v729 = vunpack.c.l.b16 %v679
      %v730 = vunpack.c.l.b16 %v680
      %v731 = vunpack.c.l.b16 %v681
      %v732 = vunpack.c.l.b16 %v682
      %v733 = vunpack.c.l.b16 %v683
      %v734 = vunpack.c.l.b16 %v684
      %v735 = vunpack.c.l.b16 %v685
      %v736 = vunpack.c.l.b16 %v686
      %v737 = vunpack.c.l.b16 %v687
      %v738 = vunpack.c.l.b16 %v688
      %v739 = vunpack.c.l.b16 %v689
      %v740 = vunpack.c.l.b16 %v690
      %v741 = vunpack.c.l.b16 %v691
      %v742 = vunpack.c.l.b16 %v692
      %v743 = vunpack.c.l.b16 %v693
      %v744 = vunpack.c.l.b16 %v694
      %v745 = vunpack.c.l.b16 %v695
      %v746 = vunpack.c.l.b16 %v696
      %v747 = vunpack.c.l.b16 %v697
      %v748 = vpack.c.b16 %v724, %v723
      %v749 = vpack.c.b16 %v726, %v725
      %v750 = vpack.c.b16 %v728, %v727
      %v751 = vpack.c.b16 %v730, %v729
      %v752 = vpack.c.b16 %v732, %v731
      %v753 = vpack.c.b16 %v734, %v733
      %v754 = vpack.c.b16 %v736, %v735
      %v755 = vpack.c.b16 %v738, %v737
      %v756 = vpack.c.b16 %v740, %v739
      %v757 = vpack.c.b16 %v742, %v741
      %v758 = vpack.c.b16 %v744, %v743
      %v759 = vpack.c.b16 %v746, %v745
      %v760 = vpack.c.b16 %v747, %v747
      %v762 = vsel %vm326, %v748, 0
      %v765 = vsel %vm326, %v749, 0
      %v768 = vsel %vm326, %v750, 0
      %v771 = vsel %vm326, %v751, 0
      %v774 = vsel %vm326, %v752, 0
      %v777 = vsel %vm326, %v753, 0
      %v780 = vsel %vm326, %v754, 0
      %v783 = vsel %vm326, %v755, 0
      %v786 = vsel %vm326, %v756, 0
      %v789 = vsel %vm326, %v757, 0
      %v792 = vsel %vm326, %v758, 0
      %v795 = vsel %vm326, %v759, 0
      %v798 = vsel %vm326, %v760, 0
      %800 = vmatpush.bf16.msra.mxu0 0
      %801 = vmatpush.bf16.msra.mxu0 0
      %802 = vmatpush.bf16.msra.mxu0 0
      %803 = vmatpush.bf16.msra.mxu0 %v371
      %804 = vmatpush.bf16.msra.mxu0 %v320
      %805 = vmatpush.bf16.msra.mxu0 %v319
      %806 = vmatpush.bf16.msra.mxu0 %v318
      %807 = vmatpush.bf16.msra.mxu0 %v317
      %808 = vmatmul.bf16.gmra.mxu0 %v762
      %v809 = vpop.f32.mrf.mxu0
      %v810 = vadd.f32 0.0, %v809
      %v811 = vpop.f32.mrf.mxu0
      %v812 = vadd.f32 0.0, %v811
      %813 = vmatmul.bf16.gmra.mxu0 %v765
      %v814 = vpop.f32.mrf.mxu0
      %v815 = vadd.f32 0.0, %v814
      %v816 = vpop.f32.mrf.mxu0
      %v817 = vadd.f32 0.0, %v816
      %818 = vmatmul.bf16.gmra.mxu0 %v768
      %v819 = vpop.f32.mrf.mxu0
      %v820 = vadd.f32 0.0, %v819
      %v821 = vpop.f32.mrf.mxu0
      %v822 = vadd.f32 0.0, %v821
      %823 = vmatmul.bf16.gmra.mxu0 %v771
      %v824 = vpop.f32.mrf.mxu0
      %v825 = vadd.f32 0.0, %v824
      %v826 = vpop.f32.mrf.mxu0
      %v827 = vadd.f32 0.0, %v826
      %828 = vmatmul.bf16.gmra.mxu0 %v774
      %v829 = vpop.f32.mrf.mxu0
      %v830 = vadd.f32 0.0, %v829
      %v831 = vpop.f32.mrf.mxu0
      %v832 = vadd.f32 0.0, %v831
      %833 = vmatmul.bf16.gmra.mxu0 %v777
      %v834 = vpop.f32.mrf.mxu0
      %v835 = vadd.f32 0.0, %v834
      %v836 = vpop.f32.mrf.mxu0
      %v837 = vadd.f32 0.0, %v836
      %838 = vmatmul.bf16.gmra.mxu0 %v780
      %v839 = vpop.f32.mrf.mxu0
      %v840 = vadd.f32 0.0, %v839
      %v841 = vpop.f32.mrf.mxu0
      %v842 = vadd.f32 0.0, %v841
      %843 = vmatmul.bf16.gmra.mxu0 %v783
      %v844 = vpop.f32.mrf.mxu0
      %v845 = vadd.f32 0.0, %v844
      %v846 = vpop.f32.mrf.mxu0
      %v847 = vadd.f32 0.0, %v846
      %848 = vmatmul.bf16.gmra.mxu0 %v786
      %v849 = vpop.f32.mrf.mxu0
      %v850 = vadd.f32 0.0, %v849
      %v851 = vpop.f32.mrf.mxu0
      %v852 = vadd.f32 0.0, %v851
      %853 = vmatmul.bf16.gmra.mxu0 %v789
      %v854 = vpop.f32.mrf.mxu0
      %v855 = vadd.f32 0.0, %v854
      %v856 = vpop.f32.mrf.mxu0
      %v857 = vadd.f32 0.0, %v856
      %858 = vmatmul.bf16.gmra.mxu0 %v792
      %v859 = vpop.f32.mrf.mxu0
      %v860 = vadd.f32 0.0, %v859
      %v861 = vpop.f32.mrf.mxu0
      %v862 = vadd.f32 0.0, %v861
      %863 = vmatmul.bf16.gmra.mxu0 %v795
      %v864 = vpop.f32.mrf.mxu0
      %v865 = vadd.f32 0.0, %v864
      %v866 = vpop.f32.mrf.mxu0
      %v867 = vadd.f32 0.0, %v866
      %868 = vmatmul.bf16.gmra.mxu0 %v798
      %v869 = vpop.f32.mrf.mxu0
      %v870 = vadd.f32 0.0, %v869
      %v871 = vpop.f32.mrf.mxu0
      %872 = vdwg.mxu0
      %v873 = vmax.f32 %v647, %v810
      %v874 = vmax.f32 %v648, %v812
      %v875 = vmax.f32 %v649, %v815
      %v876 = vmax.f32 %v650, %v817
      %v877 = vmax.f32 %v651, %v820
      %v878 = vmax.f32 %v652, %v822
      %v879 = vmax.f32 %v653, %v825
      %v880 = vmax.f32 %v654, %v827
      %v881 = vmax.f32 %v655, %v830
      %v882 = vmax.f32 %v656, %v832
      %v883 = vmax.f32 %v657, %v835
      %v884 = vmax.f32 %v658, %v837
      %v885 = vmax.f32 %v659, %v840
      %v886 = vmax.f32 %v660, %v842
      %v887 = vmax.f32 %v661, %v845
      %v888 = vmax.f32 %v662, %v847
      %v889 = vmax.f32 %v663, %v850
      %v890 = vmax.f32 %v664, %v852
      %v891 = vmax.f32 %v665, %v855
      %v892 = vmax.f32 %v666, %v857
      %v893 = vmax.f32 %v667, %v860
      %v894 = vmax.f32 %v668, %v862
      %v895 = vmax.f32 %v669, %v865
      %v896 = vmax.f32 %v670, %v867
      %v897 = vmax.f32 %v671, %v870
      %s898 = scalar_lea.vmem %s192, 300
      %v899 = vld [vmem:[%s898] sm:$0xf]
      %v900 = vld [vmem:[%s898 + $0x4] sm:$0xf]
      %v901 = vld [vmem:[%s898 + $0x8] sm:$0xf]
      %v902 = vld [vmem:[%s898 + $0xc] sm:$0xf]
      %v903 = vld [vmem:[%s898 + $0x10] sm:$0xf]
      %v904 = vld [vmem:[%s898 + $0x14] sm:$0xf]
      %v905 = vld [vmem:[%s898 + $0x18] sm:$0xf]
      %v906 = vld [vmem:[%s898 + $0x1c] sm:$0xf]
      %v907 = vld [vmem:[%s898 + $0x20] sm:$0xf]
      %v908 = vld [vmem:[%s898 + $0x24] sm:$0xf]
      %v909 = vld [vmem:[%s898 + $0x28] sm:$0xf]
      %v910 = vld [vmem:[%s898 + $0x2c] sm:$0xf]
      %v911 = vld [vmem:[%s898 + $0x30] sm:$0xf]
      %v912 = vld [vmem:[%s898 + $0x34] sm:$0xf]
      %v913 = vld [vmem:[%s898 + $0x38] sm:$0xf]
      %v914 = vld [vmem:[%s898 + $0x3c] sm:$0xf]
      %v915 = vld [vmem:[%s898 + $0x40] sm:$0xf]
      %v916 = vld [vmem:[%s898 + $0x44] sm:$0xf]
      %v917 = vld [vmem:[%s898 + $0x48] sm:$0xf]
      %v918 = vld [vmem:[%s898 + $0x4c] sm:$0xf]
      %v919 = vld [vmem:[%s898 + $0x50] sm:$0xf]
      %v920 = vld [vmem:[%s898 + $0x54] sm:$0xf]
      %v921 = vld [vmem:[%s898 + $0x58] sm:$0xf]
      %v922 = vld [vmem:[%s898 + $0x5c] sm:$0xf]
      %v923 = vld [vmem:[%s898 + $0x60] sm:$0x3]
      %v949 = vunpack.c.l.b16 %v899
      %v950 = vunpack.c.l.b16 %v900
      %v951 = vunpack.c.l.b16 %v901
      %v952 = vunpack.c.l.b16 %v902
      %v953 = vunpack.c.l.b16 %v903
      %v954 = vunpack.c.l.b16 %v904
      %v955 = vunpack.c.l.b16 %v905
      %v956 = vunpack.c.l.b16 %v906
      %v957 = vunpack.c.l.b16 %v907
      %v958 = vunpack.c.l.b16 %v908
      %v959 = vunpack.c.l.b16 %v909
      %v960 = vunpack.c.l.b16 %v910
      %v961 = vunpack.c.l.b16 %v911
      %v962 = vunpack.c.l.b16 %v912
      %v963 = vunpack.c.l.b16 %v913
      %v964 = vunpack.c.l.b16 %v914
      %v965 = vunpack.c.l.b16 %v915
      %v966 = vunpack.c.l.b16 %v916
      %v967 = vunpack.c.l.b16 %v917
      %v968 = vunpack.c.l.b16 %v918
      %v969 = vunpack.c.l.b16 %v919
      %v970 = vunpack.c.l.b16 %v920
      %v971 = vunpack.c.l.b16 %v921
      %v972 = vunpack.c.l.b16 %v922
      %v973 = vunpack.c.l.b16 %v923
      %v974 = vpack.c.b16 %v950, %v949
      %v975 = vpack.c.b16 %v952, %v951
      %v976 = vpack.c.b16 %v954, %v953
      %v977 = vpack.c.b16 %v956, %v955
      %v978 = vpack.c.b16 %v958, %v957
      %v979 = vpack.c.b16 %v960, %v959
      %v980 = vpack.c.b16 %v962, %v961
      %v981 = vpack.c.b16 %v964, %v963
      %v982 = vpack.c.b16 %v966, %v965
      %v983 = vpack.c.b16 %v968, %v967
      %v984 = vpack.c.b16 %v970, %v969
      %v985 = vpack.c.b16 %v972, %v971
      %v986 = vpack.c.b16 %v973, %v973
      %v988 = vsel %vm326, %v974, 0
      %v991 = vsel %vm326, %v975, 0
      %v994 = vsel %vm326, %v976, 0
      %v997 = vsel %vm326, %v977, 0
      %v1000 = vsel %vm326, %v978, 0
      %v1003 = vsel %vm326, %v979, 0
      %v1006 = vsel %vm326, %v980, 0
      %v1009 = vsel %vm326, %v981, 0
      %v1012 = vsel %vm326, %v982, 0
      %v1015 = vsel %vm326, %v983, 0
      %v1018 = vsel %vm326, %v984, 0
      %v1021 = vsel %vm326, %v985, 0
      %v1024 = vsel %vm326, %v986, 0
      %1026 = vmatpush.bf16.msra.mxu0 0
      %1027 = vmatpush.bf16.msra.mxu0 0
      %1028 = vmatpush.bf16.msra.mxu0 0
      %1029 = vmatpush.bf16.msra.mxu0 %v371
      %1030 = vmatpush.bf16.msra.mxu0 %v320
      %1031 = vmatpush.bf16.msra.mxu0 %v319
      %1032 = vmatpush.bf16.msra.mxu0 %v318
      %1033 = vmatpush.bf16.msra.mxu0 %v317
      %1034 = vmatmul.bf16.gmra.mxu0 %v988
      %v1035 = vpop.f32.mrf.mxu0
      %v1036 = vadd.f32 0.0, %v1035
      %v1037 = vpop.f32.mrf.mxu0
      %v1038 = vadd.f32 0.0, %v1037
      %1039 = vmatmul.bf16.gmra.mxu0 %v991
      %v1040 = vpop.f32.mrf.mxu0
      %v1041 = vadd.f32 0.0, %v1040
      %v1042 = vpop.f32.mrf.mxu0
      %v1043 = vadd.f32 0.0, %v1042
      %1044 = vmatmul.bf16.gmra.mxu0 %v994
      %v1045 = vpop.f32.mrf.mxu0
      %v1046 = vadd.f32 0.0, %v1045
      %v1047 = vpop.f32.mrf.mxu0
      %v1048 = vadd.f32 0.0, %v1047
      %1049 = vmatmul.bf16.gmra.mxu0 %v997
      %v1050 = vpop.f32.mrf.mxu0
      %v1051 = vadd.f32 0.0, %v1050
      %v1052 = vpop.f32.mrf.mxu0
      %v1053 = vadd.f32 0.0, %v1052
      %1054 = vmatmul.bf16.gmra.mxu0 %v1000
      %v1055 = vpop.f32.mrf.mxu0
      %v1056 = vadd.f32 0.0, %v1055
      %v1057 = vpop.f32.mrf.mxu0
      %v1058 = vadd.f32 0.0, %v1057
      %1059 = vmatmul.bf16.gmra.mxu0 %v1003
      %v1060 = vpop.f32.mrf.mxu0
      %v1061 = vadd.f32 0.0, %v1060
      %v1062 = vpop.f32.mrf.mxu0
      %v1063 = vadd.f32 0.0, %v1062
      %1064 = vmatmul.bf16.gmra.mxu0 %v1006
      %v1065 = vpop.f32.mrf.mxu0
      %v1066 = vadd.f32 0.0, %v1065
      %v1067 = vpop.f32.mrf.mxu0
      %v1068 = vadd.f32 0.0, %v1067
      %1069 = vmatmul.bf16.gmra.mxu0 %v1009
      %v1070 = vpop.f32.mrf.mxu0
      %v1071 = vadd.f32 0.0, %v1070
      %v1072 = vpop.f32.mrf.mxu0
      %v1073 = vadd.f32 0.0, %v1072
      %1074 = vmatmul.bf16.gmra.mxu0 %v1012
      %v1075 = vpop.f32.mrf.mxu0
      %v1076 = vadd.f32 0.0, %v1075
      %v1077 = vpop.f32.mrf.mxu0
      %v1078 = vadd.f32 0.0, %v1077
      %1079 = vmatmul.bf16.gmra.mxu0 %v1015
      %v1080 = vpop.f32.mrf.mxu0
      %v1081 = vadd.f32 0.0, %v1080
      %v1082 = vpop.f32.mrf.mxu0
      %v1083 = vadd.f32 0.0, %v1082
      %1084 = vmatmul.bf16.gmra.mxu0 %v1018
      %v1085 = vpop.f32.mrf.mxu0
      %v1086 = vadd.f32 0.0, %v1085
      %v1087 = vpop.f32.mrf.mxu0
      %v1088 = vadd.f32 0.0, %v1087
      %1089 = vmatmul.bf16.gmra.mxu0 %v1021
      %v1090 = vpop.f32.mrf.mxu0
      %v1091 = vadd.f32 0.0, %v1090
      %v1092 = vpop.f32.mrf.mxu0
      %v1093 = vadd.f32 0.0, %v1092
      %1094 = vmatmul.bf16.gmra.mxu0 %v1024
      %v1095 = vpop.f32.mrf.mxu0
      %v1096 = vadd.f32 0.0, %v1095
      %v1097 = vpop.f32.mrf.mxu0
      %1098 = vdwg.mxu0
      %v1099 = vmax.f32 %v873, %v1036
      %v1100 = vmax.f32 %v874, %v1038
      %v1101 = vmax.f32 %v875, %v1041
      %v1102 = vmax.f32 %v876, %v1043
      %v1103 = vmax.f32 %v877, %v1046
      %v1104 = vmax.f32 %v878, %v1048
      %v1105 = vmax.f32 %v879, %v1051
      %v1106 = vmax.f32 %v880, %v1053
      %v1107 = vmax.f32 %v881, %v1056
      %v1108 = vmax.f32 %v882, %v1058
      %v1109 = vmax.f32 %v883, %v1061
      %v1110 = vmax.f32 %v884, %v1063
      %v1111 = vmax.f32 %v885, %v1066
      %v1112 = vmax.f32 %v886, %v1068
      %v1113 = vmax.f32 %v887, %v1071
      %v1114 = vmax.f32 %v888, %v1073
      %v1115 = vmax.f32 %v889, %v1076
      %v1116 = vmax.f32 %v890, %v1078
      %v1117 = vmax.f32 %v891, %v1081
      %v1118 = vmax.f32 %v892, %v1083
      %v1119 = vmax.f32 %v893, %v1086
      %v1120 = vmax.f32 %v894, %v1088
      %v1121 = vmax.f32 %v895, %v1091
      %v1122 = vmax.f32 %v896, %v1093
      %v1123 = vmax.f32 %v897, %v1096
      %v1124 = vld [vmem:[%s2] sm:$0x1]
      %v1126 = vperm.slane %v1124, 0
      %v1128 = vmul.f32 %v1099, %v1126
      %v1129 = vmul.f32 %v1100, %v1126
      %v1130 = vmul.f32 %v1101, %v1126
      %v1131 = vmul.f32 %v1102, %v1126
      %v1132 = vmul.f32 %v1103, %v1126
      %v1133 = vmul.f32 %v1104, %v1126
      %v1134 = vmul.f32 %v1105, %v1126
      %v1135 = vmul.f32 %v1106, %v1126
      %v1136 = vmul.f32 %v1107, %v1126
      %v1137 = vmul.f32 %v1108, %v1126
      %v1138 = vmul.f32 %v1109, %v1126
      %v1139 = vmul.f32 %v1110, %v1126
      %v1140 = vmul.f32 %v1111, %v1126
      %v1141 = vmul.f32 %v1112, %v1126
      %v1142 = vmul.f32 %v1113, %v1126
      %v1143 = vmul.f32 %v1114, %v1126
      %v1144 = vmul.f32 %v1115, %v1126
      %v1145 = vmul.f32 %v1116, %v1126
      %v1146 = vmul.f32 %v1117, %v1126
      %v1147 = vmul.f32 %v1118, %v1126
      %v1148 = vmul.f32 %v1119, %v1126
      %v1149 = vmul.f32 %v1120, %v1126
      %v1150 = vmul.f32 %v1121, %v1126
      %v1151 = vmul.f32 %v1122, %v1126
      %v1152 = vmul.f32 %v1123, %v1126
      %v1153 = vld [vmem:[%s3] sm:$0x1]
      %v1155 = vperm.slane %v1153, 0
      %v1157 = vadd.f32 %v1128, %v1155
      %v1158 = vadd.f32 %v1129, %v1155
      %v1159 = vadd.f32 %v1130, %v1155
      %v1160 = vadd.f32 %v1131, %v1155
      %v1161 = vadd.f32 %v1132, %v1155
      %v1162 = vadd.f32 %v1133, %v1155
      %v1163 = vadd.f32 %v1134, %v1155
      %v1164 = vadd.f32 %v1135, %v1155
      %v1165 = vadd.f32 %v1136, %v1155
      %v1166 = vadd.f32 %v1137, %v1155
      %v1167 = vadd.f32 %v1138, %v1155
      %v1168 = vadd.f32 %v1139, %v1155
      %v1169 = vadd.f32 %v1140, %v1155
      %v1170 = vadd.f32 %v1141, %v1155
      %v1171 = vadd.f32 %v1142, %v1155
      %v1172 = vadd.f32 %v1143, %v1155
      %v1173 = vadd.f32 %v1144, %v1155
      %v1174 = vadd.f32 %v1145, %v1155
      %v1175 = vadd.f32 %v1146, %v1155
      %v1176 = vadd.f32 %v1147, %v1155
      %v1177 = vadd.f32 %v1148, %v1155
      %v1178 = vadd.f32 %v1149, %v1155
      %v1179 = vadd.f32 %v1150, %v1155
      %v1180 = vadd.f32 %v1151, %v1155
      %v1181 = vadd.f32 %v1152, %v1155
      %v1182 = vmax.f32 %v1157, 0.0
      %v1183 = vmax.f32 %v1158, 0.0
      %v1184 = vmax.f32 %v1159, 0.0
      %v1185 = vmax.f32 %v1160, 0.0
      %v1186 = vmax.f32 %v1161, 0.0
      %v1187 = vmax.f32 %v1162, 0.0
      %v1188 = vmax.f32 %v1163, 0.0
      %v1189 = vmax.f32 %v1164, 0.0
      %v1190 = vmax.f32 %v1165, 0.0
      %v1191 = vmax.f32 %v1166, 0.0
      %v1192 = vmax.f32 %v1167, 0.0
      %v1193 = vmax.f32 %v1168, 0.0
      %v1194 = vmax.f32 %v1169, 0.0
      %v1195 = vmax.f32 %v1170, 0.0
      %v1196 = vmax.f32 %v1171, 0.0
      %v1197 = vmax.f32 %v1172, 0.0
      %v1198 = vmax.f32 %v1173, 0.0
      %v1199 = vmax.f32 %v1174, 0.0
      %v1200 = vmax.f32 %v1175, 0.0
      %v1201 = vmax.f32 %v1176, 0.0
      %v1202 = vmax.f32 %v1177, 0.0
      %v1203 = vmax.f32 %v1178, 0.0
      %v1204 = vmax.f32 %v1179, 0.0
      %v1205 = vmax.f32 %v1180, 0.0
      %v1206 = vmax.f32 %v1181, 0.0
      %v1207 = vpack.c.bf16 %v1182, %v1182
      %v1208 = vpack.c.bf16 %v1183, %v1183
      %v1209 = vpack.c.bf16 %v1184, %v1184
      %v1210 = vpack.c.bf16 %v1185, %v1185
      %v1211 = vpack.c.bf16 %v1186, %v1186
      %v1212 = vpack.c.bf16 %v1187, %v1187
      %v1213 = vpack.c.bf16 %v1188, %v1188
      %v1214 = vpack.c.bf16 %v1189, %v1189
      %v1215 = vpack.c.bf16 %v1190, %v1190
      %v1216 = vpack.c.bf16 %v1191, %v1191
      %v1217 = vpack.c.bf16 %v1192, %v1192
      %v1218 = vpack.c.bf16 %v1193, %v1193
      %v1219 = vpack.c.bf16 %v1194, %v1194
      %v1220 = vpack.c.bf16 %v1195, %v1195
      %v1221 = vpack.c.bf16 %v1196, %v1196
      %v1222 = vpack.c.bf16 %v1197, %v1197
      %v1223 = vpack.c.bf16 %v1198, %v1198
      %v1224 = vpack.c.bf16 %v1199, %v1199
      %v1225 = vpack.c.bf16 %v1200, %v1200
      %v1226 = vpack.c.bf16 %v1201, %v1201
      %v1227 = vpack.c.bf16 %v1202, %v1202
      %v1228 = vpack.c.bf16 %v1203, %v1203
      %v1229 = vpack.c.bf16 %v1204, %v1204
      %v1230 = vpack.c.bf16 %v1205, %v1205
      %v1231 = vpack.c.bf16 %v1206, %v1206
      %vm1232 = vcmask 125952
      %1233 = vst.msk [vmem:[%s197] sm:$0xf] %vm1232, %v1207
      %1234 = vst.msk [vmem:[%s197 + $0x4] sm:$0xf] %vm1232, %v1208
      %1235 = vst.msk [vmem:[%s197 + $0x8] sm:$0xf] %vm1232, %v1209
      %1236 = vst.msk [vmem:[%s197 + $0xc] sm:$0xf] %vm1232, %v1210
      %1237 = vst.msk [vmem:[%s197 + $0x10] sm:$0xf] %vm1232, %v1211
      %1238 = vst.msk [vmem:[%s197 + $0x14] sm:$0xf] %vm1232, %v1212
      %1239 = vst.msk [vmem:[%s197 + $0x18] sm:$0xf] %vm1232, %v1213
      %1240 = vst.msk [vmem:[%s197 + $0x1c] sm:$0xf] %vm1232, %v1214
      %1241 = vst.msk [vmem:[%s197 + $0x20] sm:$0xf] %vm1232, %v1215
      %1242 = vst.msk [vmem:[%s197 + $0x24] sm:$0xf] %vm1232, %v1216
      %1243 = vst.msk [vmem:[%s197 + $0x28] sm:$0xf] %vm1232, %v1217
      %1244 = vst.msk [vmem:[%s197 + $0x2c] sm:$0xf] %vm1232, %v1218
      %1245 = vst.msk [vmem:[%s197 + $0x30] sm:$0xf] %vm1232, %v1219
      %1246 = vst.msk [vmem:[%s197 + $0x34] sm:$0xf] %vm1232, %v1220
      %1247 = vst.msk [vmem:[%s197 + $0x38] sm:$0xf] %vm1232, %v1221
      %1248 = vst.msk [vmem:[%s197 + $0x3c] sm:$0xf] %vm1232, %v1222
      %1249 = vst.msk [vmem:[%s197 + $0x40] sm:$0xf] %vm1232, %v1223
      %1250 = vst.msk [vmem:[%s197 + $0x44] sm:$0xf] %vm1232, %v1224
      %1251 = vst.msk [vmem:[%s197 + $0x48] sm:$0xf] %vm1232, %v1225
      %1252 = vst.msk [vmem:[%s197 + $0x4c] sm:$0xf] %vm1232, %v1226
      %1253 = vst.msk [vmem:[%s197 + $0x50] sm:$0xf] %vm1232, %v1227
      %1254 = vst.msk [vmem:[%s197 + $0x54] sm:$0xf] %vm1232, %v1228
      %1255 = vst.msk [vmem:[%s197 + $0x58] sm:$0xf] %vm1232, %v1229
      %1256 = vst.msk [vmem:[%s197 + $0x5c] sm:$0xf] %vm1232, %v1230
      %vm1257 = vcmask 123904
      %1258 = vst.msk [vmem:[%s197 + $0x60] sm:$0x3] %vm1257, %v1231
      %p1259 = scmp.lt.s32.totalorder %s15, 1
      %s1260 = scalar_select %p1259, %s15, 1
      %s1261 = smul.addr %s1260, 25
      %s1262 = smul.addr %s1261, 4
      %s1263 = scalar_lea.vmem %s4, %s1262
      // Predicated region
      $region37: #{net_forward.4} parent=35 // pred_check
        %p1264 = pneg %p122
      $region38: #{net_forward.4} parent=35 // pred_check_branch
        %1266 = sbr.rel (%p1264) target = $region40
      $region39: #{net_forward.4} parent=35 // pred_region
        _
      $region40: #{net_forward.4} parent=35 // pred_fallthru
        _
    $region36: #{net_forward.4} parent=5 // pred_fallthru
      _
    %p1267 = scmp.le.s32.totalorder 2, %s10
    // Predicated region
    $region41: #{net_forward.4} parent=5 // pred_check
      %p1268 = pneg %p1267
    $region42: #{net_forward.4} parent=5 // pred_check_branch
      %1270 = sbr.rel (%p1268) target = $region44
    $region43: #{net_forward.4} parent=5 // pred_region
      %s1271 = ssub.s32 %s10, 2
      // Predicated region
      $region45: #{net_forward.4} parent=43 // pred_check
        %p1272 = pneg %p128
      $region46: #{net_forward.4} parent=43 // pred_check_branch
        %1274 = sbr.rel (%p1272) target = $region48
      $region47: #{net_forward.4} parent=43 // pred_region
        %p1275 = scmp.lt.s32.totalorder %s16, 1
        %s1276 = scalar_select %p1275, %s16, 1
        %s1277 = smul.addr %s1276, 25
        %s1278 = smul.addr %s1277, 4
        %s1279 = scalar_lea.vmem %s4, %s1278
      $region48: #{net_forward.4} parent=43 // pred_fallthru
        _
    $region44: #{net_forward.4} parent=5 // pred_fallthru
      _
  $region6: #{net_forward.4} parent=0 // loop_footer
    %s14 = sadd.s32 1, %s10
  $region7: #{net_forward.4} parent=0 // loop_footer_branch
    %9 = sbr.rel target = $region3
  $region8: #{net_forward.4} parent=0 // loop_exit
    _

// kernel: net_forward.5
$region0: #{net_forward.5}
  #allocation0 [shape = 'u32[]', space=smem, size = 0x4, offset = 0x4, fixed_abs, tag = 'smem constant byte address 0x4 - core index']
  #allocation1 [shape = 'u32[72,128]{1,0:T(1,128)}', space=vmem, size = 0x9000, scoped, tag = 'internal scratch']
  %s0 = inlined_call_operand.vmem [shape: bf16[2,4,36,144], index: 0, kind: input, shape index: {}]
  %s1 = inlined_call_operand.vmem [shape: bf16[144,16], index: 1, kind: input, shape index: {}]
  %s2 = inlined_call_operand.vmem [shape: f32[1,16], index: 2, kind: input, shape index: {}]
  %s3 = inlined_call_operand.vmem [shape: f32[1,16], index: 3, kind: input, shape index: {}]
  %s4 = inlined_call_operand.vmem [shape: bf16[2,36,16], index: 4, kind: output, shape index: {}]
  %s5 = sld [smem:[#allocation0]]
  $region49: #{net_forward.5} parent=0
    _
  %s7 = ssub.s32 1, %s5
  %s8 = scalar_select 0, %s7, %s5
  loop: start=0, step=1, limit=4
  $region2: #{net_forward.5} parent=0 // loop_pre_header
    _
  $region3: #{net_forward.5} parent=0 // loop_header
    %s10 = sphi 0, %s14
    %p11 = scmp.ge.s32.totalorder %s10, 4
    %s20 = sphi 0, %s22
    %s23 = sphi 0, %s20
    %s24 = sphi 0, %s23
    %s40 = sphi 0, %s24
    %s44 = sphi 0, %s44
    %s46 = sphi 0, %s44
    %s47 = sphi 0, %s46
    %s61 = sphi 0, %s47
    %s65 = sphi 0, %s65
    %s67 = sphi 0, %s65
    %s68 = sphi 0, %s67
    %s82 = sphi 0, %s68
    %s86 = sphi 0, %s86
    %s88 = sphi 0, %s86
    %s89 = sphi 0, %s88
    %s103 = sphi 0, %s89
    %s109 = sphi 0, %s111
    %s112 = sphi 0, %s109
    %s113 = sphi 0, %s112
    %s129 = sphi 0, %s113
  $region4: #{net_forward.5} parent=0 // loop_header_branch
    %13 = sbr.rel (%p11) target = $region8
  $region5: #{net_forward.5} parent=0 // loop_body
    %s15 = ssub.s32 %s10, 1
    %s16 = ssub.s32 %s10, 2
    %s17 = sadd.s32 %s10, 1
    %s18 = ssub.s32 %s10, %s17
    %p19 = scmp.eq.s32.totalorder %s18, 0
    %s21 = sadd.s32 %s20, 1
    %s22 = scalar_select %p19, %s20, %s21
    %p25 = pneg %p19
    %p26 = scmp.eq.s32.totalorder %s10, 1
    %p27 = por %p25, %p26
    %p28 = scmp.ne.s32.totalorder %s20, %s23
    %p29 = scmp.eq.s32.totalorder %s10, 0
    %p30 = por %p28, %p29
    %p31 = scmp.ne.s32.totalorder %s20, %s23
    %p32 = scmp.eq.s32.totalorder %s15, 1
    %p33 = por %p31, %p32
    %p34 = scmp.ne.s32.totalorder %s23, %s24
    %p35 = scmp.eq.s32.totalorder %s15, 0
    %p36 = por %p34, %p35
    %p37 = scmp.ne.s32.totalorder %s23, %s24
    %p38 = scmp.eq.s32.totalorder %s16, 1
    %p39 = por %p37, %p38
    %p41 = scmp.ne.s32.totalorder %s24, %s40
    %p42 = scmp.eq.s32.totalorder %s16, 0
    %p43 = por %p41, %p42
    %s45 = sadd.s32 %s44, 1
    %p48 = scmp.eq.s32.totalorder %s10, 1
    %p49 = scmp.ne.s32.totalorder %s44, %s46
    %p50 = scmp.eq.s32.totalorder %s10, 0
    %p51 = por %p49, %p50
    %p52 = scmp.ne.s32.totalorder %s44, %s46
    %p53 = scmp.eq.s32.totalorder %s15, 1
    %p54 = por %p52, %p53
    %p55 = scmp.ne.s32.totalorder %s46, %s47
    %p56 = scmp.eq.s32.totalorder %s15, 0
    %p57 = por %p55, %p56
    %p58 = scmp.ne.s32.totalorder %s46, %s47
    %p59 = scmp.eq.s32.totalorder %s16, 1
    %p60 = por %p58, %p59
    %p62 = scmp.ne.s32.totalorder %s47, %s61
    %p63 = scmp.eq.s32.totalorder %s16, 0
    %p64 = por %p62, %p63
    %s66 = sadd.s32 %s65, 1
    %p69 = scmp.eq.s32.totalorder %s10, 1
    %p70 = scmp.ne.s32.totalorder %s65, %s67
    %p71 = scmp.eq.s32.totalorder %s10, 0
    %p72 = por %p70, %p71
    %p73 = scmp.ne.s32.totalorder %s65, %s67
    %p74 = scmp.eq.s32.totalorder %s15, 1
    %p75 = por %p73, %p74
    %p76 = scmp.ne.s32.totalorder %s67, %s68
    %p77 = scmp.eq.s32.totalorder %s15, 0
    %p78 = por %p76, %p77
    %p79 = scmp.ne.s32.totalorder %s67, %s68
    %p80 = scmp.eq.s32.totalorder %s16, 1
    %p81 = por %p79, %p80
    %p83 = scmp.ne.s32.totalorder %s68, %s82
    %p84 = scmp.eq.s32.totalorder %s16, 0
    %p85 = por %p83, %p84
    %s87 = sadd.s32 %s86, 1
    %p90 = scmp.eq.s32.totalorder %s10, 1
    %p91 = scmp.ne.s32.totalorder %s86, %s88
    %p92 = scmp.eq.s32.totalorder %s10, 0
    %p93 = por %p91, %p92
    %p94 = scmp.ne.s32.totalorder %s86, %s88
    %p95 = scmp.eq.s32.totalorder %s15, 1
    %p96 = por %p94, %p95
    %p97 = scmp.ne.s32.totalorder %s88, %s89
    %p98 = scmp.eq.s32.totalorder %s15, 0
    %p99 = por %p97, %p98
    %p100 = scmp.ne.s32.totalorder %s88, %s89
    %p101 = scmp.eq.s32.totalorder %s16, 1
    %p102 = por %p100, %p101
    %p104 = scmp.ne.s32.totalorder %s89, %s103
    %p105 = scmp.eq.s32.totalorder %s16, 0
    %p106 = por %p104, %p105
    %s107 = ssub.s32 %s10, %s17
    %p108 = scmp.eq.s32.totalorder %s107, 0
    %s110 = sadd.s32 %s109, 1
    %s111 = scalar_select %p108, %s109, %s110
    %p114 = pneg %p108
    %p115 = scmp.eq.s32.totalorder %s10, 1
    %p116 = por %p114, %p115
    %p117 = scmp.ne.s32.totalorder %s109, %s112
    %p118 = scmp.eq.s32.totalorder %s10, 0
    %p119 = por %p117, %p118
    %p120 = scmp.ne.s32.totalorder %s109, %s112
    %p121 = scmp.eq.s32.totalorder %s15, 1
    %p122 = por %p120, %p121
    %p123 = scmp.ne.s32.totalorder %s112, %s113
    %p124 = scmp.eq.s32.totalorder %s15, 0
    %p125 = por %p123, %p124
    %p126 = scmp.ne.s32.totalorder %s112, %s113
    %p127 = scmp.eq.s32.totalorder %s16, 1
    %p128 = por %p126, %p127
    %p130 = scmp.ne.s32.totalorder %s113, %s129
    %p131 = scmp.eq.s32.totalorder %s16, 0
    %p132 = por %p130, %p131
    %p133 = scmp.le.s32.totalorder 1, %s10
    %p134 = scmp.lt.s32.totalorder %s10, 3
    %p135 = pnand %p133, %p134
    %p136 = pneg %p135
    // Predicated region
    $region9: #{net_forward.5} parent=5 // pred_check
      _
    $region10: #{net_forward.5} parent=5 // pred_check_branch
      %138 = sbr.rel (%p135) target = $region12
    $region11: #{net_forward.5} parent=5 // pred_region
      %s139 = ssub.s32 %s10, 1
      // Predicated region
      $region13: #{net_forward.5} parent=11 // pred_check
        %p140 = pneg %p57
      $region14: #{net_forward.5} parent=11 // pred_check_branch
        %142 = sbr.rel (%p140) target = $region16
      $region15: #{net_forward.5} parent=11 // pred_region
        _
      $region16: #{net_forward.5} parent=11 // pred_fallthru
        _
      // Predicated region
      $region17: #{net_forward.5} parent=11 // pred_check
        %p143 = pneg %p78
      $region18: #{net_forward.5} parent=11 // pred_check_branch
        %145 = sbr.rel (%p143) target = $region20
      $region19: #{net_forward.5} parent=11 // pred_region
        _
      $region20: #{net_forward.5} parent=11 // pred_fallthru
        _
      // Predicated region
      $region21: #{net_forward.5} parent=11 // pred_check
        %p146 = pneg %p99
      $region22: #{net_forward.5} parent=11 // pred_check_branch
        %148 = sbr.rel (%p146) target = $region24
      $region23: #{net_forward.5} parent=11 // pred_region
        _
      $region24: #{net_forward.5} parent=11 // pred_fallthru
        _
    $region12: #{net_forward.5} parent=5 // pred_fallthru
      _
    %p149 = scmp.lt.s32.totalorder %s10, 2
    // Predicated region
    $region25: #{net_forward.5} parent=5 // pred_check
      %p150 = pneg %p149
    $region26: #{net_forward.5} parent=5 // pred_check_branch
      %152 = sbr.rel (%p150) target = $region28
    $region27: #{net_forward.5} parent=5 // pred_region
      // Predicated region
      $region29: #{net_forward.5} parent=27 // pred_check
        %p153 = pneg %p30
      $region30: #{net_forward.5} parent=27 // pred_check_branch
        %155 = sbr.rel (%p153) target = $region32
      $region31: #{net_forward.5} parent=27 // pred_region
        %p156 = scmp.lt.s32.totalorder %s10, 1
        %s157 = scalar_select %p156, %s10, 1
        %s158 = smul.addr %s157, 40
        %s159 = smul.addr %s158, 4
        %s160 = scalar_lea.vmem %s0, %s159
      $region32: #{net_forward.5} parent=27 // pred_fallthru
        _
    $region28: #{net_forward.5} parent=5 // pred_fallthru
      _
    %p161 = scmp.le.s32.totalorder 1, %s10
    %p162 = scmp.lt.s32.totalorder %s10, 3
    %p163 = pnand %p161, %p162
    %p164 = pneg %p163
    // Predicated region
    $region33: #{net_forward.5} parent=5 // pred_check
      _
    $region34: #{net_forward.5} parent=5 // pred_check_branch
      %166 = sbr.rel (%p163) target = $region36
    $region35: #{net_forward.5} parent=5 // pred_region
      %s167 = ssub.s32 %s10, 1
      %p168 = scmp.lt.s32.totalorder %s15, 1
      %s169 = scalar_select %p168, %s15, 1
      %s170 = smul.addr %s169, 40
      %s171 = smul.addr %s170, 4
      %s172 = scalar_lea.vmem %s0, %s171
      %p173 = pneg %p36
      %p174 = pneg %p33
      %p175 = pneg %p57
      %p176 = pneg %p54
      %p177 = pneg %p78
      %p178 = pneg %p75
      %p179 = pneg %p99
      %p180 = pneg %p96
      %p181 = pneg %p125
      %p182 = pneg %p122
      %p183 = scmp.lt.s32.totalorder %s15, 1
      %s184 = scalar_select %p183, %s15, 1
      %s185 = smul.addr %s184, 5
      %s186 = smul.addr %s185, 4
      %s187 = scalar_lea.vmem %s4, %s186
      %p188 = scmp.lt.s32.totalorder %s15, 1
      %s189 = scalar_select %p188, %s15, 1
      %s190 = smul.addr %s189, 40
      %s191 = smul.addr %s190, 4
      %s192 = scalar_lea.vmem %s0, %s191
      %p193 = scmp.lt.s32.totalorder %s15, 1
      %s194 = scalar_select %p193, %s15, 1
      %s195 = smul.addr %s194, 5
      %s196 = smul.addr %s195, 4
      %s197 = scalar_lea.vmem %s4, %s196
      %v199 = vld [vmem:[%s1] sm:$0xf]
      %v200 = vld [vmem:[%s1 + $0x4] sm:$0xf]
      %v201 = vld [vmem:[%s1 + $0x8] sm:$0xf]
      %v202 = vld [vmem:[%s1 + $0xc] sm:$0xf]
      %v203 = vld [vmem:[%s1 + $0x10] sm:$0xf]
      %v204 = vld [vmem:[%s1 + $0x14] sm:$0xf]
      %v205 = vld [vmem:[%s1 + $0x18] sm:$0xf]
      %v206 = vld [vmem:[%s1 + $0x1c] sm:$0xf]
      %v207 = vld [vmem:[%s1 + $0x20] sm:$0xf]
      %v208 = vld [vmem:[%s1 + $0x24] sm:$0xf]
      %v209 = vld [vmem:[%s1 + $0x28] sm:$0xf]
      %v210 = vld [vmem:[%s1 + $0x2c] sm:$0xf]
      %v211 = vld [vmem:[%s1 + $0x30] sm:$0xf]
      %v212 = vld [vmem:[%s1 + $0x34] sm:$0xf]
      %v213 = vld [vmem:[%s1 + $0x38] sm:$0xf]
      %v214 = vld [vmem:[%s1 + $0x3c] sm:$0xf]
      %v215 = vld [vmem:[%s1 + $0x40] sm:$0xf]
      %v216 = vld [vmem:[%s1 + $0x44] sm:$0xf]
      %v217 = vld [vmem:[%s192] sm:$0xff]
      %v218 = vld [vmem:[%s192 + $0x8] sm:$0xff]
      %v219 = vld [vmem:[%s192 + $0x10] sm:$0xff]
      %v220 = vld [vmem:[%s192 + $0x18] sm:$0xff]
      %v221 = vld [vmem:[%s192 + $0x20] sm:$0x33]
      %v227 = vunpack.c.l.b16 %v217
      %v228 = vunpack.c.h.b16 %v217
      %v229 = vunpack.c.l.b16 %v218
      %v230 = vunpack.c.h.b16 %v218
      %v231 = vunpack.c.l.b16 %v219
      %v232 = vunpack.c.h.b16 %v219
      %v233 = vunpack.c.l.b16 %v220
      %v234 = vunpack.c.h.b16 %v220
      %v235 = vunpack.c.l.b16 %v221
      %v236 = vunpack.c.h.b16 %v221
      %v237 = vpack.c.b16 %v229, %v227
      %v238 = vpack.c.b16 %v230, %v228
      %v239 = vpack.c.b16 %v233, %v231
      %v240 = vpack.c.b16 %v234, %v232
      %v241 = vpack.c.b16 %v235, %v235
      %v242 = vpack.c.b16 %v236, %v236
      %v264 = vunpack.c.l.b16 %v199
      %v265 = vunpack.c.l.b16 %v200
      %v266 = vunpack.c.l.b16 %v201
      %v267 = vunpack.c.l.b16 %v202
      %v268 = vunpack.c.l.b16 %v203
      %v269 = vunpack.c.l.b16 %v204
      %v270 = vunpack.c.l.b16 %v205
      %v271 = vunpack.c.l.b16 %v206
      %v272 = vunpack.c.l.b16 %v207
      %v273 = vunpack.c.l.b16 %v208
      %v274 = vunpack.c.l.b16 %v209
      %v275 = vunpack.c.l.b16 %v210
      %v276 = vunpack.c.l.b16 %v211
      %v277 = vunpack.c.l.b16 %v212
      %v278 = vunpack.c.l.b16 %v213
      %v279 = vunpack.c.l.b16 %v214
      %v280 = vunpack.c.l.b16 %v215
      %v281 = vunpack.c.l.b16 %v216
      %v282 = vpack.c.b16 %v265, %v264
      %v283 = vpack.c.b16 %v267, %v266
      %v284 = vpack.c.b16 %v269, %v268
      %v285 = vpack.c.b16 %v271, %v270
      %v286 = vpack.c.b16 %v273, %v272
      %v287 = vpack.c.b16 %v275, %v274
      %v288 = vpack.c.b16 %v277, %v276
      %v289 = vpack.c.b16 %v279, %v278
      %v290 = vpack.c.b16 %v281, %v280
      %vm300 = vcmask 130048
      %v302 = vsel %vm300, %v238, 0
      %v305 = vsel %vm300, %v240, 0
      %v308 = vsel %vm300, %v242, 0
      %310 = vmatpush.bf16.msra.mxu0 %v289
      %311 = vmatpush.bf16.msra.mxu0 %v288
      %312 = vmatpush.bf16.msra.mxu0 %v287
      %313 = vmatpush.bf16.msra.mxu0 %v286
      %314 = vmatpush.bf16.msra.mxu0 %v285
      %315 = vmatpush.bf16.msra.mxu0 %v284
      %316 = vmatpush.bf16.msra.mxu0 %v283
      %317 = vmatpush.bf16.msra.mxu0 %v282
      %318 = vmatmul.bf16.gmra.mxu0 %v237
      %v319 = vpop.f32.mrf.mxu0
      %v320 = vadd.f32 0.0, %v319
      %v321 = vpop.f32.mrf.mxu0
      %v322 = vadd.f32 0.0, %v321
      %323 = vmatmul.bf16.gmra.mxu0 %v239
      %v324 = vpop.f32.mrf.mxu0
      %v325 = vadd.f32 0.0, %v324
      %v326 = vpop.f32.mrf.mxu0
      %v327 = vadd.f32 0.0, %v326
      %328 = vmatmul.bf16.gmra.mxu0 %v241
      %v329 = vpop.f32.mrf.mxu0
      %v330 = vadd.f32 0.0, %v329
      %v331 = vpop.f32.mrf.mxu0
      %332 = vdwg.mxu0
      %333 = vmatpush.bf16.msra.mxu0 0
      %334 = vmatpush.bf16.msra.mxu0 0
      %335 = vmatpush.bf16.msra.mxu0 0
      %336 = vmatpush.bf16.msra.mxu0 0
      %337 = vmatpush.bf16.msra.mxu0 0
      %338 = vmatpush.bf16.msra.mxu0 0
      %339 = vmatpush.bf16.msra.mxu0 0
      %340 = vmatpush.bf16.msra.mxu0 %v290
      %341 = vmatmul.bf16.gmra.mxu0 %v302
      %v342 = vpop.f32.mrf.mxu0
      %v343 = vadd.f32 %v320, %v342
      %v344 = vpop.f32.mrf.mxu0
      %v345 = vadd.f32 %v322, %v344
      %346 = vmatmul.bf16.gmra.mxu0 %v305
      %v347 = vpop.f32.mrf.mxu0
      %v348 = vadd.f32 %v325, %v347
      %v349 = vpop.f32.mrf.mxu0
      %v350 = vadd.f32 %v327, %v349
      %351 = vmatmul.bf16.gmra.mxu0 %v308
      %v352 = vpop.f32.mrf.mxu0
      %v353 = vadd.f32 %v330, %v352
      %v354 = vpop.f32.mrf.mxu0
      %355 = vdwg.mxu0
      %s356 = scalar_lea.vmem %s192, 40
      %v357 = vld [vmem:[%s356] sm:$0xff]
      %v358 = vld [vmem:[%s356 + $0x8] sm:$0xff]
      %v359 = vld [vmem:[%s356 + $0x10] sm:$0xff]
      %v360 = vld [vmem:[%s356 + $0x18] sm:$0xff]
      %v361 = vld [vmem:[%s356 + $0x20] sm:$0x33]
      %v367 = vunpack.c.l.b16 %v357
      %v368 = vunpack.c.h.b16 %v357
      %v369 = vunpack.c.l.b16 %v358
      %v370 = vunpack.c.h.b16 %v358
      %v371 = vunpack.c.l.b16 %v359
      %v372 = vunpack.c.h.b16 %v359
      %v373 = vunpack.c.l.b16 %v360
      %v374 = vunpack.c.h.b16 %v360
      %v375 = vunpack.c.l.b16 %v361
      %v376 = vunpack.c.h.b16 %v361
      %v377 = vpack.c.b16 %v369, %v367
      %v378 = vpack.c.b16 %v370, %v368
      %v379 = vpack.c.b16 %v373, %v371
      %v380 = vpack.c.b16 %v374, %v372
      %v381 = vpack.c.b16 %v375, %v375
      %v382 = vpack.c.b16 %v376, %v376
      %v387 = vsel %vm300, %v378, 0
      %v390 = vsel %vm300, %v380, 0
      %v393 = vsel %vm300, %v382, 0
      %395 = vmatpush.bf16.msra.mxu0 %v289
      %396 = vmatpush.bf16.msra.mxu0 %v288
      %397 = vmatpush.bf16.msra.mxu0 %v287
      %398 = vmatpush.bf16.msra.mxu0 %v286
      %399 = vmatpush.bf16.msra.mxu0 %v285
      %400 = vmatpush.bf16.msra.mxu0 %v284
      %401 = vmatpush.bf16.msra.mxu0 %v283
      %402 = vmatpush.bf16.msra.mxu0 %v282
      %403 = vmatmul.bf16.gmra.mxu0 %v377
      %v404 = vpop.f32.mrf.mxu0
      %v405 = vadd.f32 0.0, %v404
      %v406 = vpop.f32.mrf.mxu0
      %v407 = vadd.f32 0.0, %v406
      %408 = vmatmul.bf16.gmra.mxu0 %v379
      %v409 = vpop.f32.mrf.mxu0
      %v410 = vadd.f32 0.0, %v409
      %v411 = vpop.f32.mrf.mxu0
      %v412 = vadd.f32 0.0, %v411
      %413 = vmatmul.bf16.gmra.mxu0 %v381
      %v414 = vpop.f32.mrf.mxu0
      %v415 = vadd.f32 0.0, %v414
      %v416 = vpop.f32.mrf.mxu0
      %417 = vdwg.mxu0
      %418 = vmatpush.bf16.msra.mxu0 0
      %419 = vmatpush.bf16.msra.mxu0 0
      %420 = vmatpush.bf16.msra.mxu0 0
      %421 = vmatpush.bf16.msra.mxu0 0
      %422 = vmatpush.bf16.msra.mxu0 0
      %423 = vmatpush.bf16.msra.mxu0 0
      %424 = vmatpush.bf16.msra.mxu0 0
      %425 = vmatpush.bf16.msra.mxu0 %v290
      %426 = vmatmul.bf16.gmra.mxu0 %v387
      %v427 = vpop.f32.mrf.mxu0
      %v428 = vadd.f32 %v405, %v427
      %v429 = vpop.f32.mrf.mxu0
      %v430 = vadd.f32 %v407, %v429
      %431 = vmatmul.bf16.gmra.mxu0 %v390
      %v432 = vpop.f32.mrf.mxu0
      %v433 = vadd.f32 %v410, %v432
      %v434 = vpop.f32.mrf.mxu0
      %v435 = vadd.f32 %v412, %v434
      %436 = vmatmul.bf16.gmra.mxu0 %v393
      %v437 = vpop.f32.mrf.mxu0
      %v438 = vadd.f32 %v415, %v437
      %v439 = vpop.f32.mrf.mxu0
      %440 = vdwg.mxu0
      %v441 = vmax.f32 %v343, %v428
      %v442 = vmax.f32 %v345, %v430
      %v443 = vmax.f32 %v348, %v433
      %v444 = vmax.f32 %v350, %v435
      %v445 = vmax.f32 %v353, %v438
      %s446 = scalar_lea.vmem %s192, 80
      %v447 = vld [vmem:[%s446] sm:$0xff]
      %v448 = vld [vmem:[%s446 + $0x8] sm:$0xff]
      %v449 = vld [vmem:[%s446 + $0x10] sm:$0xff]
      %v450 = vld [vmem:[%s446 + $0x18] sm:$0xff]
      %v451 = vld [vmem:[%s446 + $0x20] sm:$0x33]
      %v457 = vunpack.c.l.b16 %v447
      %v458 = vunpack.c.h.b16 %v447
      %v459 = vunpack.c.l.b16 %v448
      %v460 = vunpack.c.h.b16 %v448
      %v461 = vunpack.c.l.b16 %v449
      %v462 = vunpack.c.h.b16 %v449
      %v463 = vunpack.c.l.b16 %v450
      %v464 = vunpack.c.h.b16 %v450
      %v465 = vunpack.c.l.b16 %v451
      %v466 = vunpack.c.h.b16 %v451
      %v467 = vpack.c.b16 %v459, %v457
      %v468 = vpack.c.b16 %v460, %v458
      %v469 = vpack.c.b16 %v463, %v461
      %v470 = vpack.c.b16 %v464, %v462
      %v471 = vpack.c.b16 %v465, %v465
      %v472 = vpack.c.b16 %v466, %v466
      %v477 = vsel %vm300, %v468, 0
      %v480 = vsel %vm300, %v470, 0
      %v483 = vsel %vm300, %v472, 0
      %485 = vmatpush.bf16.msra.mxu0 %v289
      %486 = vmatpush.bf16.msra.mxu0 %v288
      %487 = vmatpush.bf16.msra.mxu0 %v287
      %488 = vmatpush.bf16.msra.mxu0 %v286
      %489 = vmatpush.bf16.msra.mxu0 %v285
      %490 = vmatpush.bf16.msra.mxu0 %v284
      %491 = vmatpush.bf16.msra.mxu0 %v283
      %492 = vmatpush.bf16.msra.mxu0 %v282
      %493 = vmatmul.bf16.gmra.mxu0 %v467
      %v494 = vpop.f32.mrf.mxu0
      %v495 = vadd.f32 0.0, %v494
      %v496 = vpop.f32.mrf.mxu0
      %v497 = vadd.f32 0.0, %v496
      %498 = vmatmul.bf16.gmra.mxu0 %v469
      %v499 = vpop.f32.mrf.mxu0
      %v500 = vadd.f32 0.0, %v499
      %v501 = vpop.f32.mrf.mxu0
      %v502 = vadd.f32 0.0, %v501
      %503 = vmatmul.bf16.gmra.mxu0 %v471
      %v504 = vpop.f32.mrf.mxu0
      %v505 = vadd.f32 0.0, %v504
      %v506 = vpop.f32.mrf.mxu0
      %507 = vdwg.mxu0
      %508 = vmatpush.bf16.msra.mxu0 0
      %509 = vmatpush.bf16.msra.mxu0 0
      %510 = vmatpush.bf16.msra.mxu0 0
      %511 = vmatpush.bf16.msra.mxu0 0
      %512 = vmatpush.bf16.msra.mxu0 0
      %513 = vmatpush.bf16.msra.mxu0 0
      %514 = vmatpush.bf16.msra.mxu0 0
      %515 = vmatpush.bf16.msra.mxu0 %v290
      %516 = vmatmul.bf16.gmra.mxu0 %v477
      %v517 = vpop.f32.mrf.mxu0
      %v518 = vadd.f32 %v495, %v517
      %v519 = vpop.f32.mrf.mxu0
      %v520 = vadd.f32 %v497, %v519
      %521 = vmatmul.bf16.gmra.mxu0 %v480
      %v522 = vpop.f32.mrf.mxu0
      %v523 = vadd.f32 %v500, %v522
      %v524 = vpop.f32.mrf.mxu0
      %v525 = vadd.f32 %v502, %v524
      %526 = vmatmul.bf16.gmra.mxu0 %v483
      %v527 = vpop.f32.mrf.mxu0
      %v528 = vadd.f32 %v505, %v527
      %v529 = vpop.f32.mrf.mxu0
      %530 = vdwg.mxu0
      %v531 = vmax.f32 %v441, %v518
      %v532 = vmax.f32 %v442, %v520
      %v533 = vmax.f32 %v443, %v523
      %v534 = vmax.f32 %v444, %v525
      %v535 = vmax.f32 %v445, %v528
      %s536 = scalar_lea.vmem %s192, 120
      %v537 = vld [vmem:[%s536] sm:$0xff]
      %v538 = vld [vmem:[%s536 + $0x8] sm:$0xff]
      %v539 = vld [vmem:[%s536 + $0x10] sm:$0xff]
      %v540 = vld [vmem:[%s536 + $0x18] sm:$0xff]
      %v541 = vld [vmem:[%s536 + $0x20] sm:$0x33]
      %v547 = vunpack.c.l.b16 %v537
      %v548 = vunpack.c.h.b16 %v537
      %v549 = vunpack.c.l.b16 %v538
      %v550 = vunpack.c.h.b16 %v538
      %v551 = vunpack.c.l.b16 %v539
      %v552 = vunpack.c.h.b16 %v539
      %v553 = vunpack.c.l.b16 %v540
      %v554 = vunpack.c.h.b16 %v540
      %v555 = vunpack.c.l.b16 %v541
      %v556 = vunpack.c.h.b16 %v541
      %v557 = vpack.c.b16 %v549, %v547
      %v558 = vpack.c.b16 %v550, %v548
      %v559 = vpack.c.b16 %v553, %v551
      %v560 = vpack.c.b16 %v554, %v552
      %v561 = vpack.c.b16 %v555, %v555
      %v562 = vpack.c.b16 %v556, %v556
      %v567 = vsel %vm300, %v558, 0
      %v570 = vsel %vm300, %v560, 0
      %v573 = vsel %vm300, %v562, 0
      %575 = vmatpush.bf16.msra.mxu0 %v289
      %576 = vmatpush.bf16.msra.mxu0 %v288
      %577 = vmatpush.bf16.msra.mxu0 %v287
      %578 = vmatpush.bf16.msra.mxu0 %v286
      %579 = vmatpush.bf16.msra.mxu0 %v285
      %580 = vmatpush.bf16.msra.mxu0 %v284
      %581 = vmatpush.bf16.msra.mxu0 %v283
      %582 = vmatpush.bf16.msra.mxu0 %v282
      %583 = vmatmul.bf16.gmra.mxu0 %v557
      %v584 = vpop.f32.mrf.mxu0
      %v585 = vadd.f32 0.0, %v584
      %v586 = vpop.f32.mrf.mxu0
      %v587 = vadd.f32 0.0, %v586
      %588 = vmatmul.bf16.gmra.mxu0 %v559
      %v589 = vpop.f32.mrf.mxu0
      %v590 = vadd.f32 0.0, %v589
      %v591 = vpop.f32.mrf.mxu0
      %v592 = vadd.f32 0.0, %v591
      %593 = vmatmul.bf16.gmra.mxu0 %v561
      %v594 = vpop.f32.mrf.mxu0
      %v595 = vadd.f32 0.0, %v594
      %v596 = vpop.f32.mrf.mxu0
      %597 = vdwg.mxu0
      %598 = vmatpush.bf16.msra.mxu0 0
      %599 = vmatpush.bf16.msra.mxu0 0
      %600 = vmatpush.bf16.msra.mxu0 0
      %601 = vmatpush.bf16.msra.mxu0 0
      %602 = vmatpush.bf16.msra.mxu0 0
      %603 = vmatpush.bf16.msra.mxu0 0
      %604 = vmatpush.bf16.msra.mxu0 0
      %605 = vmatpush.bf16.msra.mxu0 %v290
      %606 = vmatmul.bf16.gmra.mxu0 %v567
      %v607 = vpop.f32.mrf.mxu0
      %v608 = vadd.f32 %v585, %v607
      %v609 = vpop.f32.mrf.mxu0
      %v610 = vadd.f32 %v587, %v609
      %611 = vmatmul.bf16.gmra.mxu0 %v570
      %v612 = vpop.f32.mrf.mxu0
      %v613 = vadd.f32 %v590, %v612
      %v614 = vpop.f32.mrf.mxu0
      %v615 = vadd.f32 %v592, %v614
      %616 = vmatmul.bf16.gmra.mxu0 %v573
      %v617 = vpop.f32.mrf.mxu0
      %v618 = vadd.f32 %v595, %v617
      %v619 = vpop.f32.mrf.mxu0
      %620 = vdwg.mxu0
      %v621 = vmax.f32 %v531, %v608
      %v622 = vmax.f32 %v532, %v610
      %v623 = vmax.f32 %v533, %v613
      %v624 = vmax.f32 %v534, %v615
      %v625 = vmax.f32 %v535, %v618
      %v626 = vld [vmem:[%s2] sm:$0x1]
      %v628 = vperm.slane %v626, 0
      %v630 = vmul.f32 %v621, %v628
      %v631 = vmul.f32 %v622, %v628
      %v632 = vmul.f32 %v623, %v628
      %v633 = vmul.f32 %v624, %v628
      %v634 = vmul.f32 %v625, %v628
      %v635 = vld [vmem:[%s3] sm:$0x1]
      %v637 = vperm.slane %v635, 0
      %v639 = vadd.f32 %v630, %v637
      %v640 = vadd.f32 %v631, %v637
      %v641 = vadd.f32 %v632, %v637
      %v642 = vadd.f32 %v633, %v637
      %v643 = vadd.f32 %v634, %v637
      %v644 = vmax.f32 %v639, 0.0
      %v645 = vmax.f32 %v640, 0.0
      %v646 = vmax.f32 %v641, 0.0
      %v647 = vmax.f32 %v642, 0.0
      %v648 = vmax.f32 %v643, 0.0
      %v649 = vpack.c.bf16 %v644, %v644
      %v650 = vpack.c.bf16 %v645, %v645
      %v651 = vpack.c.bf16 %v646, %v646
      %v652 = vpack.c.bf16 %v647, %v647
      %v653 = vpack.c.bf16 %v648, %v648
      %vm654 = vcmask 125952
      %655 = vst.msk [vmem:[%s197] sm:$0xf] %vm654, %v649
      %656 = vst.msk [vmem:[%s197 + $0x4] sm:$0xf] %vm654, %v650
      %657 = vst.msk [vmem:[%s197 + $0x8] sm:$0xf] %vm654, %v651
      %658 = vst.msk [vmem:[%s197 + $0xc] sm:$0xf] %vm654, %v652
      %vm659 = vcmask 123904
      %660 = vst.msk [vmem:[%s197 + $0x10] sm:$0x3] %vm659, %v653
      %p661 = scmp.lt.s32.totalorder %s15, 1
      %s662 = scalar_select %p661, %s15, 1
      %s663 = smul.addr %s662, 5
      %s664 = smul.addr %s663, 4
      %s665 = scalar_lea.vmem %s4, %s664
      // Predicated region
      $region37: #{net_forward.5} parent=35 // pred_check
        %p666 = pneg %p122
      $region38: #{net_forward.5} parent=35 // pred_check_branch
        %668 = sbr.rel (%p666) target = $region40
      $region39: #{net_forward.5} parent=35 // pred_region
        _
      $region40: #{net_forward.5} parent=35 // pred_fallthru
        _
    $region36: #{net_forward.5} parent=5 // pred_fallthru
      _
    %p669 = scmp.le.s32.totalorder 2, %s10
    // Predicated region
    $region41: #{net_forward.5} parent=5 // pred_check
      %p670 = pneg %p669
    $region42: #{net_forward.5} parent=5 // pred_check_branch
      %672 = sbr.rel (%p670) target = $region44
    $region43: #{net_forward.5} parent=5 // pred_region
      %s673 = ssub.s32 %s10, 2
      // Predicated region
      $region45: #{net_forward.5} parent=43 // pred_check
        %p674 = pneg %p128
      $region46: #{net_forward.5} parent=43 // pred_check_branch
        %676 = sbr.rel (%p674) target = $region48
      $region47: #{net_forward.5} parent=43 // pred_region
        %p677 = scmp.lt.s32.totalorder %s16, 1
        %s678 = scalar_select %p677, %s16, 1
        %s679 = smul.addr %s678, 5
        %s680 = smul.addr %s679, 4
        %s681 = scalar_lea.vmem %s4, %s680
      $region48: #{net_forward.5} parent=43 // pred_fallthru
        _
    $region44: #{net_forward.5} parent=5 // pred_fallthru
      _
  $region6: #{net_forward.5} parent=0 // loop_footer
    %s14 = sadd.s32 1, %s10
  $region7: #{net_forward.5} parent=0 // loop_footer_branch
    %9 = sbr.rel target = $region3
  $region8: #{net_forward.5} parent=0 // loop_exit
    _

// kernel: net_forward.6
$region0: #{net_forward.6}
  #allocation0 [shape = 'u32[]', space=smem, size = 0x4, offset = 0x4, fixed_abs, tag = 'smem constant byte address 0x4 - core index']
  #allocation1 [shape = 'u32[72,128]{1,0:T(1,128)}', space=vmem, size = 0x9000, scoped, tag = 'internal scratch']
  %s0 = inlined_call_operand.vmem [shape: bf16[2,16,144], index: 0, kind: input, shape index: {}]
  %s1 = inlined_call_operand.vmem [shape: bf16[144,16], index: 1, kind: input, shape index: {}]
  %s2 = inlined_call_operand.vmem [shape: f32[1,16], index: 2, kind: input, shape index: {}]
  %s3 = inlined_call_operand.vmem [shape: bf16[2,16,16], index: 3, kind: output, shape index: {}]
  %s4 = sld [smem:[#allocation0]]
  $region45: #{net_forward.6} parent=0
    _
  %s6 = ssub.s32 1, %s4
  %s7 = scalar_select 0, %s6, %s4
  loop: start=0, step=1, limit=4
  $region2: #{net_forward.6} parent=0 // loop_pre_header
    _
  $region3: #{net_forward.6} parent=0 // loop_header
    %s9 = sphi 0, %s13
    %p10 = scmp.ge.s32.totalorder %s9, 4
    %s19 = sphi 0, %s21
    %s22 = sphi 0, %s19
    %s23 = sphi 0, %s22
    %s39 = sphi 0, %s23
    %s43 = sphi 0, %s43
    %s45 = sphi 0, %s43
    %s46 = sphi 0, %s45
    %s60 = sphi 0, %s46
    %s64 = sphi 0, %s64
    %s66 = sphi 0, %s64
    %s67 = sphi 0, %s66
    %s81 = sphi 0, %s67
    %s87 = sphi 0, %s89
    %s90 = sphi 0, %s87
    %s91 = sphi 0, %s90
    %s107 = sphi 0, %s91
  $region4: #{net_forward.6} parent=0 // loop_header_branch
    %12 = sbr.rel (%p10) target = $region8
  $region5: #{net_forward.6} parent=0 // loop_body
    %s14 = ssub.s32 %s9, 1
    %s15 = ssub.s32 %s9, 2
    %s16 = sadd.s32 %s9, 1
    %s17 = ssub.s32 %s9, %s16
    %p18 = scmp.eq.s32.totalorder %s17, 0
    %s20 = sadd.s32 %s19, 1
    %s21 = scalar_select %p18, %s19, %s20
    %p24 = pneg %p18
    %p25 = scmp.eq.s32.totalorder %s9, 1
    %p26 = por %p24, %p25
    %p27 = scmp.ne.s32.totalorder %s19, %s22
    %p28 = scmp.eq.s32.totalorder %s9, 0
    %p29 = por %p27, %p28
    %p30 = scmp.ne.s32.totalorder %s19, %s22
    %p31 = scmp.eq.s32.totalorder %s14, 1
    %p32 = por %p30, %p31
    %p33 = scmp.ne.s32.totalorder %s22, %s23
    %p34 = scmp.eq.s32.totalorder %s14, 0
    %p35 = por %p33, %p34
    %p36 = scmp.ne.s32.totalorder %s22, %s23
    %p37 = scmp.eq.s32.totalorder %s15, 1
    %p38 = por %p36, %p37
    %p40 = scmp.ne.s32.totalorder %s23, %s39
    %p41 = scmp.eq.s32.totalorder %s15, 0
    %p42 = por %p40, %p41
    %s44 = sadd.s32 %s43, 1
    %p47 = scmp.eq.s32.totalorder %s9, 1
    %p48 = scmp.ne.s32.totalorder %s43, %s45
    %p49 = scmp.eq.s32.totalorder %s9, 0
    %p50 = por %p48, %p49
    %p51 = scmp.ne.s32.totalorder %s43, %s45
    %p52 = scmp.eq.s32.totalorder %s14, 1
    %p53 = por %p51, %p52
    %p54 = scmp.ne.s32.totalorder %s45, %s46
    %p55 = scmp.eq.s32.totalorder %s14, 0
    %p56 = por %p54, %p55
    %p57 = scmp.ne.s32.totalorder %s45, %s46
    %p58 = scmp.eq.s32.totalorder %s15, 1
    %p59 = por %p57, %p58
    %p61 = scmp.ne.s32.totalorder %s46, %s60
    %p62 = scmp.eq.s32.totalorder %s15, 0
    %p63 = por %p61, %p62
    %s65 = sadd.s32 %s64, 1
    %p68 = scmp.eq.s32.totalorder %s9, 1
    %p69 = scmp.ne.s32.totalorder %s64, %s66
    %p70 = scmp.eq.s32.totalorder %s9, 0
    %p71 = por %p69, %p70
    %p72 = scmp.ne.s32.totalorder %s64, %s66
    %p73 = scmp.eq.s32.totalorder %s14, 1
    %p74 = por %p72, %p73
    %p75 = scmp.ne.s32.totalorder %s66, %s67
    %p76 = scmp.eq.s32.totalorder %s14, 0
    %p77 = por %p75, %p76
    %p78 = scmp.ne.s32.totalorder %s66, %s67
    %p79 = scmp.eq.s32.totalorder %s15, 1
    %p80 = por %p78, %p79
    %p82 = scmp.ne.s32.totalorder %s67, %s81
    %p83 = scmp.eq.s32.totalorder %s15, 0
    %p84 = por %p82, %p83
    %s85 = ssub.s32 %s9, %s16
    %p86 = scmp.eq.s32.totalorder %s85, 0
    %s88 = sadd.s32 %s87, 1
    %s89 = scalar_select %p86, %s87, %s88
    %p92 = pneg %p86
    %p93 = scmp.eq.s32.totalorder %s9, 1
    %p94 = por %p92, %p93
    %p95 = scmp.ne.s32.totalorder %s87, %s90
    %p96 = scmp.eq.s32.totalorder %s9, 0
    %p97 = por %p95, %p96
    %p98 = scmp.ne.s32.totalorder %s87, %s90
    %p99 = scmp.eq.s32.totalorder %s14, 1
    %p100 = por %p98, %p99
    %p101 = scmp.ne.s32.totalorder %s90, %s91
    %p102 = scmp.eq.s32.totalorder %s14, 0
    %p103 = por %p101, %p102
    %p104 = scmp.ne.s32.totalorder %s90, %s91
    %p105 = scmp.eq.s32.totalorder %s15, 1
    %p106 = por %p104, %p105
    %p108 = scmp.ne.s32.totalorder %s91, %s107
    %p109 = scmp.eq.s32.totalorder %s15, 0
    %p110 = por %p108, %p109
    %p111 = scmp.le.s32.totalorder 1, %s9
    %p112 = scmp.lt.s32.totalorder %s9, 3
    %p113 = pnand %p111, %p112
    %p114 = pneg %p113
    // Predicated region
    $region9: #{net_forward.6} parent=5 // pred_check
      _
    $region10: #{net_forward.6} parent=5 // pred_check_branch
      %116 = sbr.rel (%p113) target = $region12
    $region11: #{net_forward.6} parent=5 // pred_region
      %s117 = ssub.s32 %s9, 1
      // Predicated region
      $region13: #{net_forward.6} parent=11 // pred_check
        %p118 = pneg %p56
      $region14: #{net_forward.6} parent=11 // pred_check_branch
        %120 = sbr.rel (%p118) target = $region16
      $region15: #{net_forward.6} parent=11 // pred_region
        _
      $region16: #{net_forward.6} parent=11 // pred_fallthru
        _
      // Predicated region
      $region17: #{net_forward.6} parent=11 // pred_check
        %p121 = pneg %p77
      $region18: #{net_forward.6} parent=11 // pred_check_branch
        %123 = sbr.rel (%p121) target = $region20
      $region19: #{net_forward.6} parent=11 // pred_region
        _
      $region20: #{net_forward.6} parent=11 // pred_fallthru
        _
    $region12: #{net_forward.6} parent=5 // pred_fallthru
      _
    %p124 = scmp.lt.s32.totalorder %s9, 2
    // Predicated region
    $region21: #{net_forward.6} parent=5 // pred_check
      %p125 = pneg %p124
    $region22: #{net_forward.6} parent=5 // pred_check_branch
      %127 = sbr.rel (%p125) target = $region24
    $region23: #{net_forward.6} parent=5 // pred_region
      // Predicated region
      $region25: #{net_forward.6} parent=23 // pred_check
        %p128 = pneg %p29
      $region26: #{net_forward.6} parent=23 // pred_check_branch
        %130 = sbr.rel (%p128) target = $region28
      $region27: #{net_forward.6} parent=23 // pred_region
        %p131 = scmp.lt.s32.totalorder %s9, 1
        %s132 = scalar_select %p131, %s9, 1
        %s133 = smul.addr %s132, 4
        %s134 = smul.addr %s133, 4
        %s135 = scalar_lea.vmem %s0, %s134
      $region28: #{net_forward.6} parent=23 // pred_fallthru
        _
    $region24: #{net_forward.6} parent=5 // pred_fallthru
      _
    %p136 = scmp.le.s32.totalorder 1, %s9
    %p137 = scmp.lt.s32.totalorder %s9, 3
    %p138 = pnand %p136, %p137
    %p139 = pneg %p138
    // Predicated region
    $region29: #{net_forward.6} parent=5 // pred_check
      _
    $region30: #{net_forward.6} parent=5 // pred_check_branch
      %141 = sbr.rel (%p138) target = $region32
    $region31: #{net_forward.6} parent=5 // pred_region
      %s142 = ssub.s32 %s9, 1
      %p143 = scmp.lt.s32.totalorder %s14, 1
      %s144 = scalar_select %p143, %s14, 1
      %s145 = smul.addr %s144, 4
      %s146 = smul.addr %s145, 4
      %s147 = scalar_lea.vmem %s0, %s146
      %p148 = pneg %p35
      %p149 = pneg %p32
      %p150 = pneg %p56
      %p151 = pneg %p53
      %p152 = pneg %p77
      %p153 = pneg %p74
      %p154 = pneg %p103
      %p155 = pneg %p100
      %p156 = scmp.lt.s32.totalorder %s14, 1
      %s157 = scalar_select %p156, %s14, 1
      %s158 = smul.addr %s157, 2
      %s159 = smul.addr %s158, 4
      %s160 = scalar_lea.vmem %s3, %s159
      %p161 = scmp.lt.s32.totalorder %s14, 1
      %s162 = scalar_select %p161, %s14, 1
      %s163 = smul.addr %s162, 4
      %s164 = smul.addr %s163, 4
      %s165 = scalar_lea.vmem %s0, %s164
      %p166 = scmp.lt.s32.totalorder %s14, 1
      %s167 = scalar_select %p166, %s14, 1
      %s168 = smul.addr %s167, 2
      %s169 = smul.addr %s168, 4
      %s170 = scalar_lea.vmem %s3, %s169
      %v172 = vld [vmem:[%s165] sm:$0xff]
      %v173 = vld [vmem:[%s165 + $0x8] sm:$0xff]
      %v174 = vld [vmem:[%s1] sm:$0xf]
      %v175 = vld [vmem:[%s1 + $0x4] sm:$0xf]
      %v176 = vld [vmem:[%s1 + $0x8] sm:$0xf]
      %v177 = vld [vmem:[%s1 + $0xc] sm:$0xf]
      %v178 = vld [vmem:[%s1 + $0x10] sm:$0xf]
      %v179 = vld [vmem:[%s1 + $0x14] sm:$0xf]
      %v180 = vld [vmem:[%s1 + $0x18] sm:$0xf]
      %v181 = vld [vmem:[%s1 + $0x1c] sm:$0xf]
      %v182 = vld [vmem:[%s1 + $0x20] sm:$0xf]
      %v183 = vld [vmem:[%s1 + $0x24] sm:$0xf]
      %v184 = vld [vmem:[%s1 + $0x28] sm:$0xf]
      %v185 = vld [vmem:[%s1 + $0x2c] sm:$0xf]
      %v186 = vld [vmem:[%s1 + $0x30] sm:$0xf]
      %v187 = vld [vmem:[%s1 + $0x34] sm:$0xf]
      %v188 = vld [vmem:[%s1 + $0x38] sm:$0xf]
      %v189 = vld [vmem:[%s1 + $0x3c] sm:$0xf]
      %v190 = vld [vmem:[%s1 + $0x40] sm:$0xf]
      %v191 = vld [vmem:[%s1 + $0x44] sm:$0xf]
      %v192 = vld [vmem:[%s2] sm:$0x1]
      %v194 = vperm.slane %v192, 0
      %v198 = vunpack.c.l.b16 %v172
      %v199 = vunpack.c.h.b16 %v172
      %v200 = vunpack.c.l.b16 %v173
      %v201 = vunpack.c.h.b16 %v173
      %v202 = vpack.c.b16 %v200, %v198
      %v203 = vpack.c.b16 %v201, %v199
      %v223 = vunpack.c.l.b16 %v174
      %v224 = vunpack.c.l.b16 %v175
      %v225 = vunpack.c.l.b16 %v176
      %v226 = vunpack.c.l.b16 %v177
      %v227 = vunpack.c.l.b16 %v178
      %v228 = vunpack.c.l.b16 %v179
      %v229 = vunpack.c.l.b16 %v180
      %v230 = vunpack.c.l.b16 %v181
      %v231 = vunpack.c.l.b16 %v182
      %v232 = vunpack.c.l.b16 %v183
      %v233 = vunpack.c.l.b16 %v184
      %v234 = vunpack.c.l.b16 %v185
      %v235 = vunpack.c.l.b16 %v186
      %v236 = vunpack.c.l.b16 %v187
      %v237 = vunpack.c.l.b16 %v188
      %v238 = vunpack.c.l.b16 %v189
      %v239 = vunpack.c.l.b16 %v190
      %v240 = vunpack.c.l.b16 %v191
      %v241 = vpack.c.b16 %v224, %v223
      %v242 = vpack.c.b16 %v226, %v225
      %v243 = vpack.c.b16 %v228, %v227
      %v244 = vpack.c.b16 %v230, %v229
      %v245 = vpack.c.b16 %v232, %v231
      %v246 = vpack.c.b16 %v234, %v233
      %v247 = vpack.c.b16 %v236, %v235
      %v248 = vpack.c.b16 %v238, %v237
      %v249 = vpack.c.b16 %v240, %v239
      %vm259 = vcmask 130048
      %v261 = vsel %vm259, %v203, 0
      %263 = vmatpush.bf16.msra.mxu0 %v248
      %264 = vmatpush.bf16.msra.mxu0 %v247
      %265 = vmatpush.bf16.msra.mxu0 %v246
      %266 = vmatpush.bf16.msra.mxu0 %v245
      %267 = vmatpush.bf16.msra.mxu0 %v244
      %268 = vmatpush.bf16.msra.mxu0 %v243
      %269 = vmatpush.bf16.msra.mxu0 %v242
      %270 = vmatpush.bf16.msra.mxu0 %v241
      %271 = vmatmul.bf16.gmra.mxu0 %v202
      %v272 = vpop.f32.mrf.mxu0
      %v273 = vadd.f32 %v194, %v272
      %v274 = vpop.f32.mrf.mxu0
      %v275 = vadd.f32 %v194, %v274
      %276 = vdwg.mxu0
      %277 = vmatpush.bf16.msra.mxu0 0
      %278 = vmatpush.bf16.msra.mxu0 0
      %279 = vmatpush.bf16.msra.mxu0 0
      %280 = vmatpush.bf16.msra.mxu0 0
      %281 = vmatpush.bf16.msra.mxu0 0
      %282 = vmatpush.bf16.msra.mxu0 0
      %283 = vmatpush.bf16.msra.mxu0 0
      %284 = vmatpush.bf16.msra.mxu0 %v249
      %285 = vmatmul.bf16.gmra.mxu0 %v261
      %v286 = vpop.f32.mrf.mxu0
      %v287 = vadd.f32 %v273, %v286
      %v288 = vpop.f32.mrf.mxu0
      %v289 = vadd.f32 %v275, %v288
      %290 = vdwg.mxu0
      %v291 = vmax.f32 %v287, 0.0
      %v292 = vmax.f32 %v289, 0.0
      %v293 = vpack.c.bf16 %v291, %v291
      %v294 = vpack.c.bf16 %v292, %v292
      %vm295 = vcmask 125952
      %296 = vst.msk [vmem:[%s170] sm:$0xf] %vm295, %v293
      %297 = vst.msk [vmem:[%s170 + $0x4] sm:$0xf] %vm295, %v294
      %p298 = scmp.lt.s32.totalorder %s14, 1
      %s299 = scalar_select %p298, %s14, 1
      %s300 = smul.addr %s299, 2
      %s301 = smul.addr %s300, 4
      %s302 = scalar_lea.vmem %s3, %s301
      // Predicated region
      $region33: #{net_forward.6} parent=31 // pred_check
        %p303 = pneg %p100
      $region34: #{net_forward.6} parent=31 // pred_check_branch
        %305 = sbr.rel (%p303) target = $region36
      $region35: #{net_forward.6} parent=31 // pred_region
        _
      $region36: #{net_forward.6} parent=31 // pred_fallthru
        _
    $region32: #{net_forward.6} parent=5 // pred_fallthru
      _
    %p306 = scmp.le.s32.totalorder 2, %s9
    // Predicated region
    $region37: #{net_forward.6} parent=5 // pred_check
      %p307 = pneg %p306
    $region38: #{net_forward.6} parent=5 // pred_check_branch
      %309 = sbr.rel (%p307) target = $region40
    $region39: #{net_forward.6} parent=5 // pred_region
      %s310 = ssub.s32 %s9, 2
      // Predicated region
      $region41: #{net_forward.6} parent=39 // pred_check
        %p311 = pneg %p106
      $region42: #{net_forward.6} parent=39 // pred_check_branch
        %313 = sbr.rel (%p311) target = $region44
      $region43: #{net_forward.6} parent=39 // pred_region
        %p314 = scmp.lt.s32.totalorder %s15, 1
        %s315 = scalar_select %p314, %s15, 1
        %s316 = smul.addr %s315, 2
        %s317 = smul.addr %s316, 4
        %s318 = scalar_lea.vmem %s3, %s317
      $region44: #{net_forward.6} parent=39 // pred_fallthru
        _
    $region40: #{net_forward.6} parent=5 // pred_fallthru
      _
  $region6: #{net_forward.6} parent=0 // loop_footer
    %s13 = sadd.s32 1, %s9
  $region7: #{net_forward.6} parent=0 // loop_footer_branch
    %8 = sbr.rel target = $region3
  $region8: #{net_forward.6} parent=0 // loop_exit
    _

// kernel: net_forward.7
$region0: #{net_forward.7}
  #allocation0 [shape = 'u32[]', space=smem, size = 0x4, offset = 0x4, fixed_abs, tag = 'smem constant byte address 0x4 - core index']
  #allocation1 [shape = 'u32[72,128]{1,0:T(1,128)}', space=vmem, size = 0x9000, scoped, tag = 'internal scratch']
  %s0 = inlined_call_operand.vmem [shape: bf16[2,4,1,144], index: 0, kind: input, shape index: {}]
  %s1 = inlined_call_operand.vmem [shape: bf16[144,32], index: 1, kind: input, shape index: {}]
  %s2 = inlined_call_operand.vmem [shape: f32[1,32], index: 2, kind: input, shape index: {}]
  %s3 = inlined_call_operand.vmem [shape: f32[1,32], index: 3, kind: input, shape index: {}]
  %s4 = inlined_call_operand.vmem [shape: bf16[32,48], index: 4, kind: input, shape index: {}]
  %s5 = inlined_call_operand.vmem [shape: f32[1,48], index: 5, kind: input, shape index: {}]
  %s6 = inlined_call_operand.vmem [shape: bf16[48,10], index: 6, kind: input, shape index: {}]
  %s7 = inlined_call_operand.vmem [shape: f32[1,10], index: 7, kind: input, shape index: {}]
  %s8 = inlined_call_operand.hbm [shape: f32[2,1,10], index: 8, kind: output, shape index: {}]
  %s9 = sld [smem:[#allocation0]]
  $region65: #{net_forward.7} parent=0
    _
  %s11 = ssub.s32 1, %s9
  %s12 = scalar_select 0, %s11, %s9
  $region1: #{net_forward.7} parent=0
    #allocation2 [shape = 'u8[1024]{0}', space=vmem, size = 0x400, scoped, tag = 'output window, operand 0']
    #allocation3 [shape = 's32[2]{0}', space=sflag, size = 0x8, scoped, tag = 'scoped memory for net_forward.7']
    %13 = vsyncpa [#allocation3], 0
    %s14 = scalar_lea.sflag [#allocation3], 1
    %15 = vsyncpa %s14, 0
    loop: start=0, step=1, limit=4
    $region2: #{net_forward.7} parent=1 // loop_pre_header
      _
    $region3: #{net_forward.7} parent=1 // loop_header
      %s17 = sphi 0, %s21
      %p18 = scmp.ge.s32.totalorder %s17, 4
      %s27 = sphi 0, %s29
      %s30 = sphi 0, %s27
      %s31 = sphi 0, %s30
      %s47 = sphi 0, %s31
      %s51 = sphi 0, %s51
      %s53 = sphi 0, %s51
      %s54 = sphi 0, %s53
      %s68 = sphi 0, %s54
      %s72 = sphi 0, %s72
      %s74 = sphi 0, %s72
      %s75 = sphi 0, %s74
      %s89 = sphi 0, %s75
      %s93 = sphi 0, %s93
      %s95 = sphi 0, %s93
      %s96 = sphi 0, %s95
      %s110 = sphi 0, %s96
      %s114 = sphi 0, %s114
      %s116 = sphi 0, %s114
      %s117 = sphi 0, %s116
      %s131 = sphi 0, %s117
      %s135 = sphi 0, %s135
      %s137 = sphi 0, %s135
      %s138 = sphi 0, %s137
      %s152 = sphi 0, %s138
      %s156 = sphi 0, %s156
      %s158 = sphi 0, %s156
      %s159 = sphi 0, %s158
      %s173 = sphi 0, %s159
      %s177 = sphi 0, %s177
      %s179 = sphi 0, %s177
      %s180 = sphi 0, %s179
      %s194 = sphi 0, %s180
      %s200 = sphi 0, %s202
      %s203 = sphi 0, %s200
      %s204 = sphi 0, %s203
      %s220 = sphi 0, %s204
    $region4: #{net_forward.7} parent=1 // loop_header_branch
      %20 = sbr.rel (%p18) target = $region8
    $region5: #{net_forward.7} parent=1 // loop_body
      %s22 = ssub.s32 %s17, 1
      %s23 = ssub.s32 %s17, 2
      %s24 = sadd.s32 %s17, 1
      %s25 = ssub.s32 %s17, %s24
      %p26 = scmp.eq.s32.totalorder %s25, 0
      %s28 = sadd.s32 %s27, 1
      %s29 = scalar_select %p26, %s27, %s28
      %p32 = pneg %p26
      %p33 = scmp.eq.s32.totalorder %s17, 1
      %p34 = por %p32, %p33
      %p35 = scmp.ne.s32.totalorder %s27, %s30
      %p36 = scmp.eq.s32.totalorder %s17, 0
      %p37 = por %p35, %p36
      %p38 = scmp.ne.s32.totalorder %s27, %s30
      %p39 = scmp.eq.s32.totalorder %s22, 1
      %p40 = por %p38, %p39
      %p41 = scmp.ne.s32.totalorder %s30, %s31
      %p42 = scmp.eq.s32.totalorder %s22, 0
      %p43 = por %p41, %p42
      %p44 = scmp.ne.s32.totalorder %s30, %s31
      %p45 = scmp.eq.s32.totalorder %s23, 1
      %p46 = por %p44, %p45
      %p48 = scmp.ne.s32.totalorder %s31, %s47
      %p49 = scmp.eq.s32.totalorder %s23, 0
      %p50 = por %p48, %p49
      %s52 = sadd.s32 %s51, 1
      %p55 = scmp.eq.s32.totalorder %s17, 1
      %p56 = scmp.ne.s32.totalorder %s51, %s53
      %p57 = scmp.eq.s32.totalorder %s17, 0
      %p58 = por %p56, %p57
      %p59 = scmp.ne.s32.totalorder %s51, %s53
      %p60 = scmp.eq.s32.totalorder %s22, 1
      %p61 = por %p59, %p60
      %p62 = scmp.ne.s32.totalorder %s53, %s54
      %p63 = scmp.eq.s32.totalorder %s22, 0
      %p64 = por %p62, %p63
      %p65 = scmp.ne.s32.totalorder %s53, %s54
      %p66 = scmp.eq.s32.totalorder %s23, 1
      %p67 = por %p65, %p66
      %p69 = scmp.ne.s32.totalorder %s54, %s68
      %p70 = scmp.eq.s32.totalorder %s23, 0
      %p71 = por %p69, %p70
      %s73 = sadd.s32 %s72, 1
      %p76 = scmp.eq.s32.totalorder %s17, 1
      %p77 = scmp.ne.s32.totalorder %s72, %s74
      %p78 = scmp.eq.s32.totalorder %s17, 0
      %p79 = por %p77, %p78
      %p80 = scmp.ne.s32.totalorder %s72, %s74
      %p81 = scmp.eq.s32.totalorder %s22, 1
      %p82 = por %p80, %p81
      %p83 = scmp.ne.s32.totalorder %s74, %s75
      %p84 = scmp.eq.s32.totalorder %s22, 0
      %p85 = por %p83, %p84
      %p86 = scmp.ne.s32.totalorder %s74, %s75
      %p87 = scmp.eq.s32.totalorder %s23, 1
      %p88 = por %p86, %p87
      %p90 = scmp.ne.s32.totalorder %s75, %s89
      %p91 = scmp.eq.s32.totalorder %s23, 0
      %p92 = por %p90, %p91
      %s94 = sadd.s32 %s93, 1
      %p97 = scmp.eq.s32.totalorder %s17, 1
      %p98 = scmp.ne.s32.totalorder %s93, %s95
      %p99 = scmp.eq.s32.totalorder %s17, 0
      %p100 = por %p98, %p99
      %p101 = scmp.ne.s32.totalorder %s93, %s95
      %p102 = scmp.eq.s32.totalorder %s22, 1
      %p103 = por %p101, %p102
      %p104 = scmp.ne.s32.totalorder %s95, %s96
      %p105 = scmp.eq.s32.totalorder %s22, 0
      %p106 = por %p104, %p105
      %p107 = scmp.ne.s32.totalorder %s95, %s96
      %p108 = scmp.eq.s32.totalorder %s23, 1
      %p109 = por %p107, %p108
      %p111 = scmp.ne.s32.totalorder %s96, %s110
      %p112 = scmp.eq.s32.totalorder %s23, 0
      %p113 = por %p111, %p112
      %s115 = sadd.s32 %s114, 1
      %p118 = scmp.eq.s32.totalorder %s17, 1
      %p119 = scmp.ne.s32.totalorder %s114, %s116
      %p120 = scmp.eq.s32.totalorder %s17, 0
      %p121 = por %p119, %p120
      %p122 = scmp.ne.s32.totalorder %s114, %s116
      %p123 = scmp.eq.s32.totalorder %s22, 1
      %p124 = por %p122, %p123
      %p125 = scmp.ne.s32.totalorder %s116, %s117
      %p126 = scmp.eq.s32.totalorder %s22, 0
      %p127 = por %p125, %p126
      %p128 = scmp.ne.s32.totalorder %s116, %s117
      %p129 = scmp.eq.s32.totalorder %s23, 1
      %p130 = por %p128, %p129
      %p132 = scmp.ne.s32.totalorder %s117, %s131
      %p133 = scmp.eq.s32.totalorder %s23, 0
      %p134 = por %p132, %p133
      %s136 = sadd.s32 %s135, 1
      %p139 = scmp.eq.s32.totalorder %s17, 1
      %p140 = scmp.ne.s32.totalorder %s135, %s137
      %p141 = scmp.eq.s32.totalorder %s17, 0
      %p142 = por %p140, %p141
      %p143 = scmp.ne.s32.totalorder %s135, %s137
      %p144 = scmp.eq.s32.totalorder %s22, 1
      %p145 = por %p143, %p144
      %p146 = scmp.ne.s32.totalorder %s137, %s138
      %p147 = scmp.eq.s32.totalorder %s22, 0
      %p148 = por %p146, %p147
      %p149 = scmp.ne.s32.totalorder %s137, %s138
      %p150 = scmp.eq.s32.totalorder %s23, 1
      %p151 = por %p149, %p150
      %p153 = scmp.ne.s32.totalorder %s138, %s152
      %p154 = scmp.eq.s32.totalorder %s23, 0
      %p155 = por %p153, %p154
      %s157 = sadd.s32 %s156, 1
      %p160 = scmp.eq.s32.totalorder %s17, 1
      %p161 = scmp.ne.s32.totalorder %s156, %s158
      %p162 = scmp.eq.s32.totalorder %s17, 0
      %p163 = por %p161, %p162
      %p164 = scmp.ne.s32.totalorder %s156, %s158
      %p165 = scmp.eq.s32.totalorder %s22, 1
      %p166 = por %p164, %p165
      %p167 = scmp.ne.s32.totalorder %s158, %s159
      %p168 = scmp.eq.s32.totalorder %s22, 0
      %p169 = por %p167, %p168
      %p170 = scmp.ne.s32.totalorder %s158, %s159
      %p171 = scmp.eq.s32.totalorder %s23, 1
      %p172 = por %p170, %p171
      %p174 = scmp.ne.s32.totalorder %s159, %s173
      %p175 = scmp.eq.s32.totalorder %s23, 0
      %p176 = por %p174, %p175
      %s178 = sadd.s32 %s177, 1
      %p181 = scmp.eq.s32.totalorder %s17, 1
      %p182 = scmp.ne.s32.totalorder %s177, %s179
      %p183 = scmp.eq.s32.totalorder %s17, 0
      %p184 = por %p182, %p183
      %p185 = scmp.ne.s32.totalorder %s177, %s179
      %p186 = scmp.eq.s32.totalorder %s22, 1
      %p187 = por %p185, %p186
      %p188 = scmp.ne.s32.totalorder %s179, %s180
      %p189 = scmp.eq.s32.totalorder %s22, 0
      %p190 = por %p188, %p189
      %p191 = scmp.ne.s32.totalorder %s179, %s180
      %p192 = scmp.eq.s32.totalorder %s23, 1
      %p193 = por %p191, %p192
      %p195 = scmp.ne.s32.totalorder %s180, %s194
      %p196 = scmp.eq.s32.totalorder %s23, 0
      %p197 = por %p195, %p196
      %s198 = ssub.s32 %s17, %s24
      %p199 = scmp.eq.s32.totalorder %s198, 0
      %s201 = sadd.s32 %s200, 1
      %s202 = scalar_select %p199, %s200, %s201
      %p205 = pneg %p199
      %p206 = scmp.eq.s32.totalorder %s17, 1
      %p207 = por %p205, %p206
      %p208 = scmp.ne.s32.totalorder %s200, %s203
      %p209 = scmp.eq.s32.totalorder %s17, 0
      %p210 = por %p208, %p209
      %p211 = scmp.ne.s32.totalorder %s200, %s203
      %p212 = scmp.eq.s32.totalorder %s22, 1
      %p213 = por %p211, %p212
      %p214 = scmp.ne.s32.totalorder %s203, %s204
      %p215 = scmp.eq.s32.totalorder %s22, 0
      %p216 = por %p214, %p215
      %p217 = scmp.ne.s32.totalorder %s203, %s204
      %p218 = scmp.eq.s32.totalorder %s23, 1
      %p219 = por %p217, %p218
      %p221 = scmp.ne.s32.totalorder %s204, %s220
      %p222 = scmp.eq.s32.totalorder %s23, 0
      %p223 = por %p221, %p222
      %p224 = scmp.le.s32.totalorder 1, %s17
      %p225 = scmp.lt.s32.totalorder %s17, 3
      %p226 = pnand %p224, %p225
      %p227 = pneg %p226
      // Predicated region
      $region9: #{net_forward.7} parent=5 // pred_check
        _
      $region10: #{net_forward.7} parent=5 // pred_check_branch
        %229 = sbr.rel (%p226) target = $region12
      $region11: #{net_forward.7} parent=5 // pred_region
        %s230 = ssub.s32 %s17, 1
        // Predicated region
        $region13: #{net_forward.7} parent=11 // pred_check
          %p231 = pneg %p64
        $region14: #{net_forward.7} parent=11 // pred_check_branch
          %233 = sbr.rel (%p231) target = $region16
        $region15: #{net_forward.7} parent=11 // pred_region
          _
        $region16: #{net_forward.7} parent=11 // pred_fallthru
          _
        // Predicated region
        $region17: #{net_forward.7} parent=11 // pred_check
          %p234 = pneg %p85
        $region18: #{net_forward.7} parent=11 // pred_check_branch
          %236 = sbr.rel (%p234) target = $region20
        $region19: #{net_forward.7} parent=11 // pred_region
          _
        $region20: #{net_forward.7} parent=11 // pred_fallthru
          _
        // Predicated region
        $region21: #{net_forward.7} parent=11 // pred_check
          %p237 = pneg %p106
        $region22: #{net_forward.7} parent=11 // pred_check_branch
          %239 = sbr.rel (%p237) target = $region24
        $region23: #{net_forward.7} parent=11 // pred_region
          _
        $region24: #{net_forward.7} parent=11 // pred_fallthru
          _
        // Predicated region
        $region25: #{net_forward.7} parent=11 // pred_check
          %p240 = pneg %p127
        $region26: #{net_forward.7} parent=11 // pred_check_branch
          %242 = sbr.rel (%p240) target = $region28
        $region27: #{net_forward.7} parent=11 // pred_region
          _
        $region28: #{net_forward.7} parent=11 // pred_fallthru
          _
        // Predicated region
        $region29: #{net_forward.7} parent=11 // pred_check
          %p243 = pneg %p148
        $region30: #{net_forward.7} parent=11 // pred_check_branch
          %245 = sbr.rel (%p243) target = $region32
        $region31: #{net_forward.7} parent=11 // pred_region
          _
        $region32: #{net_forward.7} parent=11 // pred_fallthru
          _
        // Predicated region
        $region33: #{net_forward.7} parent=11 // pred_check
          %p246 = pneg %p169
        $region34: #{net_forward.7} parent=11 // pred_check_branch
          %248 = sbr.rel (%p246) target = $region36
        $region35: #{net_forward.7} parent=11 // pred_region
          _
        $region36: #{net_forward.7} parent=11 // pred_fallthru
          _
        // Predicated region
        $region37: #{net_forward.7} parent=11 // pred_check
          %p249 = pneg %p190
        $region38: #{net_forward.7} parent=11 // pred_check_branch
          %251 = sbr.rel (%p249) target = $region40
        $region39: #{net_forward.7} parent=11 // pred_region
          _
        $region40: #{net_forward.7} parent=11 // pred_fallthru
          _
      $region12: #{net_forward.7} parent=5 // pred_fallthru
        _
      %p252 = scmp.lt.s32.totalorder %s17, 2
      // Predicated region
      $region41: #{net_forward.7} parent=5 // pred_check
        %p253 = pneg %p252
      $region42: #{net_forward.7} parent=5 // pred_check_branch
        %255 = sbr.rel (%p253) target = $region44
      $region43: #{net_forward.7} parent=5 // pred_region
        // Predicated region
        $region45: #{net_forward.7} parent=43 // pred_check
          %p256 = pneg %p37
        $region46: #{net_forward.7} parent=43 // pred_check_branch
          %258 = sbr.rel (%p256) target = $region48
        $region47: #{net_forward.7} parent=43 // pred_region
          %p259 = scmp.lt.s32.totalorder %s17, 1
          %s260 = scalar_select %p259, %s17, 1
          %s261 = smul.addr %s260, 8
          %s262 = scalar_lea.vmem %s0, %s261
        $region48: #{net_forward.7} parent=43 // pred_fallthru
          _
      $region44: #{net_forward.7} parent=5 // pred_fallthru
        _
      %p263 = scmp.le.s32.totalorder 1, %s17
      %p264 = scmp.lt.s32.totalorder %s17, 3
      %p265 = pnand %p263, %p264
      %p266 = pneg %p265
      // Predicated region
      $region49: #{net_forward.7} parent=5 // pred_check
        _
      $region50: #{net_forward.7} parent=5 // pred_check_branch
        %268 = sbr.rel (%p265) target = $region52
      $region51: #{net_forward.7} parent=5 // pred_region
        %s269 = ssub.s32 %s17, 1
        %p270 = scmp.lt.s32.totalorder %s22, 1
        %s271 = scalar_select %p270, %s22, 1
        %s272 = smul.addr %s271, 8
        %s273 = scalar_lea.vmem %s0, %s272
        %p274 = pneg %p43
        %p275 = pneg %p40
        %p276 = pneg %p64
        %p277 = pneg %p61
        %p278 = pneg %p85
        %p279 = pneg %p82
        %p280 = pneg %p106
        %p281 = pneg %p103
        %p282 = pneg %p127
        %p283 = pneg %p124
        %p284 = pneg %p148
        %p285 = pneg %p145
        %p286 = pneg %p169
        %p287 = pneg %p166
        %p288 = pneg %p190
        %p289 = pneg %p187
        %p290 = pneg %p216
        %p291 = pneg %p213
        %s292 = sand.u32 %s203, 1
        %s293 = scalar_lea.sflag [#allocation3], %s292
        %s294 = sand.u32 %s203, 1
        %s295 = scalar_lea.vmem [#allocation2], %s294
        %p296 = scmp.lt.s32.totalorder %s22, 1
        %s297 = scalar_select %p296, %s22, 1
        %s298 = smul.addr %s297, 8
        %s299 = scalar_lea.vmem %s0, %s298
        %v301 = vld [vmem:[%s1] sm:$0xf]
        %v302 = vld [vmem:[%s1 + $0x4] sm:$0xf]
        %v303 = vld [vmem:[%s1 + $0x8] sm:$0xf]
        %v304 = vld [vmem:[%s1 + $0xc] sm:$0xf]
        %v305 = vld [vmem:[%s1 + $0x10] sm:$0xf]
        %v306 = vld [vmem:[%s1 + $0x14] sm:$0xf]
        %v307 = vld [vmem:[%s1 + $0x18] sm:$0xf]
        %v308 = vld [vmem:[%s1 + $0x1c] sm:$0xf]
        %v309 = vld [vmem:[%s1 + $0x20] sm:$0xf]
        %v310 = vld [vmem:[%s1 + $0x24] sm:$0xf]
        %v311 = vld [vmem:[%s1 + $0x28] sm:$0xf]
        %v312 = vld [vmem:[%s1 + $0x2c] sm:$0xf]
        %v313 = vld [vmem:[%s1 + $0x30] sm:$0xf]
        %v314 = vld [vmem:[%s1 + $0x34] sm:$0xf]
        %v315 = vld [vmem:[%s1 + $0x38] sm:$0xf]
        %v316 = vld [vmem:[%s1 + $0x3c] sm:$0xf]
        %v317 = vld [vmem:[%s1 + $0x40] sm:$0xf]
        %v318 = vld [vmem:[%s1 + $0x44] sm:$0xf]
        %v319 = vld [vmem:[%s299] sm:$0x3]
        %321 = vst [vmem:[#allocation1] ss:$9 sm:$0xff] %v319
        %v322 = vld [vmem:[#allocation1] sm:$0xff]
        %v323 = vld [vmem:[#allocation1 + $0x9] sm:$0xff]
        %v343 = vunpack.c.l.b16 %v301
        %v344 = vunpack.c.l.b16 %v302
        %v345 = vunpack.c.l.b16 %v303
        %v346 = vunpack.c.l.b16 %v304
        %v347 = vunpack.c.l.b16 %v305
        %v348 = vunpack.c.l.b16 %v306
        %v349 = vunpack.c.l.b16 %v307
        %v350 = vunpack.c.l.b16 %v308
        %v351 = vunpack.c.l.b16 %v309
        %v352 = vunpack.c.l.b16 %v310
        %v353 = vunpack.c.l.b16 %v311
        %v354 = vunpack.c.l.b16 %v312
        %v355 = vunpack.c.l.b16 %v313
        %v356 = vunpack.c.l.b16 %v314
        %v357 = vunpack.c.l.b16 %v315
        %v358 = vunpack.c.l.b16 %v316
        %v359 = vunpack.c.l.b16 %v317
        %v360 = vunpack.c.l.b16 %v318
        %v361 = vpack.c.b16 %v344, %v343
        %v362 = vpack.c.b16 %v346, %v345
        %v363 = vpack.c.b16 %v348, %v347
        %v364 = vpack.c.b16 %v350, %v349
        %v365 = vpack.c.b16 %v352, %v351
        %v366 = vpack.c.b16 %v354, %v353
        %v367 = vpack.c.b16 %v356, %v355
        %v368 = vpack.c.b16 %v358, %v357
        %v369 = vpack.c.b16 %v360, %v359
        %vm379 = vcmask 130048
        %v380 = vsel %vm379, %v323, 0
        %382 = vmatpush.bf16.msra.mxu0 %v368
        %383 = vmatpush.bf16.msra.mxu0 %v367
        %384 = vmatpush.bf16.msra.mxu0 %v366
        %385 = vmatpush.bf16.msra.mxu0 %v365
        %386 = vmatpush.bf16.msra.mxu0 %v364
        %387 = vmatpush.bf16.msra.mxu0 %v363
        %388 = vmatpush.bf16.msra.mxu0 %v362
        %389 = vmatpush.bf16.msra.mxu0 %v361
        %390 = vmatmul.bf16.gmra.mxu0 %v322
        %v391 = vpop.f32.mrf.mxu0
        %v392 = vadd.f32 0.0, %v391
        %v393 = vpop.f32.mrf.mxu0
        %394 = vdwg.mxu0
        %395 = vmatpush.bf16.msra.mxu0 0
        %396 = vmatpush.bf16.msra.mxu0 0
        %397 = vmatpush.bf16.msra.mxu0 0
        %398 = vmatpush.bf16.msra.mxu0 0
        %399 = vmatpush.bf16.msra.mxu0 0
        %400 = vmatpush.bf16.msra.mxu0 0
        %401 = vmatpush.bf16.msra.mxu0 0
        %402 = vmatpush.bf16.msra.mxu0 %v369
        %403 = vmatmul.bf16.gmra.mxu0 %v380
        %v404 = vpop.f32.mrf.mxu0
        %v405 = vadd.f32 %v392, %v404
        %v406 = vpop.f32.mrf.mxu0
        %407 = vdwg.mxu0
        %s408 = scalar_lea.vmem %s299, 2
        %v409 = vld [vmem:[%s408] sm:$0x3]
        %411 = vst [vmem:[#allocation1] ss:$9 sm:$0xff] %v409
        %v412 = vld [vmem:[#allocation1] sm:$0xff]
        %v413 = vld [vmem:[#allocation1 + $0x9] sm:$0xff]
        %v415 = vsel %vm379, %v413, 0
        %417 = vmatpush.bf16.msra.mxu0 %v368
        %418 = vmatpush.bf16.msra.mxu0 %v367
        %419 = vmatpush.bf16.msra.mxu0 %v366
        %420 = vmatpush.bf16.msra.mxu0 %v365
        %421 = vmatpush.bf16.msra.mxu0 %v364
        %422 = vmatpush.bf16.msra.mxu0 %v363
        %423 = vmatpush.bf16.msra.mxu0 %v362
        %424 = vmatpush.bf16.msra.mxu0 %v361
        %425 = vmatmul.bf16.gmra.mxu0 %v412
        %v426 = vpop.f32.mrf.mxu0
        %v427 = vadd.f32 0.0, %v426
        %v428 = vpop.f32.mrf.mxu0
        %429 = vdwg.mxu0
        %430 = vmatpush.bf16.msra.mxu0 0
        %431 = vmatpush.bf16.msra.mxu0 0
        %432 = vmatpush.bf16.msra.mxu0 0
        %433 = vmatpush.bf16.msra.mxu0 0
        %434 = vmatpush.bf16.msra.mxu0 0
        %435 = vmatpush.bf16.msra.mxu0 0
        %436 = vmatpush.bf16.msra.mxu0 0
        %437 = vmatpush.bf16.msra.mxu0 %v369
        %438 = vmatmul.bf16.gmra.mxu0 %v415
        %v439 = vpop.f32.mrf.mxu0
        %v440 = vadd.f32 %v427, %v439
        %v441 = vpop.f32.mrf.mxu0
        %442 = vdwg.mxu0
        %v443 = vmax.f32 %v405, %v440
        %s444 = scalar_lea.vmem %s299, 4
        %v445 = vld [vmem:[%s444] sm:$0x3]
        %447 = vst [vmem:[#allocation1] ss:$9 sm:$0xff] %v445
        %v448 = vld [vmem:[#allocation1] sm:$0xff]
        %v449 = vld [vmem:[#allocation1 + $0x9] sm:$0xff]
        %v451 = vsel %vm379, %v449, 0
        %453 = vmatpush.bf16.msra.mxu0 %v368
        %454 = vmatpush.bf16.msra.mxu0 %v367
        %455 = vmatpush.bf16.msra.mxu0 %v366
        %456 = vmatpush.bf16.msra.mxu0 %v365
        %457 = vmatpush.bf16.msra.mxu0 %v364
        %458 = vmatpush.bf16.msra.mxu0 %v363
        %459 = vmatpush.bf16.msra.mxu0 %v362
        %460 = vmatpush.bf16.msra.mxu0 %v361
        %461 = vmatmul.bf16.gmra.mxu0 %v448
        %v462 = vpop.f32.mrf.mxu0
        %v463 = vadd.f32 0.0, %v462
        %v464 = vpop.f32.mrf.mxu0
        %465 = vdwg.mxu0
        %466 = vmatpush.bf16.msra.mxu0 0
        %467 = vmatpush.bf16.msra.mxu0 0
        %468 = vmatpush.bf16.msra.mxu0 0
        %469 = vmatpush.bf16.msra.mxu0 0
        %470 = vmatpush.bf16.msra.mxu0 0
        %471 = vmatpush.bf16.msra.mxu0 0
        %472 = vmatpush.bf16.msra.mxu0 0
        %473 = vmatpush.bf16.msra.mxu0 %v369
        %474 = vmatmul.bf16.gmra.mxu0 %v451
        %v475 = vpop.f32.mrf.mxu0
        %v476 = vadd.f32 %v463, %v475
        %v477 = vpop.f32.mrf.mxu0
        %478 = vdwg.mxu0
        %v479 = vmax.f32 %v443, %v476
        %s480 = scalar_lea.vmem %s299, 6
        %v481 = vld [vmem:[%s480] sm:$0x3]
        %483 = vst [vmem:[#allocation1] ss:$9 sm:$0xff] %v481
        %v484 = vld [vmem:[#allocation1] sm:$0xff]
        %v485 = vld [vmem:[#allocation1 + $0x9] sm:$0xff]
        %v487 = vsel %vm379, %v485, 0
        %489 = vmatpush.bf16.msra.mxu0 %v368
        %490 = vmatpush.bf16.msra.mxu0 %v367
        %491 = vmatpush.bf16.msra.mxu0 %v366
        %492 = vmatpush.bf16.msra.mxu0 %v365
        %493 = vmatpush.bf16.msra.mxu0 %v364
        %494 = vmatpush.bf16.msra.mxu0 %v363
        %495 = vmatpush.bf16.msra.mxu0 %v362
        %496 = vmatpush.bf16.msra.mxu0 %v361
        %497 = vmatmul.bf16.gmra.mxu0 %v484
        %v498 = vpop.f32.mrf.mxu0
        %v499 = vadd.f32 0.0, %v498
        %v500 = vpop.f32.mrf.mxu0
        %501 = vdwg.mxu0
        %502 = vmatpush.bf16.msra.mxu0 0
        %503 = vmatpush.bf16.msra.mxu0 0
        %504 = vmatpush.bf16.msra.mxu0 0
        %505 = vmatpush.bf16.msra.mxu0 0
        %506 = vmatpush.bf16.msra.mxu0 0
        %507 = vmatpush.bf16.msra.mxu0 0
        %508 = vmatpush.bf16.msra.mxu0 0
        %509 = vmatpush.bf16.msra.mxu0 %v369
        %510 = vmatmul.bf16.gmra.mxu0 %v487
        %v511 = vpop.f32.mrf.mxu0
        %v512 = vadd.f32 %v499, %v511
        %v513 = vpop.f32.mrf.mxu0
        %514 = vdwg.mxu0
        %v515 = vmax.f32 %v479, %v512
        %v516 = vld [vmem:[%s2] sm:$0x1]
        %v517 = vmul.f32 %v515, %v516
        %v518 = vld [vmem:[%s3] sm:$0x1]
        %v519 = vadd.f32 %v517, %v518
        %v520 = vmax.f32 %v519, 0.0
        %v521 = vpack.c.bf16 %v520, %v520
        %v522 = vld [vmem:[%s4] sm:$0xf]
        %v523 = vld [vmem:[%s4 + $0x4] sm:$0xf]
        %v524 = vld [vmem:[%s4 + $0x8] sm:$0xf]
        %v525 = vld [vmem:[%s4 + $0xc] sm:$0xf]
        %v526 = vld [vmem:[%s5] sm:$0x1]
        %v531 = vunpack.c.l.b16 %v522
        %v532 = vunpack.c.l.b16 %v523
        %v533 = vunpack.c.l.b16 %v524
        %v534 = vunpack.c.l.b16 %v525
        %v535 = vpack.c.b16 %v532, %v531
        %v536 = vpack.c.b16 %v534, %v533
        %vm539 = vcmask 261120
        %v541 = vsel %vm539, %v521, 0
        %543 = vmatpush.bf16.msra.mxu0 0
        %544 = vmatpush.bf16.msra.mxu0 0
        %545 = vmatpush.bf16.msra.mxu0 0
        %546 = vmatpush.bf16.msra.mxu0 0
        %547 = vmatpush.bf16.msra.mxu0 0
        %548 = vmatpush.bf16.msra.mxu0 0
        %549 = vmatpush.bf16.msra.mxu0 %v536
        %550 = vmatpush.bf16.msra.mxu0 %v535
        %551 = vmatmul.bf16.gmra.mxu0 %v541
        %v552 = vpop.f32.mrf.mxu0
        %v553 = vadd.f32 %v526, %v552
        %v554 = vpop.f32.mrf.mxu0
        %555 = vdwg.mxu0
        %v556 = vmax.f32 %v553, 0.0
        %v557 = vpack.c.bf16 %v556, %v556
        %v558 = vld [vmem:[%s6] sm:$0xf]
        %v559 = vld [vmem:[%s6 + $0x4] sm:$0xf]
        %v560 = vld [vmem:[%s6 + $0x8] sm:$0xf]
        %v561 = vld [vmem:[%s6 + $0xc] sm:$0xf]
        %v562 = vld [vmem:[%s6 + $0x10] sm:$0xf]
        %v563 = vld [vmem:[%s6 + $0x14] sm:$0xf]
        %v564 = vld [vmem:[%s7] sm:$0x1]
        %v571 = vunpack.c.l.b16 %v558
        %v572 = vunpack.c.l.b16 %v559
        %v573 = vunpack.c.l.b16 %v560
        %v574 = vunpack.c.l.b16 %v561
        %v575 = vunpack.c.l.b16 %v562
        %v576 = vunpack.c.l.b16 %v563
        %v577 = vpack.c.b16 %v572, %v571
        %v578 = vpack.c.b16 %v574, %v573
        %v579 = vpack.c.b16 %v576, %v575
        %vm583 = vcmask 392192
        %v585 = vsel %vm583, %v557, 0
        %587 = vmatpush.bf16.msra.mxu0 0
        %588 = vmatpush.bf16.msra.mxu0 0
        %589 = vmatpush.bf16.msra.mxu0 0
        %590 = vmatpush.bf16.msra.mxu0 0
        %591 = vmatpush.bf16.msra.mxu0 0
        %592 = vmatpush.bf16.msra.mxu0 %v579
        %593 = vmatpush.bf16.msra.mxu0 %v578
        %594 = vmatpush.bf16.msra.mxu0 %v577
        %595 = vmatmul.bf16.gmra.mxu0 %v585
        %v596 = vpop.f32.mrf.mxu0
        %v597 = vadd.f32 %v564, %v596
        %v598 = vpop.f32.mrf.mxu0
        %599 = vdwg.mxu0
        %vm600 = vcmask 73728
        %601 = vst.msk [vmem:[%s295] sm:$0x1] %vm600, %v597
        %s602 = sand.u32 %s203, 1
        %s603 = scalar_lea.sflag [#allocation3], %s602
        %s604 = sand.u32 %s203, 1
        %s605 = scalar_lea.vmem [#allocation2], %s604
        // Predicated region
        $region53: #{net_forward.7} parent=51 // pred_check
          %p606 = pneg %p213
        $region54: #{net_forward.7} parent=51 // pred_check_branch
          %608 = sbr.rel (%p606) target = $region56
        $region55: #{net_forward.7} parent=51 // pred_region
          %610 = vsyncadd %s603, 0
          %s611 = scalar_lea.hbm %s8, %s22
          %s613 = sshll.u32 %s605, 4
          %s614 = int_to_ptr.vmem [resolvable:$true] %s613
          %s615 = sshll.u32 %s611, 4
          %s616 = int_to_ptr.hbm [resolvable:$true] %s615
          %618 = dma.vmem_to_hbm [thread:$0]  %s614, 16, %s616, %s603
        $region56: #{net_forward.7} parent=51 // pred_fallthru
          _
      $region52: #{net_forward.7} parent=5 // pred_fallthru
        _
      %p619 = scmp.le.s32.totalorder 2, %s17
      // Predicated region
      $region57: #{net_forward.7} parent=5 // pred_check
        %p620 = pneg %p619
      $region58: #{net_forward.7} parent=5 // pred_check_branch
        %622 = sbr.rel (%p620) target = $region60
      $region59: #{net_forward.7} parent=5 // pred_region
        %s623 = ssub.s32 %s17, 2
        // Predicated region
        $region61: #{net_forward.7} parent=59 // pred_check
          %p624 = pneg %p219
        $region62: #{net_forward.7} parent=59 // pred_check_branch
          %626 = sbr.rel (%p624) target = $region64
        $region63: #{net_forward.7} parent=59 // pred_region
          %s627 = sand.u32 %s204, 1
          %s628 = scalar_lea.sflag [#allocation3], %s627
          %s629 = sand.u32 %s204, 1
          %s630 = scalar_lea.vmem [#allocation2], %s629
          %632 = dma.done %s628, 16
        $region64: #{net_forward.7} parent=59 // pred_fallthru
          _
      $region60: #{net_forward.7} parent=5 // pred_fallthru
        _
    $region6: #{net_forward.7} parent=1 // loop_footer
      %s21 = sadd.s32 1, %s17
    $region7: #{net_forward.7} parent=1 // loop_footer_branch
      %16 = sbr.rel target = $region3
    $region8: #{net_forward.7} parent=1 // loop_exit
      _
    %633 = vsyncpa [#allocation3], 1
    %s634 = scalar_lea.sflag [#allocation3], 1
    %635 = vsyncpa %s634, 1

</llo_original>
